<compile_context>
chip_gen: v5e
topology: v5e:2x2
jax: 0.10.0
libtpu: 0.0.40
codegen_flags: <defaults>
</compile_context>

<pallas_src>
import jax
import jax.numpy as jnp
from jax.experimental import pallas as pl
from jax.experimental.pallas import tpu as pltpu


# ----------------------------------------------------------------------------
# Fused kernel: all LSTM layers (gate order i, f, g, o like PyTorch) + fc1/fc2.
# ----------------------------------------------------------------------------
def _make_fused_kernel(n_layers, T, B, B_pad):
    def kernel(*refs):
        x_ref = refs[0]                                    # (B*T, I), row = b*T + t
        w_refs = refs[1:1 + 3 * n_layers]
        fc1_w_ref, fc1_b_ref, fc2_w_ref, fc2_b_ref = refs[1 + 3 * n_layers:5 + 3 * n_layers]
        out_ref = refs[5 + 3 * n_layers]
        xin_scr = refs[6 + 3 * n_layers]                   # (T*B_pad, I) scratch

        # ---- One-time in-kernel relayout: batch-major rows -> time-major padded rows.
        # Row t*B_pad + b holds x[b, t, :]; pad rows (b >= B) are zero and never mix
        # into real rows (every op below is row-local).  Replaces the wrapper-side
        # transpose (a whole extra XLA launch) of the previous version.
        xin_scr[...] = jnp.zeros_like(xin_scr)
        for b in range(B):
            for t in range(T):
                xin_scr[pl.ds(t * B_pad + b, 1), :] = x_ref[pl.ds(b * T + t, 1), :]
        seq = xin_scr[...]                                 # (T*B_pad, I_in)

        hs = None
        for l in range(n_layers):
            wih_ref, whh_ref, b_ref = w_refs[3 * l:3 * l + 3]
            H = whh_ref.shape[0]
            G = 4 * H

            # Hoisted input-to-hidden projection: one MXU matmul for all T steps
            # (+ one bias broadcast), leaving only the recurrent term per step.
            gx = (jnp.dot(seq, wih_ref[...], preferred_element_type=jnp.float32)
                  + b_ref[...])                            # (T*B_pad, 4H)

            whh = whh_ref[...]                             # (H, 4H)
            small_h = H <= 8
            if small_h:
                # Decoder-sized layers: keep h @ W_hh on the VPU.  Hoist the sublane
                # broadcast of every W_hh row out of the T loop (JAX does not CSE
                # broadcast_in_dim).
                whh_rows = [jnp.broadcast_to(whh[k:k + 1, :], (B_pad, G)) for k in range(H)]

            h = None
            c = None
            hs = []
            # Fully unrolled recurrence (T static) -> straight-line code.
            for t in range(T):
                gx_t = gx[t * B_pad:(t + 1) * B_pad, :]    # vreg-aligned slice (B_pad=8)
                if t == 0:
                    gates = gx_t                           # h == 0, skip recurrent term
                elif small_h:
                    rec = h[:, 0:1] * whh_rows[0]          # 4 lane-broadcast VPU FMAs
                    for k in range(1, H):
                        rec = rec + h[:, k:k + 1] * whh_rows[k]
                    gates = gx_t + rec
                else:
                    gates = gx_t + jnp.dot(h, whh, preferred_element_type=jnp.float32)

                # Full-width transcendentals (2 EUP issues per step), then static lane
                # slices to split the i/f/g/o chunks.
                sg = jax.nn.sigmoid(gates)
                tg = jnp.tanh(gates)
                i_g = sg[:, 0 * H:1 * H]
                f_g = sg[:, 1 * H:2 * H]
                g_g = tg[:, 2 * H:3 * H]
                o_g = sg[:, 3 * H:4 * H]
                if t == 0:
                    c = i_g * g_g                          # f * c == 0 at t == 0
                else:
                    c = f_g * c + i_g * g_g
                h = o_g * jnp.tanh(c)
                hs.append(h)

            if l < n_layers - 1:
                # Hand the sequence to the next layer entirely in vregs: aligned
                # sublane concat (8-row pieces), no VMEM round-trip.
                seq = jnp.concatenate(hs, axis=0)          # (T*B_pad, H)

        # ---- fc1 -> fc2 head (dropout layers are identity at inference).
        # fc1(flatten(out)) == sum_t h_t @ W1[t*I:(t+1)*I, :] + b1 (exact linearity).
        # The T dots are independent; reduce them pairwise so they pipeline through the
        # MXU instead of serializing on an accumulator.
        I_out = hs[0].shape[1]
        w1 = fc1_w_ref[...]                                # (T*I, 64)
        parts = [
            jnp.dot(hs[t], w1[t * I_out:(t + 1) * I_out, :],
                    preferred_element_type=jnp.float32)
            for t in range(T)
        ]
        while len(parts) > 1:
            nxt = []
            for i in range(0, len(parts) - 1, 2):
                nxt.append(parts[i] + parts[i + 1])
            if len(parts) % 2:
                nxt.append(parts[-1])
            parts = nxt
        acc = parts[0] + fc1_b_ref[...]                    # (B_pad, 64)
        res = (jnp.dot(acc, fc2_w_ref[...], preferred_element_type=jnp.float32)
               + fc2_b_ref[...])                           # (B_pad, 1)
        out_ref[...] = res[:B, :]                          # drop pad rows in-kernel

    return kernel


# ----------------------------------------------------------------------------
# Full forward pass (matches LstmModel.forward in eval mode), one pallas_call.
# ----------------------------------------------------------------------------
@jax.jit
def lstm_model_forward(x_btf, enc_params, dec_params, fc1_w, fc1_b, fc2_w, fc2_b):
    # x_btf: (B, T, input_size), batch_first like PyTorch.
    B, T, I = x_btf.shape
    B_pad = ((B + 7) // 8) * 8                             # sublane-aligned batch

    layer_params = list(enc_params) + list(dec_params)
    n_layers = len(layer_params)
    flat_w = [w for p in layer_params for w in p]

    # Free bitcast reshape (row b*T + t == x[b, t, :]); no transpose launch — the
    # time-major relayout happens inside the kernel.
    x_rows = x_btf.reshape(B * T, I)

    kernel = _make_fused_kernel(n_layers, T, B, B_pad)
    n_inputs = 1 + 3 * n_layers + 4
    vmem = pl.BlockSpec(memory_space=pltpu.MemorySpace.VMEM)

    return pl.pallas_call(
        kernel,
        out_shape=jax.ShapeDtypeStruct((B, fc2_w.shape[1]), jnp.float32),
        in_specs=[vmem] * n_inputs,
        out_specs=vmem,
        scratch_shapes=[pltpu.VMEM((T * B_pad, I), jnp.float32)],   # relayout slab only
    )(x_rows, *flat_w, fc1_w, fc1_b, fc2_w, fc2_b)


# ----------------------------------------------------------------------------
# Parameter init (deterministic, PyTorch nn.LSTM shapes, pre-transposed for kernel).
# ----------------------------------------------------------------------------
def init_lstm_params(key, num_layers, input_size, hidden_size):
    params = []
    bound = 1.0 / float(hidden_size) ** 0.5
    for layer in range(num_layers):
        in_sz = input_size if layer == 0 else hidden_size
        key, k1, k2, k3, k4 = jax.random.split(key, 5)
        w_ih = jax.random.uniform(k1, (4 * hidden_size, in_sz), jnp.float32, -bound, bound)
        w_hh = jax.random.uniform(k2, (4 * hidden_size, hidden_size), jnp.float32, -bound, bound)
        b_ih = jax.random.uniform(k3, (4 * hidden_size,), jnp.float32, -bound, bound)
        b_hh = jax.random.uniform(k4, (4 * hidden_size,), jnp.float32, -bound, bound)
        params.append((w_ih.T, w_hh.T, (b_ih + b_hh)[None, :]))
    return key, params


# ----------------------------------------------------------------------------
# Pure-JAX reference (same f32 math) for a correctness sanity check.
# ----------------------------------------------------------------------------
def _lstm_layer_ref(x_tbf, wih_t, whh_t, bias2d):
    T, B, _ = x_tbf.shape
    H = whh_t.shape[0]

    def step(carry, x_t):
        h, c = carry
        gates = x_t @ wih_t + h @ whh_t + bias2d[0]
        i, f, g, o = jnp.split(gates, 4, axis=-1)
        i = jax.nn.sigmoid(i)
        f = jax.nn.sigmoid(f)
        g = jnp.tanh(g)
        o = jax.nn.sigmoid(o)
        c = f * c + i * g
        h = o * jnp.tanh(c)
        return (h, c), h

    init = (jnp.zeros((B, H), jnp.float32), jnp.zeros((B, H), jnp.float32))
    _, hs = jax.lax.scan(step, init, x_tbf)
    return hs


def reference_forward(x_btf, enc_params, dec_params, fc1_w, fc1_b, fc2_w, fc2_b):
    h = jnp.transpose(x_btf, (1, 0, 2))
    for p in list(enc_params) + list(dec_params):
        h = _lstm_layer_ref(h, *p)
    out = jnp.transpose(h, (1, 0, 2)).reshape(x_btf.shape[0], -1)
    return (out @ fc1_w + fc1_b) @ fc2_w + fc2_b


if __name__ == "__main__":
    # Small shapes consistent with the module: fc1 takes seq_len*4 features, which
    # forces input_size == 4.
    B, T, INPUT, HIDDEN, LAYERS = 2, 8, 4, 32, 2

    key = jax.random.PRNGKey(0)
    key, kx = jax.random.split(key)
    x = jax.random.normal(kx, (B, T, INPUT), jnp.float32)

    key, enc_params = init_lstm_params(key, LAYERS, INPUT, HIDDEN)
    key, dec_params = init_lstm_params(key, LAYERS, HIDDEN, INPUT)

    key, k1, k2, k3, k4 = jax.random.split(key, 5)
    fc1_w = jax.random.uniform(k1, (T * INPUT, 64), jnp.float32, -0.1, 0.1)
    fc1_b = jax.random.uniform(k2, (1, 64), jnp.float32, -0.1, 0.1)
    fc2_w = jax.random.uniform(k3, (64, 1), jnp.float32, -0.1, 0.1)
    fc2_b = jax.random.uniform(k4, (1, 1), jnp.float32, -0.1, 0.1)

    out = lstm_model_forward(x, enc_params, dec_params, fc1_w, fc1_b, fc2_w, fc2_b)
    out = jax.block_until_ready(out)
    assert out.shape == (B, 1), out.shape
    assert jnp.all(jnp.isfinite(out))

    ref = reference_forward(x, enc_params, dec_params, fc1_w, fc1_b, fc2_w, fc2_b)
    assert jnp.allclose(out, ref, rtol=1e-3, atol=1e-3), (out, ref)

    print("KERNEL_OK")
</pallas_src>

<mosaic_0001>
module attributes {stable_mosaic.version = 11 : i64} {
  func.func @kernel(%arg0: memref<16x4xf32, #tpu.memory_space<vmem>>, %arg1: memref<4x128xf32, #tpu.memory_space<vmem>>, %arg2: memref<32x128xf32, #tpu.memory_space<vmem>>, %arg3: memref<1x128xf32, #tpu.memory_space<vmem>>, %arg4: memref<32x128xf32, #tpu.memory_space<vmem>>, %arg5: memref<32x128xf32, #tpu.memory_space<vmem>>, %arg6: memref<1x128xf32, #tpu.memory_space<vmem>>, %arg7: memref<32x16xf32, #tpu.memory_space<vmem>>, %arg8: memref<4x16xf32, #tpu.memory_space<vmem>>, %arg9: memref<1x16xf32, #tpu.memory_space<vmem>>, %arg10: memref<4x16xf32, #tpu.memory_space<vmem>>, %arg11: memref<4x16xf32, #tpu.memory_space<vmem>>, %arg12: memref<1x16xf32, #tpu.memory_space<vmem>>, %arg13: memref<32x64xf32, #tpu.memory_space<vmem>>, %arg14: memref<1x64xf32, #tpu.memory_space<vmem>>, %arg15: memref<64x1xf32, #tpu.memory_space<vmem>>, %arg16: memref<1x1xf32, #tpu.memory_space<vmem>>, %arg17: memref<2x1xf32, #tpu.memory_space<vmem>>, %arg18: memref<64x4xf32, #tpu.memory_space<vmem>>) attributes {dimension_semantics = [], scalar_prefetch = 0 : i64, scratch_operands = 1 : i64, tpu.core_type = #tpu.core_type<tc>} {
    %cst = arith.constant 0.000000e+00 : f32
    %0 = vector.broadcast %cst : f32 to vector<64x4xf32>
    %c0 = arith.constant 0 : index
    %c0_0 = arith.constant 0 : index
    %1 = vector.load %arg18[%c0, %c0_0] : memref<64x4xf32, #tpu.memory_space<vmem>>, vector<64x4xf32>
    tpu.vector_store %arg18[%c0, %c0_0], %0 {strides = array<i32>} : memref<64x4xf32, #tpu.memory_space<vmem>>, vector<64x4xf32>,
    %c0_1 = arith.constant 0 : index
    %c0_2 = arith.constant 0 : index
    %2 = vector.load %arg0[%c0_1, %c0_2] : memref<16x4xf32, #tpu.memory_space<vmem>>, vector<1x4xf32>
    %c0_3 = arith.constant 0 : index
    %c0_4 = arith.constant 0 : index
    %3 = vector.load %arg18[%c0_3, %c0_4] : memref<64x4xf32, #tpu.memory_space<vmem>>, vector<1x4xf32>
    tpu.vector_store %arg18[%c0_3, %c0_4], %2 {strides = array<i32>} : memref<64x4xf32, #tpu.memory_space<vmem>>, vector<1x4xf32>,
    %c1 = arith.constant 1 : index
    %c0_5 = arith.constant 0 : index
    %4 = vector.load %arg0[%c1, %c0_5] : memref<16x4xf32, #tpu.memory_space<vmem>>, vector<1x4xf32>
    %c8 = arith.constant 8 : index
    %c0_6 = arith.constant 0 : index
    %5 = vector.load %arg18[%c8, %c0_6] : memref<64x4xf32, #tpu.memory_space<vmem>>, vector<1x4xf32>
    tpu.vector_store %arg18[%c8, %c0_6], %4 {strides = array<i32>} : memref<64x4xf32, #tpu.memory_space<vmem>>, vector<1x4xf32>,
    %c2 = arith.constant 2 : index
    %c0_7 = arith.constant 0 : index
    %6 = vector.load %arg0[%c2, %c0_7] : memref<16x4xf32, #tpu.memory_space<vmem>>, vector<1x4xf32>
    %c16 = arith.constant 16 : index
    %c0_8 = arith.constant 0 : index
    %7 = vector.load %arg18[%c16, %c0_8] : memref<64x4xf32, #tpu.memory_space<vmem>>, vector<1x4xf32>
    tpu.vector_store %arg18[%c16, %c0_8], %6 {strides = array<i32>} : memref<64x4xf32, #tpu.memory_space<vmem>>, vector<1x4xf32>,
    %c3 = arith.constant 3 : index
    %c0_9 = arith.constant 0 : index
    %8 = vector.load %arg0[%c3, %c0_9] : memref<16x4xf32, #tpu.memory_space<vmem>>, vector<1x4xf32>
    %c24 = arith.constant 24 : index
    %c0_10 = arith.constant 0 : index
    %9 = vector.load %arg18[%c24, %c0_10] : memref<64x4xf32, #tpu.memory_space<vmem>>, vector<1x4xf32>
    tpu.vector_store %arg18[%c24, %c0_10], %8 {strides = array<i32>} : memref<64x4xf32, #tpu.memory_space<vmem>>, vector<1x4xf32>,
    %c4 = arith.constant 4 : index
    %c0_11 = arith.constant 0 : index
    %10 = vector.load %arg0[%c4, %c0_11] : memref<16x4xf32, #tpu.memory_space<vmem>>, vector<1x4xf32>
    %c32 = arith.constant 32 : index
    %c0_12 = arith.constant 0 : index
    %11 = vector.load %arg18[%c32, %c0_12] : memref<64x4xf32, #tpu.memory_space<vmem>>, vector<1x4xf32>
    tpu.vector_store %arg18[%c32, %c0_12], %10 {strides = array<i32>} : memref<64x4xf32, #tpu.memory_space<vmem>>, vector<1x4xf32>,
    %c5 = arith.constant 5 : index
    %c0_13 = arith.constant 0 : index
    %12 = vector.load %arg0[%c5, %c0_13] : memref<16x4xf32, #tpu.memory_space<vmem>>, vector<1x4xf32>
    %c40 = arith.constant 40 : index
    %c0_14 = arith.constant 0 : index
    %13 = vector.load %arg18[%c40, %c0_14] : memref<64x4xf32, #tpu.memory_space<vmem>>, vector<1x4xf32>
    tpu.vector_store %arg18[%c40, %c0_14], %12 {strides = array<i32>} : memref<64x4xf32, #tpu.memory_space<vmem>>, vector<1x4xf32>,
    %c6 = arith.constant 6 : index
    %c0_15 = arith.constant 0 : index
    %14 = vector.load %arg0[%c6, %c0_15] : memref<16x4xf32, #tpu.memory_space<vmem>>, vector<1x4xf32>
    %c48 = arith.constant 48 : index
    %c0_16 = arith.constant 0 : index
    %15 = vector.load %arg18[%c48, %c0_16] : memref<64x4xf32, #tpu.memory_space<vmem>>, vector<1x4xf32>
    tpu.vector_store %arg18[%c48, %c0_16], %14 {strides = array<i32>} : memref<64x4xf32, #tpu.memory_space<vmem>>, vector<1x4xf32>,
    %c7 = arith.constant 7 : index
    %c0_17 = arith.constant 0 : index
    %16 = vector.load %arg0[%c7, %c0_17] : memref<16x4xf32, #tpu.memory_space<vmem>>, vector<1x4xf32>
    %c56 = arith.constant 56 : index
    %c0_18 = arith.constant 0 : index
    %17 = vector.load %arg18[%c56, %c0_18] : memref<64x4xf32, #tpu.memory_space<vmem>>, vector<1x4xf32>
    tpu.vector_store %arg18[%c56, %c0_18], %16 {strides = array<i32>} : memref<64x4xf32, #tpu.memory_space<vmem>>, vector<1x4xf32>,
    %c8_19 = arith.constant 8 : index
    %c0_20 = arith.constant 0 : index
    %18 = vector.load %arg0[%c8_19, %c0_20] : memref<16x4xf32, #tpu.memory_space<vmem>>, vector<1x4xf32>
    %c1_21 = arith.constant 1 : index
    %c0_22 = arith.constant 0 : index
    %19 = vector.load %arg18[%c1_21, %c0_22] : memref<64x4xf32, #tpu.memory_space<vmem>>, vector<1x4xf32>
    tpu.vector_store %arg18[%c1_21, %c0_22], %18 {strides = array<i32>} : memref<64x4xf32, #tpu.memory_space<vmem>>, vector<1x4xf32>,
    %c9 = arith.constant 9 : index
    %c0_23 = arith.constant 0 : index
    %20 = vector.load %arg0[%c9, %c0_23] : memref<16x4xf32, #tpu.memory_space<vmem>>, vector<1x4xf32>
    %c9_24 = arith.constant 9 : index
    %c0_25 = arith.constant 0 : index
    %21 = vector.load %arg18[%c9_24, %c0_25] : memref<64x4xf32, #tpu.memory_space<vmem>>, vector<1x4xf32>
    tpu.vector_store %arg18[%c9_24, %c0_25], %20 {strides = array<i32>} : memref<64x4xf32, #tpu.memory_space<vmem>>, vector<1x4xf32>,
    %c10 = arith.constant 10 : index
    %c0_26 = arith.constant 0 : index
    %22 = vector.load %arg0[%c10, %c0_26] : memref<16x4xf32, #tpu.memory_space<vmem>>, vector<1x4xf32>
    %c17 = arith.constant 17 : index
    %c0_27 = arith.constant 0 : index
    %23 = vector.load %arg18[%c17, %c0_27] : memref<64x4xf32, #tpu.memory_space<vmem>>, vector<1x4xf32>
    tpu.vector_store %arg18[%c17, %c0_27], %22 {strides = array<i32>} : memref<64x4xf32, #tpu.memory_space<vmem>>, vector<1x4xf32>,
    %c11 = arith.constant 11 : index
    %c0_28 = arith.constant 0 : index
    %24 = vector.load %arg0[%c11, %c0_28] : memref<16x4xf32, #tpu.memory_space<vmem>>, vector<1x4xf32>
    %c25 = arith.constant 25 : index
    %c0_29 = arith.constant 0 : index
    %25 = vector.load %arg18[%c25, %c0_29] : memref<64x4xf32, #tpu.memory_space<vmem>>, vector<1x4xf32>
    tpu.vector_store %arg18[%c25, %c0_29], %24 {strides = array<i32>} : memref<64x4xf32, #tpu.memory_space<vmem>>, vector<1x4xf32>,
    %c12 = arith.constant 12 : index
    %c0_30 = arith.constant 0 : index
    %26 = vector.load %arg0[%c12, %c0_30] : memref<16x4xf32, #tpu.memory_space<vmem>>, vector<1x4xf32>
    %c33 = arith.constant 33 : index
    %c0_31 = arith.constant 0 : index
    %27 = vector.load %arg18[%c33, %c0_31] : memref<64x4xf32, #tpu.memory_space<vmem>>, vector<1x4xf32>
    tpu.vector_store %arg18[%c33, %c0_31], %26 {strides = array<i32>} : memref<64x4xf32, #tpu.memory_space<vmem>>, vector<1x4xf32>,
    %c13 = arith.constant 13 : index
    %c0_32 = arith.constant 0 : index
    %28 = vector.load %arg0[%c13, %c0_32] : memref<16x4xf32, #tpu.memory_space<vmem>>, vector<1x4xf32>
    %c41 = arith.constant 41 : index
    %c0_33 = arith.constant 0 : index
    %29 = vector.load %arg18[%c41, %c0_33] : memref<64x4xf32, #tpu.memory_space<vmem>>, vector<1x4xf32>
    tpu.vector_store %arg18[%c41, %c0_33], %28 {strides = array<i32>} : memref<64x4xf32, #tpu.memory_space<vmem>>, vector<1x4xf32>,
    %c14 = arith.constant 14 : index
    %c0_34 = arith.constant 0 : index
    %30 = vector.load %arg0[%c14, %c0_34] : memref<16x4xf32, #tpu.memory_space<vmem>>, vector<1x4xf32>
    %c49 = arith.constant 49 : index
    %c0_35 = arith.constant 0 : index
    %31 = vector.load %arg18[%c49, %c0_35] : memref<64x4xf32, #tpu.memory_space<vmem>>, vector<1x4xf32>
    tpu.vector_store %arg18[%c49, %c0_35], %30 {strides = array<i32>} : memref<64x4xf32, #tpu.memory_space<vmem>>, vector<1x4xf32>,
    %c15 = arith.constant 15 : index
    %c0_36 = arith.constant 0 : index
    %32 = vector.load %arg0[%c15, %c0_36] : memref<16x4xf32, #tpu.memory_space<vmem>>, vector<1x4xf32>
    %c57 = arith.constant 57 : index
    %c0_37 = arith.constant 0 : index
    %33 = vector.load %arg18[%c57, %c0_37] : memref<64x4xf32, #tpu.memory_space<vmem>>, vector<1x4xf32>
    tpu.vector_store %arg18[%c57, %c0_37], %32 {strides = array<i32>} : memref<64x4xf32, #tpu.memory_space<vmem>>, vector<1x4xf32>,
    %c0_38 = arith.constant 0 : index
    %c0_39 = arith.constant 0 : index
    %34 = vector.load %arg18[%c0_38, %c0_39] : memref<64x4xf32, #tpu.memory_space<vmem>>, vector<64x4xf32>
    %c0_40 = arith.constant 0 : index
    %c0_41 = arith.constant 0 : index
    %35 = vector.load %arg1[%c0_40, %c0_41] : memref<4x128xf32, #tpu.memory_space<vmem>>, vector<4x128xf32>
    %cst_42 = arith.constant dense<0.000000e+00> : vector<64x128xf32>
    %36 = tpu.matmul %34, %35, %cst_42 {dimension_numbers = #tpu.dot_dimension_numbers<[1], [0], [0], [1], [0, 0, 1, 1], [], []>} : vector<64x4xf32>, vector<4x128xf32>, vector<64x128xf32> -> vector<64x128xf32>
    %c0_43 = arith.constant 0 : index
    %c0_44 = arith.constant 0 : index
    %37 = vector.load %arg3[%c0_43, %c0_44] : memref<1x128xf32, #tpu.memory_space<vmem>>, vector<1x128xf32>
    %38 = vector.broadcast %37 : vector<1x128xf32> to vector<64x128xf32>
    %39 = arith.addf %36, %38 : vector<64x128xf32>
    %c0_45 = arith.constant 0 : index
    %c0_46 = arith.constant 0 : index
    %40 = vector.load %arg2[%c0_45, %c0_46] : memref<32x128xf32, #tpu.memory_space<vmem>>, vector<32x128xf32>
    %41 = vector.extract_strided_slice %39 {offsets = [0, 0], sizes = [8, 128], strides = [1, 1]} : vector<64x128xf32> to vector<8x128xf32>
    %42 = arith.negf %41 : vector<8x128xf32>
    %43 = math.exp %42 : vector<8x128xf32>
    %cst_47 = arith.constant 1.000000e+00 : f32
    %44 = vector.broadcast %cst_47 : f32 to vector<8x128xf32>
    %45 = arith.addf %44, %43 : vector<8x128xf32>
    %46 = arith.divf %44, %45 : vector<8x128xf32>
    %47 = math.tanh %41 : vector<8x128xf32>
    %48 = vector.extract_strided_slice %46 {offsets = [0, 0], sizes = [8, 32], strides = [1, 1]} : vector<8x128xf32> to vector<8x32xf32>
    %49 = vector.extract_strided_slice %47 {offsets = [0, 64], sizes = [8, 32], strides = [1, 1]} : vector<8x128xf32> to vector<8x32xf32>
    %50 = vector.extract_strided_slice %46 {offsets = [0, 96], sizes = [8, 32], strides = [1, 1]} : vector<8x128xf32> to vector<8x32xf32>
    %51 = arith.mulf %48, %49 : vector<8x32xf32>
    %52 = math.tanh %51 : vector<8x32xf32>
    %53 = arith.mulf %50, %52 : vector<8x32xf32>
    %54 = vector.extract_strided_slice %39 {offsets = [8, 0], sizes = [8, 128], strides = [1, 1]} : vector<64x128xf32> to vector<8x128xf32>
    %cst_48 = arith.constant dense<0.000000e+00> : vector<8x128xf32>
    %55 = tpu.matmul %53, %40, %cst_48 {dimension_numbers = #tpu.dot_dimension_numbers<[1], [0], [0], [1], [0, 0, 1, 1], [], []>} : vector<8x32xf32>, vector<32x128xf32>, vector<8x128xf32> -> vector<8x128xf32>
    %56 = arith.addf %54, %55 : vector<8x128xf32>
    %57 = arith.negf %56 : vector<8x128xf32>
    %58 = math.exp %57 : vector<8x128xf32>
    %cst_49 = arith.constant 1.000000e+00 : f32
    %59 = vector.broadcast %cst_49 : f32 to vector<8x128xf32>
    %60 = arith.addf %59, %58 : vector<8x128xf32>
    %61 = arith.divf %59, %60 : vector<8x128xf32>
    %62 = math.tanh %56 : vector<8x128xf32>
    %63 = vector.extract_strided_slice %61 {offsets = [0, 0], sizes = [8, 32], strides = [1, 1]} : vector<8x128xf32> to vector<8x32xf32>
    %64 = vector.extract_strided_slice %61 {offsets = [0, 32], sizes = [8, 32], strides = [1, 1]} : vector<8x128xf32> to vector<8x32xf32>
    %65 = vector.extract_strided_slice %62 {offsets = [0, 64], sizes = [8, 32], strides = [1, 1]} : vector<8x128xf32> to vector<8x32xf32>
    %66 = vector.extract_strided_slice %61 {offsets = [0, 96], sizes = [8, 32], strides = [1, 1]} : vector<8x128xf32> to vector<8x32xf32>
    %67 = arith.mulf %64, %51 : vector<8x32xf32>
    %68 = arith.mulf %63, %65 : vector<8x32xf32>
    %69 = arith.addf %67, %68 : vector<8x32xf32>
    %70 = math.tanh %69 : vector<8x32xf32>
    %71 = arith.mulf %66, %70 : vector<8x32xf32>
    %72 = vector.extract_strided_slice %39 {offsets = [16, 0], sizes = [8, 128], strides = [1, 1]} : vector<64x128xf32> to vector<8x128xf32>
    %cst_50 = arith.constant dense<0.000000e+00> : vector<8x128xf32>
    %73 = tpu.matmul %71, %40, %cst_50 {dimension_numbers = #tpu.dot_dimension_numbers<[1], [0], [0], [1], [0, 0, 1, 1], [], []>} : vector<8x32xf32>, vector<32x128xf32>, vector<8x128xf32> -> vector<8x128xf32>
    %74 = arith.addf %72, %73 : vector<8x128xf32>
    %75 = arith.negf %74 : vector<8x128xf32>
    %76 = math.exp %75 : vector<8x128xf32>
    %cst_51 = arith.constant 1.000000e+00 : f32
    %77 = vector.broadcast %cst_51 : f32 to vector<8x128xf32>
    %78 = arith.addf %77, %76 : vector<8x128xf32>
    %79 = arith.divf %77, %78 : vector<8x128xf32>
    %80 = math.tanh %74 : vector<8x128xf32>
    %81 = vector.extract_strided_slice %79 {offsets = [0, 0], sizes = [8, 32], strides = [1, 1]} : vector<8x128xf32> to vector<8x32xf32>
    %82 = vector.extract_strided_slice %79 {offsets = [0, 32], sizes = [8, 32], strides = [1, 1]} : vector<8x128xf32> to vector<8x32xf32>
    %83 = vector.extract_strided_slice %80 {offsets = [0, 64], sizes = [8, 32], strides = [1, 1]} : vector<8x128xf32> to vector<8x32xf32>
    %84 = vector.extract_strided_slice %79 {offsets = [0, 96], sizes = [8, 32], strides = [1, 1]} : vector<8x128xf32> to vector<8x32xf32>
    %85 = arith.mulf %82, %69 : vector<8x32xf32>
    %86 = arith.mulf %81, %83 : vector<8x32xf32>
    %87 = arith.addf %85, %86 : vector<8x32xf32>
    %88 = math.tanh %87 : vector<8x32xf32>
    %89 = arith.mulf %84, %88 : vector<8x32xf32>
    %90 = vector.extract_strided_slice %39 {offsets = [24, 0], sizes = [8, 128], strides = [1, 1]} : vector<64x128xf32> to vector<8x128xf32>
    %cst_52 = arith.constant dense<0.000000e+00> : vector<8x128xf32>
    %91 = tpu.matmul %89, %40, %cst_52 {dimension_numbers = #tpu.dot_dimension_numbers<[1], [0], [0], [1], [0, 0, 1, 1], [], []>} : vector<8x32xf32>, vector<32x128xf32>, vector<8x128xf32> -> vector<8x128xf32>
    %92 = arith.addf %90, %91 : vector<8x128xf32>
    %93 = arith.negf %92 : vector<8x128xf32>
    %94 = math.exp %93 : vector<8x128xf32>
    %cst_53 = arith.constant 1.000000e+00 : f32
    %95 = vector.broadcast %cst_53 : f32 to vector<8x128xf32>
    %96 = arith.addf %95, %94 : vector<8x128xf32>
    %97 = arith.divf %95, %96 : vector<8x128xf32>
    %98 = math.tanh %92 : vector<8x128xf32>
    %99 = vector.extract_strided_slice %97 {offsets = [0, 0], sizes = [8, 32], strides = [1, 1]} : vector<8x128xf32> to vector<8x32xf32>
    %100 = vector.extract_strided_slice %97 {offsets = [0, 32], sizes = [8, 32], strides = [1, 1]} : vector<8x128xf32> to vector<8x32xf32>
    %101 = vector.extract_strided_slice %98 {offsets = [0, 64], sizes = [8, 32], strides = [1, 1]} : vector<8x128xf32> to vector<8x32xf32>
    %102 = vector.extract_strided_slice %97 {offsets = [0, 96], sizes = [8, 32], strides = [1, 1]} : vector<8x128xf32> to vector<8x32xf32>
    %103 = arith.mulf %100, %87 : vector<8x32xf32>
    %104 = arith.mulf %99, %101 : vector<8x32xf32>
    %105 = arith.addf %103, %104 : vector<8x32xf32>
    %106 = math.tanh %105 : vector<8x32xf32>
    %107 = arith.mulf %102, %106 : vector<8x32xf32>
    %108 = vector.extract_strided_slice %39 {offsets = [32, 0], sizes = [8, 128], strides = [1, 1]} : vector<64x128xf32> to vector<8x128xf32>
    %cst_54 = arith.constant dense<0.000000e+00> : vector<8x128xf32>
    %109 = tpu.matmul %107, %40, %cst_54 {dimension_numbers = #tpu.dot_dimension_numbers<[1], [0], [0], [1], [0, 0, 1, 1], [], []>} : vector<8x32xf32>, vector<32x128xf32>, vector<8x128xf32> -> vector<8x128xf32>
    %110 = arith.addf %108, %109 : vector<8x128xf32>
    %111 = arith.negf %110 : vector<8x128xf32>
    %112 = math.exp %111 : vector<8x128xf32>
    %cst_55 = arith.constant 1.000000e+00 : f32
    %113 = vector.broadcast %cst_55 : f32 to vector<8x128xf32>
    %114 = arith.addf %113, %112 : vector<8x128xf32>
    %115 = arith.divf %113, %114 : vector<8x128xf32>
    %116 = math.tanh %110 : vector<8x128xf32>
    %117 = vector.extract_strided_slice %115 {offsets = [0, 0], sizes = [8, 32], strides = [1, 1]} : vector<8x128xf32> to vector<8x32xf32>
    %118 = vector.extract_strided_slice %115 {offsets = [0, 32], sizes = [8, 32], strides = [1, 1]} : vector<8x128xf32> to vector<8x32xf32>
    %119 = vector.extract_strided_slice %116 {offsets = [0, 64], sizes = [8, 32], strides = [1, 1]} : vector<8x128xf32> to vector<8x32xf32>
    %120 = vector.extract_strided_slice %115 {offsets = [0, 96], sizes = [8, 32], strides = [1, 1]} : vector<8x128xf32> to vector<8x32xf32>
    %121 = arith.mulf %118, %105 : vector<8x32xf32>
    %122 = arith.mulf %117, %119 : vector<8x32xf32>
    %123 = arith.addf %121, %122 : vector<8x32xf32>
    %124 = math.tanh %123 : vector<8x32xf32>
    %125 = arith.mulf %120, %124 : vector<8x32xf32>
    %126 = vector.extract_strided_slice %39 {offsets = [40, 0], sizes = [8, 128], strides = [1, 1]} : vector<64x128xf32> to vector<8x128xf32>
    %cst_56 = arith.constant dense<0.000000e+00> : vector<8x128xf32>
    %127 = tpu.matmul %125, %40, %cst_56 {dimension_numbers = #tpu.dot_dimension_numbers<[1], [0], [0], [1], [0, 0, 1, 1], [], []>} : vector<8x32xf32>, vector<32x128xf32>, vector<8x128xf32> -> vector<8x128xf32>
    %128 = arith.addf %126, %127 : vector<8x128xf32>
    %129 = arith.negf %128 : vector<8x128xf32>
    %130 = math.exp %129 : vector<8x128xf32>
    %cst_57 = arith.constant 1.000000e+00 : f32
    %131 = vector.broadcast %cst_57 : f32 to vector<8x128xf32>
    %132 = arith.addf %131, %130 : vector<8x128xf32>
    %133 = arith.divf %131, %132 : vector<8x128xf32>
    %134 = math.tanh %128 : vector<8x128xf32>
    %135 = vector.extract_strided_slice %133 {offsets = [0, 0], sizes = [8, 32], strides = [1, 1]} : vector<8x128xf32> to vector<8x32xf32>
    %136 = vector.extract_strided_slice %133 {offsets = [0, 32], sizes = [8, 32], strides = [1, 1]} : vector<8x128xf32> to vector<8x32xf32>
    %137 = vector.extract_strided_slice %134 {offsets = [0, 64], sizes = [8, 32], strides = [1, 1]} : vector<8x128xf32> to vector<8x32xf32>
    %138 = vector.extract_strided_slice %133 {offsets = [0, 96], sizes = [8, 32], strides = [1, 1]} : vector<8x128xf32> to vector<8x32xf32>
    %139 = arith.mulf %136, %123 : vector<8x32xf32>
    %140 = arith.mulf %135, %137 : vector<8x32xf32>
    %141 = arith.addf %139, %140 : vector<8x32xf32>
    %142 = math.tanh %141 : vector<8x32xf32>
    %143 = arith.mulf %138, %142 : vector<8x32xf32>
    %144 = vector.extract_strided_slice %39 {offsets = [48, 0], sizes = [8, 128], strides = [1, 1]} : vector<64x128xf32> to vector<8x128xf32>
    %cst_58 = arith.constant dense<0.000000e+00> : vector<8x128xf32>
    %145 = tpu.matmul %143, %40, %cst_58 {dimension_numbers = #tpu.dot_dimension_numbers<[1], [0], [0], [1], [0, 0, 1, 1], [], []>} : vector<8x32xf32>, vector<32x128xf32>, vector<8x128xf32> -> vector<8x128xf32>
    %146 = arith.addf %144, %145 : vector<8x128xf32>
    %147 = arith.negf %146 : vector<8x128xf32>
    %148 = math.exp %147 : vector<8x128xf32>
    %cst_59 = arith.constant 1.000000e+00 : f32
    %149 = vector.broadcast %cst_59 : f32 to vector<8x128xf32>
    %150 = arith.addf %149, %148 : vector<8x128xf32>
    %151 = arith.divf %149, %150 : vector<8x128xf32>
    %152 = math.tanh %146 : vector<8x128xf32>
    %153 = vector.extract_strided_slice %151 {offsets = [0, 0], sizes = [8, 32], strides = [1, 1]} : vector<8x128xf32> to vector<8x32xf32>
    %154 = vector.extract_strided_slice %151 {offsets = [0, 32], sizes = [8, 32], strides = [1, 1]} : vector<8x128xf32> to vector<8x32xf32>
    %155 = vector.extract_strided_slice %152 {offsets = [0, 64], sizes = [8, 32], strides = [1, 1]} : vector<8x128xf32> to vector<8x32xf32>
    %156 = vector.extract_strided_slice %151 {offsets = [0, 96], sizes = [8, 32], strides = [1, 1]} : vector<8x128xf32> to vector<8x32xf32>
    %157 = arith.mulf %154, %141 : vector<8x32xf32>
    %158 = arith.mulf %153, %155 : vector<8x32xf32>
    %159 = arith.addf %157, %158 : vector<8x32xf32>
    %160 = math.tanh %159 : vector<8x32xf32>
    %161 = arith.mulf %156, %160 : vector<8x32xf32>
    %162 = vector.extract_strided_slice %39 {offsets = [56, 0], sizes = [8, 128], strides = [1, 1]} : vector<64x128xf32> to vector<8x128xf32>
    %cst_60 = arith.constant dense<0.000000e+00> : vector<8x128xf32>
    %163 = tpu.matmul %161, %40, %cst_60 {dimension_numbers = #tpu.dot_dimension_numbers<[1], [0], [0], [1], [0, 0, 1, 1], [], []>} : vector<8x32xf32>, vector<32x128xf32>, vector<8x128xf32> -> vector<8x128xf32>
    %164 = arith.addf %162, %163 : vector<8x128xf32>
    %165 = arith.negf %164 : vector<8x128xf32>
    %166 = math.exp %165 : vector<8x128xf32>
    %cst_61 = arith.constant 1.000000e+00 : f32
    %167 = vector.broadcast %cst_61 : f32 to vector<8x128xf32>
    %168 = arith.addf %167, %166 : vector<8x128xf32>
    %169 = arith.divf %167, %168 : vector<8x128xf32>
    %170 = math.tanh %164 : vector<8x128xf32>
    %171 = vector.extract_strided_slice %169 {offsets = [0, 0], sizes = [8, 32], strides = [1, 1]} : vector<8x128xf32> to vector<8x32xf32>
    %172 = vector.extract_strided_slice %169 {offsets = [0, 32], sizes = [8, 32], strides = [1, 1]} : vector<8x128xf32> to vector<8x32xf32>
    %173 = vector.extract_strided_slice %170 {offsets = [0, 64], sizes = [8, 32], strides = [1, 1]} : vector<8x128xf32> to vector<8x32xf32>
    %174 = vector.extract_strided_slice %169 {offsets = [0, 96], sizes = [8, 32], strides = [1, 1]} : vector<8x128xf32> to vector<8x32xf32>
    %175 = arith.mulf %172, %159 : vector<8x32xf32>
    %176 = arith.mulf %171, %173 : vector<8x32xf32>
    %177 = arith.addf %175, %176 : vector<8x32xf32>
    %178 = math.tanh %177 : vector<8x32xf32>
    %179 = arith.mulf %174, %178 : vector<8x32xf32>
    %180 = tpu.concatenate %53, %71, %89, %107, %125, %143, %161, %179 in 0 : vector<8x32xf32>, vector<8x32xf32>, vector<8x32xf32>, vector<8x32xf32>, vector<8x32xf32>, vector<8x32xf32>, vector<8x32xf32>, vector<8x32xf32> -> vector<64x32xf32>
    %c0_62 = arith.constant 0 : index
    %c0_63 = arith.constant 0 : index
    %181 = vector.load %arg4[%c0_62, %c0_63] : memref<32x128xf32, #tpu.memory_space<vmem>>, vector<32x128xf32>
    %cst_64 = arith.constant dense<0.000000e+00> : vector<64x128xf32>
    %182 = tpu.matmul %180, %181, %cst_64 {dimension_numbers = #tpu.dot_dimension_numbers<[1], [0], [0], [1], [0, 0, 1, 1], [], []>} : vector<64x32xf32>, vector<32x128xf32>, vector<64x128xf32> -> vector<64x128xf32>
    %c0_65 = arith.constant 0 : index
    %c0_66 = arith.constant 0 : index
    %183 = vector.load %arg6[%c0_65, %c0_66] : memref<1x128xf32, #tpu.memory_space<vmem>>, vector<1x128xf32>
    %184 = vector.broadcast %183 : vector<1x128xf32> to vector<64x128xf32>
    %185 = arith.addf %182, %184 : vector<64x128xf32>
    %c0_67 = arith.constant 0 : index
    %c0_68 = arith.constant 0 : index
    %186 = vector.load %arg5[%c0_67, %c0_68] : memref<32x128xf32, #tpu.memory_space<vmem>>, vector<32x128xf32>
    %187 = vector.extract_strided_slice %185 {offsets = [0, 0], sizes = [8, 128], strides = [1, 1]} : vector<64x128xf32> to vector<8x128xf32>
    %188 = arith.negf %187 : vector<8x128xf32>
    %189 = math.exp %188 : vector<8x128xf32>
    %cst_69 = arith.constant 1.000000e+00 : f32
    %190 = vector.broadcast %cst_69 : f32 to vector<8x128xf32>
    %191 = arith.addf %190, %189 : vector<8x128xf32>
    %192 = arith.divf %190, %191 : vector<8x128xf32>
    %193 = math.tanh %187 : vector<8x128xf32>
    %194 = vector.extract_strided_slice %192 {offsets = [0, 0], sizes = [8, 32], strides = [1, 1]} : vector<8x128xf32> to vector<8x32xf32>
    %195 = vector.extract_strided_slice %193 {offsets = [0, 64], sizes = [8, 32], strides = [1, 1]} : vector<8x128xf32> to vector<8x32xf32>
    %196 = vector.extract_strided_slice %192 {offsets = [0, 96], sizes = [8, 32], strides = [1, 1]} : vector<8x128xf32> to vector<8x32xf32>
    %197 = arith.mulf %194, %195 : vector<8x32xf32>
    %198 = math.tanh %197 : vector<8x32xf32>
    %199 = arith.mulf %196, %198 : vector<8x32xf32>
    %200 = vector.extract_strided_slice %185 {offsets = [8, 0], sizes = [8, 128], strides = [1, 1]} : vector<64x128xf32> to vector<8x128xf32>
    %cst_70 = arith.constant dense<0.000000e+00> : vector<8x128xf32>
    %201 = tpu.matmul %199, %186, %cst_70 {dimension_numbers = #tpu.dot_dimension_numbers<[1], [0], [0], [1], [0, 0, 1, 1], [], []>} : vector<8x32xf32>, vector<32x128xf32>, vector<8x128xf32> -> vector<8x128xf32>
    %202 = arith.addf %200, %201 : vector<8x128xf32>
    %203 = arith.negf %202 : vector<8x128xf32>
    %204 = math.exp %203 : vector<8x128xf32>
    %cst_71 = arith.constant 1.000000e+00 : f32
    %205 = vector.broadcast %cst_71 : f32 to vector<8x128xf32>
    %206 = arith.addf %205, %204 : vector<8x128xf32>
    %207 = arith.divf %205, %206 : vector<8x128xf32>
    %208 = math.tanh %202 : vector<8x128xf32>
    %209 = vector.extract_strided_slice %207 {offsets = [0, 0], sizes = [8, 32], strides = [1, 1]} : vector<8x128xf32> to vector<8x32xf32>
    %210 = vector.extract_strided_slice %207 {offsets = [0, 32], sizes = [8, 32], strides = [1, 1]} : vector<8x128xf32> to vector<8x32xf32>
    %211 = vector.extract_strided_slice %208 {offsets = [0, 64], sizes = [8, 32], strides = [1, 1]} : vector<8x128xf32> to vector<8x32xf32>
    %212 = vector.extract_strided_slice %207 {offsets = [0, 96], sizes = [8, 32], strides = [1, 1]} : vector<8x128xf32> to vector<8x32xf32>
    %213 = arith.mulf %210, %197 : vector<8x32xf32>
    %214 = arith.mulf %209, %211 : vector<8x32xf32>
    %215 = arith.addf %213, %214 : vector<8x32xf32>
    %216 = math.tanh %215 : vector<8x32xf32>
    %217 = arith.mulf %212, %216 : vector<8x32xf32>
    %218 = vector.extract_strided_slice %185 {offsets = [16, 0], sizes = [8, 128], strides = [1, 1]} : vector<64x128xf32> to vector<8x128xf32>
    %cst_72 = arith.constant dense<0.000000e+00> : vector<8x128xf32>
    %219 = tpu.matmul %217, %186, %cst_72 {dimension_numbers = #tpu.dot_dimension_numbers<[1], [0], [0], [1], [0, 0, 1, 1], [], []>} : vector<8x32xf32>, vector<32x128xf32>, vector<8x128xf32> -> vector<8x128xf32>
    %220 = arith.addf %218, %219 : vector<8x128xf32>
    %221 = arith.negf %220 : vector<8x128xf32>
    %222 = math.exp %221 : vector<8x128xf32>
    %cst_73 = arith.constant 1.000000e+00 : f32
    %223 = vector.broadcast %cst_73 : f32 to vector<8x128xf32>
    %224 = arith.addf %223, %222 : vector<8x128xf32>
    %225 = arith.divf %223, %224 : vector<8x128xf32>
    %226 = math.tanh %220 : vector<8x128xf32>
    %227 = vector.extract_strided_slice %225 {offsets = [0, 0], sizes = [8, 32], strides = [1, 1]} : vector<8x128xf32> to vector<8x32xf32>
    %228 = vector.extract_strided_slice %225 {offsets = [0, 32], sizes = [8, 32], strides = [1, 1]} : vector<8x128xf32> to vector<8x32xf32>
    %229 = vector.extract_strided_slice %226 {offsets = [0, 64], sizes = [8, 32], strides = [1, 1]} : vector<8x128xf32> to vector<8x32xf32>
    %230 = vector.extract_strided_slice %225 {offsets = [0, 96], sizes = [8, 32], strides = [1, 1]} : vector<8x128xf32> to vector<8x32xf32>
    %231 = arith.mulf %228, %215 : vector<8x32xf32>
    %232 = arith.mulf %227, %229 : vector<8x32xf32>
    %233 = arith.addf %231, %232 : vector<8x32xf32>
    %234 = math.tanh %233 : vector<8x32xf32>
    %235 = arith.mulf %230, %234 : vector<8x32xf32>
    %236 = vector.extract_strided_slice %185 {offsets = [24, 0], sizes = [8, 128], strides = [1, 1]} : vector<64x128xf32> to vector<8x128xf32>
    %cst_74 = arith.constant dense<0.000000e+00> : vector<8x128xf32>
    %237 = tpu.matmul %235, %186, %cst_74 {dimension_numbers = #tpu.dot_dimension_numbers<[1], [0], [0], [1], [0, 0, 1, 1], [], []>} : vector<8x32xf32>, vector<32x128xf32>, vector<8x128xf32> -> vector<8x128xf32>
    %238 = arith.addf %236, %237 : vector<8x128xf32>
    %239 = arith.negf %238 : vector<8x128xf32>
    %240 = math.exp %239 : vector<8x128xf32>
    %cst_75 = arith.constant 1.000000e+00 : f32
    %241 = vector.broadcast %cst_75 : f32 to vector<8x128xf32>
    %242 = arith.addf %241, %240 : vector<8x128xf32>
    %243 = arith.divf %241, %242 : vector<8x128xf32>
    %244 = math.tanh %238 : vector<8x128xf32>
    %245 = vector.extract_strided_slice %243 {offsets = [0, 0], sizes = [8, 32], strides = [1, 1]} : vector<8x128xf32> to vector<8x32xf32>
    %246 = vector.extract_strided_slice %243 {offsets = [0, 32], sizes = [8, 32], strides = [1, 1]} : vector<8x128xf32> to vector<8x32xf32>
    %247 = vector.extract_strided_slice %244 {offsets = [0, 64], sizes = [8, 32], strides = [1, 1]} : vector<8x128xf32> to vector<8x32xf32>
    %248 = vector.extract_strided_slice %243 {offsets = [0, 96], sizes = [8, 32], strides = [1, 1]} : vector<8x128xf32> to vector<8x32xf32>
    %249 = arith.mulf %246, %233 : vector<8x32xf32>
    %250 = arith.mulf %245, %247 : vector<8x32xf32>
    %251 = arith.addf %249, %250 : vector<8x32xf32>
    %252 = math.tanh %251 : vector<8x32xf32>
    %253 = arith.mulf %248, %252 : vector<8x32xf32>
    %254 = vector.extract_strided_slice %185 {offsets = [32, 0], sizes = [8, 128], strides = [1, 1]} : vector<64x128xf32> to vector<8x128xf32>
    %cst_76 = arith.constant dense<0.000000e+00> : vector<8x128xf32>
    %255 = tpu.matmul %253, %186, %cst_76 {dimension_numbers = #tpu.dot_dimension_numbers<[1], [0], [0], [1], [0, 0, 1, 1], [], []>} : vector<8x32xf32>, vector<32x128xf32>, vector<8x128xf32> -> vector<8x128xf32>
    %256 = arith.addf %254, %255 : vector<8x128xf32>
    %257 = arith.negf %256 : vector<8x128xf32>
    %258 = math.exp %257 : vector<8x128xf32>
    %cst_77 = arith.constant 1.000000e+00 : f32
    %259 = vector.broadcast %cst_77 : f32 to vector<8x128xf32>
    %260 = arith.addf %259, %258 : vector<8x128xf32>
    %261 = arith.divf %259, %260 : vector<8x128xf32>
    %262 = math.tanh %256 : vector<8x128xf32>
    %263 = vector.extract_strided_slice %261 {offsets = [0, 0], sizes = [8, 32], strides = [1, 1]} : vector<8x128xf32> to vector<8x32xf32>
    %264 = vector.extract_strided_slice %261 {offsets = [0, 32], sizes = [8, 32], strides = [1, 1]} : vector<8x128xf32> to vector<8x32xf32>
    %265 = vector.extract_strided_slice %262 {offsets = [0, 64], sizes = [8, 32], strides = [1, 1]} : vector<8x128xf32> to vector<8x32xf32>
    %266 = vector.extract_strided_slice %261 {offsets = [0, 96], sizes = [8, 32], strides = [1, 1]} : vector<8x128xf32> to vector<8x32xf32>
    %267 = arith.mulf %264, %251 : vector<8x32xf32>
    %268 = arith.mulf %263, %265 : vector<8x32xf32>
    %269 = arith.addf %267, %268 : vector<8x32xf32>
    %270 = math.tanh %269 : vector<8x32xf32>
    %271 = arith.mulf %266, %270 : vector<8x32xf32>
    %272 = vector.extract_strided_slice %185 {offsets = [40, 0], sizes = [8, 128], strides = [1, 1]} : vector<64x128xf32> to vector<8x128xf32>
    %cst_78 = arith.constant dense<0.000000e+00> : vector<8x128xf32>
    %273 = tpu.matmul %271, %186, %cst_78 {dimension_numbers = #tpu.dot_dimension_numbers<[1], [0], [0], [1], [0, 0, 1, 1], [], []>} : vector<8x32xf32>, vector<32x128xf32>, vector<8x128xf32> -> vector<8x128xf32>
    %274 = arith.addf %272, %273 : vector<8x128xf32>
    %275 = arith.negf %274 : vector<8x128xf32>
    %276 = math.exp %275 : vector<8x128xf32>
    %cst_79 = arith.constant 1.000000e+00 : f32
    %277 = vector.broadcast %cst_79 : f32 to vector<8x128xf32>
    %278 = arith.addf %277, %276 : vector<8x128xf32>
    %279 = arith.divf %277, %278 : vector<8x128xf32>
    %280 = math.tanh %274 : vector<8x128xf32>
    %281 = vector.extract_strided_slice %279 {offsets = [0, 0], sizes = [8, 32], strides = [1, 1]} : vector<8x128xf32> to vector<8x32xf32>
    %282 = vector.extract_strided_slice %279 {offsets = [0, 32], sizes = [8, 32], strides = [1, 1]} : vector<8x128xf32> to vector<8x32xf32>
    %283 = vector.extract_strided_slice %280 {offsets = [0, 64], sizes = [8, 32], strides = [1, 1]} : vector<8x128xf32> to vector<8x32xf32>
    %284 = vector.extract_strided_slice %279 {offsets = [0, 96], sizes = [8, 32], strides = [1, 1]} : vector<8x128xf32> to vector<8x32xf32>
    %285 = arith.mulf %282, %269 : vector<8x32xf32>
    %286 = arith.mulf %281, %283 : vector<8x32xf32>
    %287 = arith.addf %285, %286 : vector<8x32xf32>
    %288 = math.tanh %287 : vector<8x32xf32>
    %289 = arith.mulf %284, %288 : vector<8x32xf32>
    %290 = vector.extract_strided_slice %185 {offsets = [48, 0], sizes = [8, 128], strides = [1, 1]} : vector<64x128xf32> to vector<8x128xf32>
    %cst_80 = arith.constant dense<0.000000e+00> : vector<8x128xf32>
    %291 = tpu.matmul %289, %186, %cst_80 {dimension_numbers = #tpu.dot_dimension_numbers<[1], [0], [0], [1], [0, 0, 1, 1], [], []>} : vector<8x32xf32>, vector<32x128xf32>, vector<8x128xf32> -> vector<8x128xf32>
    %292 = arith.addf %290, %291 : vector<8x128xf32>
    %293 = arith.negf %292 : vector<8x128xf32>
    %294 = math.exp %293 : vector<8x128xf32>
    %cst_81 = arith.constant 1.000000e+00 : f32
    %295 = vector.broadcast %cst_81 : f32 to vector<8x128xf32>
    %296 = arith.addf %295, %294 : vector<8x128xf32>
    %297 = arith.divf %295, %296 : vector<8x128xf32>
    %298 = math.tanh %292 : vector<8x128xf32>
    %299 = vector.extract_strided_slice %297 {offsets = [0, 0], sizes = [8, 32], strides = [1, 1]} : vector<8x128xf32> to vector<8x32xf32>
    %300 = vector.extract_strided_slice %297 {offsets = [0, 32], sizes = [8, 32], strides = [1, 1]} : vector<8x128xf32> to vector<8x32xf32>
    %301 = vector.extract_strided_slice %298 {offsets = [0, 64], sizes = [8, 32], strides = [1, 1]} : vector<8x128xf32> to vector<8x32xf32>
    %302 = vector.extract_strided_slice %297 {offsets = [0, 96], sizes = [8, 32], strides = [1, 1]} : vector<8x128xf32> to vector<8x32xf32>
    %303 = arith.mulf %300, %287 : vector<8x32xf32>
    %304 = arith.mulf %299, %301 : vector<8x32xf32>
    %305 = arith.addf %303, %304 : vector<8x32xf32>
    %306 = math.tanh %305 : vector<8x32xf32>
    %307 = arith.mulf %302, %306 : vector<8x32xf32>
    %308 = vector.extract_strided_slice %185 {offsets = [56, 0], sizes = [8, 128], strides = [1, 1]} : vector<64x128xf32> to vector<8x128xf32>
    %cst_82 = arith.constant dense<0.000000e+00> : vector<8x128xf32>
    %309 = tpu.matmul %307, %186, %cst_82 {dimension_numbers = #tpu.dot_dimension_numbers<[1], [0], [0], [1], [0, 0, 1, 1], [], []>} : vector<8x32xf32>, vector<32x128xf32>, vector<8x128xf32> -> vector<8x128xf32>
    %310 = arith.addf %308, %309 : vector<8x128xf32>
    %311 = arith.negf %310 : vector<8x128xf32>
    %312 = math.exp %311 : vector<8x128xf32>
    %cst_83 = arith.constant 1.000000e+00 : f32
    %313 = vector.broadcast %cst_83 : f32 to vector<8x128xf32>
    %314 = arith.addf %313, %312 : vector<8x128xf32>
    %315 = arith.divf %313, %314 : vector<8x128xf32>
    %316 = math.tanh %310 : vector<8x128xf32>
    %317 = vector.extract_strided_slice %315 {offsets = [0, 0], sizes = [8, 32], strides = [1, 1]} : vector<8x128xf32> to vector<8x32xf32>
    %318 = vector.extract_strided_slice %315 {offsets = [0, 32], sizes = [8, 32], strides = [1, 1]} : vector<8x128xf32> to vector<8x32xf32>
    %319 = vector.extract_strided_slice %316 {offsets = [0, 64], sizes = [8, 32], strides = [1, 1]} : vector<8x128xf32> to vector<8x32xf32>
    %320 = vector.extract_strided_slice %315 {offsets = [0, 96], sizes = [8, 32], strides = [1, 1]} : vector<8x128xf32> to vector<8x32xf32>
    %321 = arith.mulf %318, %305 : vector<8x32xf32>
    %322 = arith.mulf %317, %319 : vector<8x32xf32>
    %323 = arith.addf %321, %322 : vector<8x32xf32>
    %324 = math.tanh %323 : vector<8x32xf32>
    %325 = arith.mulf %320, %324 : vector<8x32xf32>
    %326 = tpu.concatenate %199, %217, %235, %253, %271, %289, %307, %325 in 0 : vector<8x32xf32>, vector<8x32xf32>, vector<8x32xf32>, vector<8x32xf32>, vector<8x32xf32>, vector<8x32xf32>, vector<8x32xf32>, vector<8x32xf32> -> vector<64x32xf32>
    %c0_84 = arith.constant 0 : index
    %c0_85 = arith.constant 0 : index
    %327 = vector.load %arg7[%c0_84, %c0_85] : memref<32x16xf32, #tpu.memory_space<vmem>>, vector<32x16xf32>
    %cst_86 = arith.constant dense<0.000000e+00> : vector<64x16xf32>
    %328 = tpu.matmul %326, %327, %cst_86 {dimension_numbers = #tpu.dot_dimension_numbers<[1], [0], [0], [1], [0, 0, 1, 1], [], []>} : vector<64x32xf32>, vector<32x16xf32>, vector<64x16xf32> -> vector<64x16xf32>
    %c0_87 = arith.constant 0 : index
    %c0_88 = arith.constant 0 : index
    %329 = vector.load %arg9[%c0_87, %c0_88] : memref<1x16xf32, #tpu.memory_space<vmem>>, vector<1x16xf32>
    %330 = vector.broadcast %329 : vector<1x16xf32> to vector<64x16xf32>
    %331 = arith.addf %328, %330 : vector<64x16xf32>
    %c0_89 = arith.constant 0 : index
    %c0_90 = arith.constant 0 : index
    %332 = vector.load %arg8[%c0_89, %c0_90] : memref<4x16xf32, #tpu.memory_space<vmem>>, vector<4x16xf32>
    %333 = vector.extract_strided_slice %332 {offsets = [0, 0], sizes = [1, 16], strides = [1, 1]} : vector<4x16xf32> to vector<1x16xf32>
    %334 = vector.shape_cast %333 : vector<1x16xf32> to vector<1x16xf32>
    %335 = vector.broadcast %334 : vector<1x16xf32> to vector<8x16xf32>
    %336 = vector.extract_strided_slice %332 {offsets = [1, 0], sizes = [1, 16], strides = [1, 1]} : vector<4x16xf32> to vector<1x16xf32>
    %337 = vector.shape_cast %336 : vector<1x16xf32> to vector<1x16xf32>
    %338 = vector.broadcast %337 : vector<1x16xf32> to vector<8x16xf32>
    %339 = vector.extract_strided_slice %332 {offsets = [2, 0], sizes = [1, 16], strides = [1, 1]} : vector<4x16xf32> to vector<1x16xf32>
    %340 = vector.shape_cast %339 : vector<1x16xf32> to vector<1x16xf32>
    %341 = vector.broadcast %340 : vector<1x16xf32> to vector<8x16xf32>
    %342 = vector.extract_strided_slice %332 {offsets = [3, 0], sizes = [1, 16], strides = [1, 1]} : vector<4x16xf32> to vector<1x16xf32>
    %343 = vector.shape_cast %342 : vector<1x16xf32> to vector<1x16xf32>
    %344 = vector.broadcast %343 : vector<1x16xf32> to vector<8x16xf32>
    %345 = vector.extract_strided_slice %331 {offsets = [0, 0], sizes = [8, 16], strides = [1, 1]} : vector<64x16xf32> to vector<8x16xf32>
    %346 = arith.negf %345 : vector<8x16xf32>
    %347 = math.exp %346 : vector<8x16xf32>
    %cst_91 = arith.constant 1.000000e+00 : f32
    %348 = vector.broadcast %cst_91 : f32 to vector<8x16xf32>
    %349 = arith.addf %348, %347 : vector<8x16xf32>
    %350 = arith.divf %348, %349 : vector<8x16xf32>
    %351 = math.tanh %345 : vector<8x16xf32>
    %352 = vector.extract_strided_slice %350 {offsets = [0, 0], sizes = [8, 4], strides = [1, 1]} : vector<8x16xf32> to vector<8x4xf32>
    %353 = vector.extract_strided_slice %351 {offsets = [0, 8], sizes = [8, 4], strides = [1, 1]} : vector<8x16xf32> to vector<8x4xf32>
    %354 = vector.extract_strided_slice %350 {offsets = [0, 12], sizes = [8, 4], strides = [1, 1]} : vector<8x16xf32> to vector<8x4xf32>
    %355 = arith.mulf %352, %353 : vector<8x4xf32>
    %356 = math.tanh %355 : vector<8x4xf32>
    %357 = arith.mulf %354, %356 : vector<8x4xf32>
    %358 = vector.extract_strided_slice %331 {offsets = [8, 0], sizes = [8, 16], strides = [1, 1]} : vector<64x16xf32> to vector<8x16xf32>
    %359 = vector.extract_strided_slice %357 {offsets = [0, 0], sizes = [8, 1], strides = [1, 1]} : vector<8x4xf32> to vector<8x1xf32>
    %360 = vector.broadcast %359 : vector<8x1xf32> to vector<8x16xf32>
    %361 = arith.mulf %360, %335 : vector<8x16xf32>
    %362 = vector.extract_strided_slice %357 {offsets = [0, 1], sizes = [8, 1], strides = [1, 1]} : vector<8x4xf32> to vector<8x1xf32>
    %363 = vector.broadcast %362 : vector<8x1xf32> to vector<8x16xf32>
    %364 = arith.mulf %363, %338 : vector<8x16xf32>
    %365 = arith.addf %361, %364 : vector<8x16xf32>
    %366 = vector.extract_strided_slice %357 {offsets = [0, 2], sizes = [8, 1], strides = [1, 1]} : vector<8x4xf32> to vector<8x1xf32>
    %367 = vector.broadcast %366 : vector<8x1xf32> to vector<8x16xf32>
    %368 = arith.mulf %367, %341 : vector<8x16xf32>
    %369 = arith.addf %365, %368 : vector<8x16xf32>
    %370 = vector.extract_strided_slice %357 {offsets = [0, 3], sizes = [8, 1], strides = [1, 1]} : vector<8x4xf32> to vector<8x1xf32>
    %371 = vector.broadcast %370 : vector<8x1xf32> to vector<8x16xf32>
    %372 = arith.mulf %371, %344 : vector<8x16xf32>
    %373 = arith.addf %369, %372 : vector<8x16xf32>
    %374 = arith.addf %358, %373 : vector<8x16xf32>
    %375 = arith.negf %374 : vector<8x16xf32>
    %376 = math.exp %375 : vector<8x16xf32>
    %cst_92 = arith.constant 1.000000e+00 : f32
    %377 = vector.broadcast %cst_92 : f32 to vector<8x16xf32>
    %378 = arith.addf %377, %376 : vector<8x16xf32>
    %379 = arith.divf %377, %378 : vector<8x16xf32>
    %380 = math.tanh %374 : vector<8x16xf32>
    %381 = vector.extract_strided_slice %379 {offsets = [0, 0], sizes = [8, 4], strides = [1, 1]} : vector<8x16xf32> to vector<8x4xf32>
    %382 = vector.extract_strided_slice %379 {offsets = [0, 4], sizes = [8, 4], strides = [1, 1]} : vector<8x16xf32> to vector<8x4xf32>
    %383 = vector.extract_strided_slice %380 {offsets = [0, 8], sizes = [8, 4], strides = [1, 1]} : vector<8x16xf32> to vector<8x4xf32>
    %384 = vector.extract_strided_slice %379 {offsets = [0, 12], sizes = [8, 4], strides = [1, 1]} : vector<8x16xf32> to vector<8x4xf32>
    %385 = arith.mulf %382, %355 : vector<8x4xf32>
    %386 = arith.mulf %381, %383 : vector<8x4xf32>
    %387 = arith.addf %385, %386 : vector<8x4xf32>
    %388 = math.tanh %387 : vector<8x4xf32>
    %389 = arith.mulf %384, %388 : vector<8x4xf32>
    %390 = vector.extract_strided_slice %331 {offsets = [16, 0], sizes = [8, 16], strides = [1, 1]} : vector<64x16xf32> to vector<8x16xf32>
    %391 = vector.extract_strided_slice %389 {offsets = [0, 0], sizes = [8, 1], strides = [1, 1]} : vector<8x4xf32> to vector<8x1xf32>
    %392 = vector.broadcast %391 : vector<8x1xf32> to vector<8x16xf32>
    %393 = arith.mulf %392, %335 : vector<8x16xf32>
    %394 = vector.extract_strided_slice %389 {offsets = [0, 1], sizes = [8, 1], strides = [1, 1]} : vector<8x4xf32> to vector<8x1xf32>
    %395 = vector.broadcast %394 : vector<8x1xf32> to vector<8x16xf32>
    %396 = arith.mulf %395, %338 : vector<8x16xf32>
    %397 = arith.addf %393, %396 : vector<8x16xf32>
    %398 = vector.extract_strided_slice %389 {offsets = [0, 2], sizes = [8, 1], strides = [1, 1]} : vector<8x4xf32> to vector<8x1xf32>
    %399 = vector.broadcast %398 : vector<8x1xf32> to vector<8x16xf32>
    %400 = arith.mulf %399, %341 : vector<8x16xf32>
    %401 = arith.addf %397, %400 : vector<8x16xf32>
    %402 = vector.extract_strided_slice %389 {offsets = [0, 3], sizes = [8, 1], strides = [1, 1]} : vector<8x4xf32> to vector<8x1xf32>
    %403 = vector.broadcast %402 : vector<8x1xf32> to vector<8x16xf32>
    %404 = arith.mulf %403, %344 : vector<8x16xf32>
    %405 = arith.addf %401, %404 : vector<8x16xf32>
    %406 = arith.addf %390, %405 : vector<8x16xf32>
    %407 = arith.negf %406 : vector<8x16xf32>
    %408 = math.exp %407 : vector<8x16xf32>
    %cst_93 = arith.constant 1.000000e+00 : f32
    %409 = vector.broadcast %cst_93 : f32 to vector<8x16xf32>
    %410 = arith.addf %409, %408 : vector<8x16xf32>
    %411 = arith.divf %409, %410 : vector<8x16xf32>
    %412 = math.tanh %406 : vector<8x16xf32>
    %413 = vector.extract_strided_slice %411 {offsets = [0, 0], sizes = [8, 4], strides = [1, 1]} : vector<8x16xf32> to vector<8x4xf32>
    %414 = vector.extract_strided_slice %411 {offsets = [0, 4], sizes = [8, 4], strides = [1, 1]} : vector<8x16xf32> to vector<8x4xf32>
    %415 = vector.extract_strided_slice %412 {offsets = [0, 8], sizes = [8, 4], strides = [1, 1]} : vector<8x16xf32> to vector<8x4xf32>
    %416 = vector.extract_strided_slice %411 {offsets = [0, 12], sizes = [8, 4], strides = [1, 1]} : vector<8x16xf32> to vector<8x4xf32>
    %417 = arith.mulf %414, %387 : vector<8x4xf32>
    %418 = arith.mulf %413, %415 : vector<8x4xf32>
    %419 = arith.addf %417, %418 : vector<8x4xf32>
    %420 = math.tanh %419 : vector<8x4xf32>
    %421 = arith.mulf %416, %420 : vector<8x4xf32>
    %422 = vector.extract_strided_slice %331 {offsets = [24, 0], sizes = [8, 16], strides = [1, 1]} : vector<64x16xf32> to vector<8x16xf32>
    %423 = vector.extract_strided_slice %421 {offsets = [0, 0], sizes = [8, 1], strides = [1, 1]} : vector<8x4xf32> to vector<8x1xf32>
    %424 = vector.broadcast %423 : vector<8x1xf32> to vector<8x16xf32>
    %425 = arith.mulf %424, %335 : vector<8x16xf32>
    %426 = vector.extract_strided_slice %421 {offsets = [0, 1], sizes = [8, 1], strides = [1, 1]} : vector<8x4xf32> to vector<8x1xf32>
    %427 = vector.broadcast %426 : vector<8x1xf32> to vector<8x16xf32>
    %428 = arith.mulf %427, %338 : vector<8x16xf32>
    %429 = arith.addf %425, %428 : vector<8x16xf32>
    %430 = vector.extract_strided_slice %421 {offsets = [0, 2], sizes = [8, 1], strides = [1, 1]} : vector<8x4xf32> to vector<8x1xf32>
    %431 = vector.broadcast %430 : vector<8x1xf32> to vector<8x16xf32>
    %432 = arith.mulf %431, %341 : vector<8x16xf32>
    %433 = arith.addf %429, %432 : vector<8x16xf32>
    %434 = vector.extract_strided_slice %421 {offsets = [0, 3], sizes = [8, 1], strides = [1, 1]} : vector<8x4xf32> to vector<8x1xf32>
    %435 = vector.broadcast %434 : vector<8x1xf32> to vector<8x16xf32>
    %436 = arith.mulf %435, %344 : vector<8x16xf32>
    %437 = arith.addf %433, %436 : vector<8x16xf32>
    %438 = arith.addf %422, %437 : vector<8x16xf32>
    %439 = arith.negf %438 : vector<8x16xf32>
    %440 = math.exp %439 : vector<8x16xf32>
    %cst_94 = arith.constant 1.000000e+00 : f32
    %441 = vector.broadcast %cst_94 : f32 to vector<8x16xf32>
    %442 = arith.addf %441, %440 : vector<8x16xf32>
    %443 = arith.divf %441, %442 : vector<8x16xf32>
    %444 = math.tanh %438 : vector<8x16xf32>
    %445 = vector.extract_strided_slice %443 {offsets = [0, 0], sizes = [8, 4], strides = [1, 1]} : vector<8x16xf32> to vector<8x4xf32>
    %446 = vector.extract_strided_slice %443 {offsets = [0, 4], sizes = [8, 4], strides = [1, 1]} : vector<8x16xf32> to vector<8x4xf32>
    %447 = vector.extract_strided_slice %444 {offsets = [0, 8], sizes = [8, 4], strides = [1, 1]} : vector<8x16xf32> to vector<8x4xf32>
    %448 = vector.extract_strided_slice %443 {offsets = [0, 12], sizes = [8, 4], strides = [1, 1]} : vector<8x16xf32> to vector<8x4xf32>
    %449 = arith.mulf %446, %419 : vector<8x4xf32>
    %450 = arith.mulf %445, %447 : vector<8x4xf32>
    %451 = arith.addf %449, %450 : vector<8x4xf32>
    %452 = math.tanh %451 : vector<8x4xf32>
    %453 = arith.mulf %448, %452 : vector<8x4xf32>
    %454 = vector.extract_strided_slice %331 {offsets = [32, 0], sizes = [8, 16], strides = [1, 1]} : vector<64x16xf32> to vector<8x16xf32>
    %455 = vector.extract_strided_slice %453 {offsets = [0, 0], sizes = [8, 1], strides = [1, 1]} : vector<8x4xf32> to vector<8x1xf32>
    %456 = vector.broadcast %455 : vector<8x1xf32> to vector<8x16xf32>
    %457 = arith.mulf %456, %335 : vector<8x16xf32>
    %458 = vector.extract_strided_slice %453 {offsets = [0, 1], sizes = [8, 1], strides = [1, 1]} : vector<8x4xf32> to vector<8x1xf32>
    %459 = vector.broadcast %458 : vector<8x1xf32> to vector<8x16xf32>
    %460 = arith.mulf %459, %338 : vector<8x16xf32>
    %461 = arith.addf %457, %460 : vector<8x16xf32>
    %462 = vector.extract_strided_slice %453 {offsets = [0, 2], sizes = [8, 1], strides = [1, 1]} : vector<8x4xf32> to vector<8x1xf32>
    %463 = vector.broadcast %462 : vector<8x1xf32> to vector<8x16xf32>
    %464 = arith.mulf %463, %341 : vector<8x16xf32>
    %465 = arith.addf %461, %464 : vector<8x16xf32>
    %466 = vector.extract_strided_slice %453 {offsets = [0, 3], sizes = [8, 1], strides = [1, 1]} : vector<8x4xf32> to vector<8x1xf32>
    %467 = vector.broadcast %466 : vector<8x1xf32> to vector<8x16xf32>
    %468 = arith.mulf %467, %344 : vector<8x16xf32>
    %469 = arith.addf %465, %468 : vector<8x16xf32>
    %470 = arith.addf %454, %469 : vector<8x16xf32>
    %471 = arith.negf %470 : vector<8x16xf32>
    %472 = math.exp %471 : vector<8x16xf32>
    %cst_95 = arith.constant 1.000000e+00 : f32
    %473 = vector.broadcast %cst_95 : f32 to vector<8x16xf32>
    %474 = arith.addf %473, %472 : vector<8x16xf32>
    %475 = arith.divf %473, %474 : vector<8x16xf32>
    %476 = math.tanh %470 : vector<8x16xf32>
    %477 = vector.extract_strided_slice %475 {offsets = [0, 0], sizes = [8, 4], strides = [1, 1]} : vector<8x16xf32> to vector<8x4xf32>
    %478 = vector.extract_strided_slice %475 {offsets = [0, 4], sizes = [8, 4], strides = [1, 1]} : vector<8x16xf32> to vector<8x4xf32>
    %479 = vector.extract_strided_slice %476 {offsets = [0, 8], sizes = [8, 4], strides = [1, 1]} : vector<8x16xf32> to vector<8x4xf32>
    %480 = vector.extract_strided_slice %475 {offsets = [0, 12], sizes = [8, 4], strides = [1, 1]} : vector<8x16xf32> to vector<8x4xf32>
    %481 = arith.mulf %478, %451 : vector<8x4xf32>
    %482 = arith.mulf %477, %479 : vector<8x4xf32>
    %483 = arith.addf %481, %482 : vector<8x4xf32>
    %484 = math.tanh %483 : vector<8x4xf32>
    %485 = arith.mulf %480, %484 : vector<8x4xf32>
    %486 = vector.extract_strided_slice %331 {offsets = [40, 0], sizes = [8, 16], strides = [1, 1]} : vector<64x16xf32> to vector<8x16xf32>
    %487 = vector.extract_strided_slice %485 {offsets = [0, 0], sizes = [8, 1], strides = [1, 1]} : vector<8x4xf32> to vector<8x1xf32>
    %488 = vector.broadcast %487 : vector<8x1xf32> to vector<8x16xf32>
    %489 = arith.mulf %488, %335 : vector<8x16xf32>
    %490 = vector.extract_strided_slice %485 {offsets = [0, 1], sizes = [8, 1], strides = [1, 1]} : vector<8x4xf32> to vector<8x1xf32>
    %491 = vector.broadcast %490 : vector<8x1xf32> to vector<8x16xf32>
    %492 = arith.mulf %491, %338 : vector<8x16xf32>
    %493 = arith.addf %489, %492 : vector<8x16xf32>
    %494 = vector.extract_strided_slice %485 {offsets = [0, 2], sizes = [8, 1], strides = [1, 1]} : vector<8x4xf32> to vector<8x1xf32>
    %495 = vector.broadcast %494 : vector<8x1xf32> to vector<8x16xf32>
    %496 = arith.mulf %495, %341 : vector<8x16xf32>
    %497 = arith.addf %493, %496 : vector<8x16xf32>
    %498 = vector.extract_strided_slice %485 {offsets = [0, 3], sizes = [8, 1], strides = [1, 1]} : vector<8x4xf32> to vector<8x1xf32>
    %499 = vector.broadcast %498 : vector<8x1xf32> to vector<8x16xf32>
    %500 = arith.mulf %499, %344 : vector<8x16xf32>
    %501 = arith.addf %497, %500 : vector<8x16xf32>
    %502 = arith.addf %486, %501 : vector<8x16xf32>
    %503 = arith.negf %502 : vector<8x16xf32>
    %504 = math.exp %503 : vector<8x16xf32>
    %cst_96 = arith.constant 1.000000e+00 : f32
    %505 = vector.broadcast %cst_96 : f32 to vector<8x16xf32>
    %506 = arith.addf %505, %504 : vector<8x16xf32>
    %507 = arith.divf %505, %506 : vector<8x16xf32>
    %508 = math.tanh %502 : vector<8x16xf32>
    %509 = vector.extract_strided_slice %507 {offsets = [0, 0], sizes = [8, 4], strides = [1, 1]} : vector<8x16xf32> to vector<8x4xf32>
    %510 = vector.extract_strided_slice %507 {offsets = [0, 4], sizes = [8, 4], strides = [1, 1]} : vector<8x16xf32> to vector<8x4xf32>
    %511 = vector.extract_strided_slice %508 {offsets = [0, 8], sizes = [8, 4], strides = [1, 1]} : vector<8x16xf32> to vector<8x4xf32>
    %512 = vector.extract_strided_slice %507 {offsets = [0, 12], sizes = [8, 4], strides = [1, 1]} : vector<8x16xf32> to vector<8x4xf32>
    %513 = arith.mulf %510, %483 : vector<8x4xf32>
    %514 = arith.mulf %509, %511 : vector<8x4xf32>
    %515 = arith.addf %513, %514 : vector<8x4xf32>
    %516 = math.tanh %515 : vector<8x4xf32>
    %517 = arith.mulf %512, %516 : vector<8x4xf32>
    %518 = vector.extract_strided_slice %331 {offsets = [48, 0], sizes = [8, 16], strides = [1, 1]} : vector<64x16xf32> to vector<8x16xf32>
    %519 = vector.extract_strided_slice %517 {offsets = [0, 0], sizes = [8, 1], strides = [1, 1]} : vector<8x4xf32> to vector<8x1xf32>
    %520 = vector.broadcast %519 : vector<8x1xf32> to vector<8x16xf32>
    %521 = arith.mulf %520, %335 : vector<8x16xf32>
    %522 = vector.extract_strided_slice %517 {offsets = [0, 1], sizes = [8, 1], strides = [1, 1]} : vector<8x4xf32> to vector<8x1xf32>
    %523 = vector.broadcast %522 : vector<8x1xf32> to vector<8x16xf32>
    %524 = arith.mulf %523, %338 : vector<8x16xf32>
    %525 = arith.addf %521, %524 : vector<8x16xf32>
    %526 = vector.extract_strided_slice %517 {offsets = [0, 2], sizes = [8, 1], strides = [1, 1]} : vector<8x4xf32> to vector<8x1xf32>
    %527 = vector.broadcast %526 : vector<8x1xf32> to vector<8x16xf32>
    %528 = arith.mulf %527, %341 : vector<8x16xf32>
    %529 = arith.addf %525, %528 : vector<8x16xf32>
    %530 = vector.extract_strided_slice %517 {offsets = [0, 3], sizes = [8, 1], strides = [1, 1]} : vector<8x4xf32> to vector<8x1xf32>
    %531 = vector.broadcast %530 : vector<8x1xf32> to vector<8x16xf32>
    %532 = arith.mulf %531, %344 : vector<8x16xf32>
    %533 = arith.addf %529, %532 : vector<8x16xf32>
    %534 = arith.addf %518, %533 : vector<8x16xf32>
    %535 = arith.negf %534 : vector<8x16xf32>
    %536 = math.exp %535 : vector<8x16xf32>
    %cst_97 = arith.constant 1.000000e+00 : f32
    %537 = vector.broadcast %cst_97 : f32 to vector<8x16xf32>
    %538 = arith.addf %537, %536 : vector<8x16xf32>
    %539 = arith.divf %537, %538 : vector<8x16xf32>
    %540 = math.tanh %534 : vector<8x16xf32>
    %541 = vector.extract_strided_slice %539 {offsets = [0, 0], sizes = [8, 4], strides = [1, 1]} : vector<8x16xf32> to vector<8x4xf32>
    %542 = vector.extract_strided_slice %539 {offsets = [0, 4], sizes = [8, 4], strides = [1, 1]} : vector<8x16xf32> to vector<8x4xf32>
    %543 = vector.extract_strided_slice %540 {offsets = [0, 8], sizes = [8, 4], strides = [1, 1]} : vector<8x16xf32> to vector<8x4xf32>
    %544 = vector.extract_strided_slice %539 {offsets = [0, 12], sizes = [8, 4], strides = [1, 1]} : vector<8x16xf32> to vector<8x4xf32>
    %545 = arith.mulf %542, %515 : vector<8x4xf32>
    %546 = arith.mulf %541, %543 : vector<8x4xf32>
    %547 = arith.addf %545, %546 : vector<8x4xf32>
    %548 = math.tanh %547 : vector<8x4xf32>
    %549 = arith.mulf %544, %548 : vector<8x4xf32>
    %550 = vector.extract_strided_slice %331 {offsets = [56, 0], sizes = [8, 16], strides = [1, 1]} : vector<64x16xf32> to vector<8x16xf32>
    %551 = vector.extract_strided_slice %549 {offsets = [0, 0], sizes = [8, 1], strides = [1, 1]} : vector<8x4xf32> to vector<8x1xf32>
    %552 = vector.broadcast %551 : vector<8x1xf32> to vector<8x16xf32>
    %553 = arith.mulf %552, %335 : vector<8x16xf32>
    %554 = vector.extract_strided_slice %549 {offsets = [0, 1], sizes = [8, 1], strides = [1, 1]} : vector<8x4xf32> to vector<8x1xf32>
    %555 = vector.broadcast %554 : vector<8x1xf32> to vector<8x16xf32>
    %556 = arith.mulf %555, %338 : vector<8x16xf32>
    %557 = arith.addf %553, %556 : vector<8x16xf32>
    %558 = vector.extract_strided_slice %549 {offsets = [0, 2], sizes = [8, 1], strides = [1, 1]} : vector<8x4xf32> to vector<8x1xf32>
    %559 = vector.broadcast %558 : vector<8x1xf32> to vector<8x16xf32>
    %560 = arith.mulf %559, %341 : vector<8x16xf32>
    %561 = arith.addf %557, %560 : vector<8x16xf32>
    %562 = vector.extract_strided_slice %549 {offsets = [0, 3], sizes = [8, 1], strides = [1, 1]} : vector<8x4xf32> to vector<8x1xf32>
    %563 = vector.broadcast %562 : vector<8x1xf32> to vector<8x16xf32>
    %564 = arith.mulf %563, %344 : vector<8x16xf32>
    %565 = arith.addf %561, %564 : vector<8x16xf32>
    %566 = arith.addf %550, %565 : vector<8x16xf32>
    %567 = arith.negf %566 : vector<8x16xf32>
    %568 = math.exp %567 : vector<8x16xf32>
    %cst_98 = arith.constant 1.000000e+00 : f32
    %569 = vector.broadcast %cst_98 : f32 to vector<8x16xf32>
    %570 = arith.addf %569, %568 : vector<8x16xf32>
    %571 = arith.divf %569, %570 : vector<8x16xf32>
    %572 = math.tanh %566 : vector<8x16xf32>
    %573 = vector.extract_strided_slice %571 {offsets = [0, 0], sizes = [8, 4], strides = [1, 1]} : vector<8x16xf32> to vector<8x4xf32>
    %574 = vector.extract_strided_slice %571 {offsets = [0, 4], sizes = [8, 4], strides = [1, 1]} : vector<8x16xf32> to vector<8x4xf32>
    %575 = vector.extract_strided_slice %572 {offsets = [0, 8], sizes = [8, 4], strides = [1, 1]} : vector<8x16xf32> to vector<8x4xf32>
    %576 = vector.extract_strided_slice %571 {offsets = [0, 12], sizes = [8, 4], strides = [1, 1]} : vector<8x16xf32> to vector<8x4xf32>
    %577 = arith.mulf %574, %547 : vector<8x4xf32>
    %578 = arith.mulf %573, %575 : vector<8x4xf32>
    %579 = arith.addf %577, %578 : vector<8x4xf32>
    %580 = math.tanh %579 : vector<8x4xf32>
    %581 = arith.mulf %576, %580 : vector<8x4xf32>
    %582 = tpu.concatenate %357, %389, %421, %453, %485, %517, %549, %581 in 0 : vector<8x4xf32>, vector<8x4xf32>, vector<8x4xf32>, vector<8x4xf32>, vector<8x4xf32>, vector<8x4xf32>, vector<8x4xf32>, vector<8x4xf32> -> vector<64x4xf32>
    %c0_99 = arith.constant 0 : index
    %c0_100 = arith.constant 0 : index
    %583 = vector.load %arg10[%c0_99, %c0_100] : memref<4x16xf32, #tpu.memory_space<vmem>>, vector<4x16xf32>
    %cst_101 = arith.constant dense<0.000000e+00> : vector<64x16xf32>
    %584 = tpu.matmul %582, %583, %cst_101 {dimension_numbers = #tpu.dot_dimension_numbers<[1], [0], [0], [1], [0, 0, 1, 1], [], []>} : vector<64x4xf32>, vector<4x16xf32>, vector<64x16xf32> -> vector<64x16xf32>
    %c0_102 = arith.constant 0 : index
    %c0_103 = arith.constant 0 : index
    %585 = vector.load %arg12[%c0_102, %c0_103] : memref<1x16xf32, #tpu.memory_space<vmem>>, vector<1x16xf32>
    %586 = vector.broadcast %585 : vector<1x16xf32> to vector<64x16xf32>
    %587 = arith.addf %584, %586 : vector<64x16xf32>
    %c0_104 = arith.constant 0 : index
    %c0_105 = arith.constant 0 : index
    %588 = vector.load %arg11[%c0_104, %c0_105] : memref<4x16xf32, #tpu.memory_space<vmem>>, vector<4x16xf32>
    %589 = vector.extract_strided_slice %588 {offsets = [0, 0], sizes = [1, 16], strides = [1, 1]} : vector<4x16xf32> to vector<1x16xf32>
    %590 = vector.shape_cast %589 : vector<1x16xf32> to vector<1x16xf32>
    %591 = vector.broadcast %590 : vector<1x16xf32> to vector<8x16xf32>
    %592 = vector.extract_strided_slice %588 {offsets = [1, 0], sizes = [1, 16], strides = [1, 1]} : vector<4x16xf32> to vector<1x16xf32>
    %593 = vector.shape_cast %592 : vector<1x16xf32> to vector<1x16xf32>
    %594 = vector.broadcast %593 : vector<1x16xf32> to vector<8x16xf32>
    %595 = vector.extract_strided_slice %588 {offsets = [2, 0], sizes = [1, 16], strides = [1, 1]} : vector<4x16xf32> to vector<1x16xf32>
    %596 = vector.shape_cast %595 : vector<1x16xf32> to vector<1x16xf32>
    %597 = vector.broadcast %596 : vector<1x16xf32> to vector<8x16xf32>
    %598 = vector.extract_strided_slice %588 {offsets = [3, 0], sizes = [1, 16], strides = [1, 1]} : vector<4x16xf32> to vector<1x16xf32>
    %599 = vector.shape_cast %598 : vector<1x16xf32> to vector<1x16xf32>
    %600 = vector.broadcast %599 : vector<1x16xf32> to vector<8x16xf32>
    %601 = vector.extract_strided_slice %587 {offsets = [0, 0], sizes = [8, 16], strides = [1, 1]} : vector<64x16xf32> to vector<8x16xf32>
    %602 = arith.negf %601 : vector<8x16xf32>
    %603 = math.exp %602 : vector<8x16xf32>
    %cst_106 = arith.constant 1.000000e+00 : f32
    %604 = vector.broadcast %cst_106 : f32 to vector<8x16xf32>
    %605 = arith.addf %604, %603 : vector<8x16xf32>
    %606 = arith.divf %604, %605 : vector<8x16xf32>
    %607 = math.tanh %601 : vector<8x16xf32>
    %608 = vector.extract_strided_slice %606 {offsets = [0, 0], sizes = [8, 4], strides = [1, 1]} : vector<8x16xf32> to vector<8x4xf32>
    %609 = vector.extract_strided_slice %607 {offsets = [0, 8], sizes = [8, 4], strides = [1, 1]} : vector<8x16xf32> to vector<8x4xf32>
    %610 = vector.extract_strided_slice %606 {offsets = [0, 12], sizes = [8, 4], strides = [1, 1]} : vector<8x16xf32> to vector<8x4xf32>
    %611 = arith.mulf %608, %609 : vector<8x4xf32>
    %612 = math.tanh %611 : vector<8x4xf32>
    %613 = arith.mulf %610, %612 : vector<8x4xf32>
    %614 = vector.extract_strided_slice %587 {offsets = [8, 0], sizes = [8, 16], strides = [1, 1]} : vector<64x16xf32> to vector<8x16xf32>
    %615 = vector.extract_strided_slice %613 {offsets = [0, 0], sizes = [8, 1], strides = [1, 1]} : vector<8x4xf32> to vector<8x1xf32>
    %616 = vector.broadcast %615 : vector<8x1xf32> to vector<8x16xf32>
    %617 = arith.mulf %616, %591 : vector<8x16xf32>
    %618 = vector.extract_strided_slice %613 {offsets = [0, 1], sizes = [8, 1], strides = [1, 1]} : vector<8x4xf32> to vector<8x1xf32>
    %619 = vector.broadcast %618 : vector<8x1xf32> to vector<8x16xf32>
    %620 = arith.mulf %619, %594 : vector<8x16xf32>
    %621 = arith.addf %617, %620 : vector<8x16xf32>
    %622 = vector.extract_strided_slice %613 {offsets = [0, 2], sizes = [8, 1], strides = [1, 1]} : vector<8x4xf32> to vector<8x1xf32>
    %623 = vector.broadcast %622 : vector<8x1xf32> to vector<8x16xf32>
    %624 = arith.mulf %623, %597 : vector<8x16xf32>
    %625 = arith.addf %621, %624 : vector<8x16xf32>
    %626 = vector.extract_strided_slice %613 {offsets = [0, 3], sizes = [8, 1], strides = [1, 1]} : vector<8x4xf32> to vector<8x1xf32>
    %627 = vector.broadcast %626 : vector<8x1xf32> to vector<8x16xf32>
    %628 = arith.mulf %627, %600 : vector<8x16xf32>
    %629 = arith.addf %625, %628 : vector<8x16xf32>
    %630 = arith.addf %614, %629 : vector<8x16xf32>
    %631 = arith.negf %630 : vector<8x16xf32>
    %632 = math.exp %631 : vector<8x16xf32>
    %cst_107 = arith.constant 1.000000e+00 : f32
    %633 = vector.broadcast %cst_107 : f32 to vector<8x16xf32>
    %634 = arith.addf %633, %632 : vector<8x16xf32>
    %635 = arith.divf %633, %634 : vector<8x16xf32>
    %636 = math.tanh %630 : vector<8x16xf32>
    %637 = vector.extract_strided_slice %635 {offsets = [0, 0], sizes = [8, 4], strides = [1, 1]} : vector<8x16xf32> to vector<8x4xf32>
    %638 = vector.extract_strided_slice %635 {offsets = [0, 4], sizes = [8, 4], strides = [1, 1]} : vector<8x16xf32> to vector<8x4xf32>
    %639 = vector.extract_strided_slice %636 {offsets = [0, 8], sizes = [8, 4], strides = [1, 1]} : vector<8x16xf32> to vector<8x4xf32>
    %640 = vector.extract_strided_slice %635 {offsets = [0, 12], sizes = [8, 4], strides = [1, 1]} : vector<8x16xf32> to vector<8x4xf32>
    %641 = arith.mulf %638, %611 : vector<8x4xf32>
    %642 = arith.mulf %637, %639 : vector<8x4xf32>
    %643 = arith.addf %641, %642 : vector<8x4xf32>
    %644 = math.tanh %643 : vector<8x4xf32>
    %645 = arith.mulf %640, %644 : vector<8x4xf32>
    %646 = vector.extract_strided_slice %587 {offsets = [16, 0], sizes = [8, 16], strides = [1, 1]} : vector<64x16xf32> to vector<8x16xf32>
    %647 = vector.extract_strided_slice %645 {offsets = [0, 0], sizes = [8, 1], strides = [1, 1]} : vector<8x4xf32> to vector<8x1xf32>
    %648 = vector.broadcast %647 : vector<8x1xf32> to vector<8x16xf32>
    %649 = arith.mulf %648, %591 : vector<8x16xf32>
    %650 = vector.extract_strided_slice %645 {offsets = [0, 1], sizes = [8, 1], strides = [1, 1]} : vector<8x4xf32> to vector<8x1xf32>
    %651 = vector.broadcast %650 : vector<8x1xf32> to vector<8x16xf32>
    %652 = arith.mulf %651, %594 : vector<8x16xf32>
    %653 = arith.addf %649, %652 : vector<8x16xf32>
    %654 = vector.extract_strided_slice %645 {offsets = [0, 2], sizes = [8, 1], strides = [1, 1]} : vector<8x4xf32> to vector<8x1xf32>
    %655 = vector.broadcast %654 : vector<8x1xf32> to vector<8x16xf32>
    %656 = arith.mulf %655, %597 : vector<8x16xf32>
    %657 = arith.addf %653, %656 : vector<8x16xf32>
    %658 = vector.extract_strided_slice %645 {offsets = [0, 3], sizes = [8, 1], strides = [1, 1]} : vector<8x4xf32> to vector<8x1xf32>
    %659 = vector.broadcast %658 : vector<8x1xf32> to vector<8x16xf32>
    %660 = arith.mulf %659, %600 : vector<8x16xf32>
    %661 = arith.addf %657, %660 : vector<8x16xf32>
    %662 = arith.addf %646, %661 : vector<8x16xf32>
    %663 = arith.negf %662 : vector<8x16xf32>
    %664 = math.exp %663 : vector<8x16xf32>
    %cst_108 = arith.constant 1.000000e+00 : f32
    %665 = vector.broadcast %cst_108 : f32 to vector<8x16xf32>
    %666 = arith.addf %665, %664 : vector<8x16xf32>
    %667 = arith.divf %665, %666 : vector<8x16xf32>
    %668 = math.tanh %662 : vector<8x16xf32>
    %669 = vector.extract_strided_slice %667 {offsets = [0, 0], sizes = [8, 4], strides = [1, 1]} : vector<8x16xf32> to vector<8x4xf32>
    %670 = vector.extract_strided_slice %667 {offsets = [0, 4], sizes = [8, 4], strides = [1, 1]} : vector<8x16xf32> to vector<8x4xf32>
    %671 = vector.extract_strided_slice %668 {offsets = [0, 8], sizes = [8, 4], strides = [1, 1]} : vector<8x16xf32> to vector<8x4xf32>
    %672 = vector.extract_strided_slice %667 {offsets = [0, 12], sizes = [8, 4], strides = [1, 1]} : vector<8x16xf32> to vector<8x4xf32>
    %673 = arith.mulf %670, %643 : vector<8x4xf32>
    %674 = arith.mulf %669, %671 : vector<8x4xf32>
    %675 = arith.addf %673, %674 : vector<8x4xf32>
    %676 = math.tanh %675 : vector<8x4xf32>
    %677 = arith.mulf %672, %676 : vector<8x4xf32>
    %678 = vector.extract_strided_slice %587 {offsets = [24, 0], sizes = [8, 16], strides = [1, 1]} : vector<64x16xf32> to vector<8x16xf32>
    %679 = vector.extract_strided_slice %677 {offsets = [0, 0], sizes = [8, 1], strides = [1, 1]} : vector<8x4xf32> to vector<8x1xf32>
    %680 = vector.broadcast %679 : vector<8x1xf32> to vector<8x16xf32>
    %681 = arith.mulf %680, %591 : vector<8x16xf32>
    %682 = vector.extract_strided_slice %677 {offsets = [0, 1], sizes = [8, 1], strides = [1, 1]} : vector<8x4xf32> to vector<8x1xf32>
    %683 = vector.broadcast %682 : vector<8x1xf32> to vector<8x16xf32>
    %684 = arith.mulf %683, %594 : vector<8x16xf32>
    %685 = arith.addf %681, %684 : vector<8x16xf32>
    %686 = vector.extract_strided_slice %677 {offsets = [0, 2], sizes = [8, 1], strides = [1, 1]} : vector<8x4xf32> to vector<8x1xf32>
    %687 = vector.broadcast %686 : vector<8x1xf32> to vector<8x16xf32>
    %688 = arith.mulf %687, %597 : vector<8x16xf32>
    %689 = arith.addf %685, %688 : vector<8x16xf32>
    %690 = vector.extract_strided_slice %677 {offsets = [0, 3], sizes = [8, 1], strides = [1, 1]} : vector<8x4xf32> to vector<8x1xf32>
    %691 = vector.broadcast %690 : vector<8x1xf32> to vector<8x16xf32>
    %692 = arith.mulf %691, %600 : vector<8x16xf32>
    %693 = arith.addf %689, %692 : vector<8x16xf32>
    %694 = arith.addf %678, %693 : vector<8x16xf32>
    %695 = arith.negf %694 : vector<8x16xf32>
    %696 = math.exp %695 : vector<8x16xf32>
    %cst_109 = arith.constant 1.000000e+00 : f32
    %697 = vector.broadcast %cst_109 : f32 to vector<8x16xf32>
    %698 = arith.addf %697, %696 : vector<8x16xf32>
    %699 = arith.divf %697, %698 : vector<8x16xf32>
    %700 = math.tanh %694 : vector<8x16xf32>
    %701 = vector.extract_strided_slice %699 {offsets = [0, 0], sizes = [8, 4], strides = [1, 1]} : vector<8x16xf32> to vector<8x4xf32>
    %702 = vector.extract_strided_slice %699 {offsets = [0, 4], sizes = [8, 4], strides = [1, 1]} : vector<8x16xf32> to vector<8x4xf32>
    %703 = vector.extract_strided_slice %700 {offsets = [0, 8], sizes = [8, 4], strides = [1, 1]} : vector<8x16xf32> to vector<8x4xf32>
    %704 = vector.extract_strided_slice %699 {offsets = [0, 12], sizes = [8, 4], strides = [1, 1]} : vector<8x16xf32> to vector<8x4xf32>
    %705 = arith.mulf %702, %675 : vector<8x4xf32>
    %706 = arith.mulf %701, %703 : vector<8x4xf32>
    %707 = arith.addf %705, %706 : vector<8x4xf32>
    %708 = math.tanh %707 : vector<8x4xf32>
    %709 = arith.mulf %704, %708 : vector<8x4xf32>
    %710 = vector.extract_strided_slice %587 {offsets = [32, 0], sizes = [8, 16], strides = [1, 1]} : vector<64x16xf32> to vector<8x16xf32>
    %711 = vector.extract_strided_slice %709 {offsets = [0, 0], sizes = [8, 1], strides = [1, 1]} : vector<8x4xf32> to vector<8x1xf32>
    %712 = vector.broadcast %711 : vector<8x1xf32> to vector<8x16xf32>
    %713 = arith.mulf %712, %591 : vector<8x16xf32>
    %714 = vector.extract_strided_slice %709 {offsets = [0, 1], sizes = [8, 1], strides = [1, 1]} : vector<8x4xf32> to vector<8x1xf32>
    %715 = vector.broadcast %714 : vector<8x1xf32> to vector<8x16xf32>
    %716 = arith.mulf %715, %594 : vector<8x16xf32>
    %717 = arith.addf %713, %716 : vector<8x16xf32>
    %718 = vector.extract_strided_slice %709 {offsets = [0, 2], sizes = [8, 1], strides = [1, 1]} : vector<8x4xf32> to vector<8x1xf32>
    %719 = vector.broadcast %718 : vector<8x1xf32> to vector<8x16xf32>
    %720 = arith.mulf %719, %597 : vector<8x16xf32>
    %721 = arith.addf %717, %720 : vector<8x16xf32>
    %722 = vector.extract_strided_slice %709 {offsets = [0, 3], sizes = [8, 1], strides = [1, 1]} : vector<8x4xf32> to vector<8x1xf32>
    %723 = vector.broadcast %722 : vector<8x1xf32> to vector<8x16xf32>
    %724 = arith.mulf %723, %600 : vector<8x16xf32>
    %725 = arith.addf %721, %724 : vector<8x16xf32>
    %726 = arith.addf %710, %725 : vector<8x16xf32>
    %727 = arith.negf %726 : vector<8x16xf32>
    %728 = math.exp %727 : vector<8x16xf32>
    %cst_110 = arith.constant 1.000000e+00 : f32
    %729 = vector.broadcast %cst_110 : f32 to vector<8x16xf32>
    %730 = arith.addf %729, %728 : vector<8x16xf32>
    %731 = arith.divf %729, %730 : vector<8x16xf32>
    %732 = math.tanh %726 : vector<8x16xf32>
    %733 = vector.extract_strided_slice %731 {offsets = [0, 0], sizes = [8, 4], strides = [1, 1]} : vector<8x16xf32> to vector<8x4xf32>
    %734 = vector.extract_strided_slice %731 {offsets = [0, 4], sizes = [8, 4], strides = [1, 1]} : vector<8x16xf32> to vector<8x4xf32>
    %735 = vector.extract_strided_slice %732 {offsets = [0, 8], sizes = [8, 4], strides = [1, 1]} : vector<8x16xf32> to vector<8x4xf32>
    %736 = vector.extract_strided_slice %731 {offsets = [0, 12], sizes = [8, 4], strides = [1, 1]} : vector<8x16xf32> to vector<8x4xf32>
    %737 = arith.mulf %734, %707 : vector<8x4xf32>
    %738 = arith.mulf %733, %735 : vector<8x4xf32>
    %739 = arith.addf %737, %738 : vector<8x4xf32>
    %740 = math.tanh %739 : vector<8x4xf32>
    %741 = arith.mulf %736, %740 : vector<8x4xf32>
    %742 = vector.extract_strided_slice %587 {offsets = [40, 0], sizes = [8, 16], strides = [1, 1]} : vector<64x16xf32> to vector<8x16xf32>
    %743 = vector.extract_strided_slice %741 {offsets = [0, 0], sizes = [8, 1], strides = [1, 1]} : vector<8x4xf32> to vector<8x1xf32>
    %744 = vector.broadcast %743 : vector<8x1xf32> to vector<8x16xf32>
    %745 = arith.mulf %744, %591 : vector<8x16xf32>
    %746 = vector.extract_strided_slice %741 {offsets = [0, 1], sizes = [8, 1], strides = [1, 1]} : vector<8x4xf32> to vector<8x1xf32>
    %747 = vector.broadcast %746 : vector<8x1xf32> to vector<8x16xf32>
    %748 = arith.mulf %747, %594 : vector<8x16xf32>
    %749 = arith.addf %745, %748 : vector<8x16xf32>
    %750 = vector.extract_strided_slice %741 {offsets = [0, 2], sizes = [8, 1], strides = [1, 1]} : vector<8x4xf32> to vector<8x1xf32>
    %751 = vector.broadcast %750 : vector<8x1xf32> to vector<8x16xf32>
    %752 = arith.mulf %751, %597 : vector<8x16xf32>
    %753 = arith.addf %749, %752 : vector<8x16xf32>
    %754 = vector.extract_strided_slice %741 {offsets = [0, 3], sizes = [8, 1], strides = [1, 1]} : vector<8x4xf32> to vector<8x1xf32>
    %755 = vector.broadcast %754 : vector<8x1xf32> to vector<8x16xf32>
    %756 = arith.mulf %755, %600 : vector<8x16xf32>
    %757 = arith.addf %753, %756 : vector<8x16xf32>
    %758 = arith.addf %742, %757 : vector<8x16xf32>
    %759 = arith.negf %758 : vector<8x16xf32>
    %760 = math.exp %759 : vector<8x16xf32>
    %cst_111 = arith.constant 1.000000e+00 : f32
    %761 = vector.broadcast %cst_111 : f32 to vector<8x16xf32>
    %762 = arith.addf %761, %760 : vector<8x16xf32>
    %763 = arith.divf %761, %762 : vector<8x16xf32>
    %764 = math.tanh %758 : vector<8x16xf32>
    %765 = vector.extract_strided_slice %763 {offsets = [0, 0], sizes = [8, 4], strides = [1, 1]} : vector<8x16xf32> to vector<8x4xf32>
    %766 = vector.extract_strided_slice %763 {offsets = [0, 4], sizes = [8, 4], strides = [1, 1]} : vector<8x16xf32> to vector<8x4xf32>
    %767 = vector.extract_strided_slice %764 {offsets = [0, 8], sizes = [8, 4], strides = [1, 1]} : vector<8x16xf32> to vector<8x4xf32>
    %768 = vector.extract_strided_slice %763 {offsets = [0, 12], sizes = [8, 4], strides = [1, 1]} : vector<8x16xf32> to vector<8x4xf32>
    %769 = arith.mulf %766, %739 : vector<8x4xf32>
    %770 = arith.mulf %765, %767 : vector<8x4xf32>
    %771 = arith.addf %769, %770 : vector<8x4xf32>
    %772 = math.tanh %771 : vector<8x4xf32>
    %773 = arith.mulf %768, %772 : vector<8x4xf32>
    %774 = vector.extract_strided_slice %587 {offsets = [48, 0], sizes = [8, 16], strides = [1, 1]} : vector<64x16xf32> to vector<8x16xf32>
    %775 = vector.extract_strided_slice %773 {offsets = [0, 0], sizes = [8, 1], strides = [1, 1]} : vector<8x4xf32> to vector<8x1xf32>
    %776 = vector.broadcast %775 : vector<8x1xf32> to vector<8x16xf32>
    %777 = arith.mulf %776, %591 : vector<8x16xf32>
    %778 = vector.extract_strided_slice %773 {offsets = [0, 1], sizes = [8, 1], strides = [1, 1]} : vector<8x4xf32> to vector<8x1xf32>
    %779 = vector.broadcast %778 : vector<8x1xf32> to vector<8x16xf32>
    %780 = arith.mulf %779, %594 : vector<8x16xf32>
    %781 = arith.addf %777, %780 : vector<8x16xf32>
    %782 = vector.extract_strided_slice %773 {offsets = [0, 2], sizes = [8, 1], strides = [1, 1]} : vector<8x4xf32> to vector<8x1xf32>
    %783 = vector.broadcast %782 : vector<8x1xf32> to vector<8x16xf32>
    %784 = arith.mulf %783, %597 : vector<8x16xf32>
    %785 = arith.addf %781, %784 : vector<8x16xf32>
    %786 = vector.extract_strided_slice %773 {offsets = [0, 3], sizes = [8, 1], strides = [1, 1]} : vector<8x4xf32> to vector<8x1xf32>
    %787 = vector.broadcast %786 : vector<8x1xf32> to vector<8x16xf32>
    %788 = arith.mulf %787, %600 : vector<8x16xf32>
    %789 = arith.addf %785, %788 : vector<8x16xf32>
    %790 = arith.addf %774, %789 : vector<8x16xf32>
    %791 = arith.negf %790 : vector<8x16xf32>
    %792 = math.exp %791 : vector<8x16xf32>
    %cst_112 = arith.constant 1.000000e+00 : f32
    %793 = vector.broadcast %cst_112 : f32 to vector<8x16xf32>
    %794 = arith.addf %793, %792 : vector<8x16xf32>
    %795 = arith.divf %793, %794 : vector<8x16xf32>
    %796 = math.tanh %790 : vector<8x16xf32>
    %797 = vector.extract_strided_slice %795 {offsets = [0, 0], sizes = [8, 4], strides = [1, 1]} : vector<8x16xf32> to vector<8x4xf32>
    %798 = vector.extract_strided_slice %795 {offsets = [0, 4], sizes = [8, 4], strides = [1, 1]} : vector<8x16xf32> to vector<8x4xf32>
    %799 = vector.extract_strided_slice %796 {offsets = [0, 8], sizes = [8, 4], strides = [1, 1]} : vector<8x16xf32> to vector<8x4xf32>
    %800 = vector.extract_strided_slice %795 {offsets = [0, 12], sizes = [8, 4], strides = [1, 1]} : vector<8x16xf32> to vector<8x4xf32>
    %801 = arith.mulf %798, %771 : vector<8x4xf32>
    %802 = arith.mulf %797, %799 : vector<8x4xf32>
    %803 = arith.addf %801, %802 : vector<8x4xf32>
    %804 = math.tanh %803 : vector<8x4xf32>
    %805 = arith.mulf %800, %804 : vector<8x4xf32>
    %806 = vector.extract_strided_slice %587 {offsets = [56, 0], sizes = [8, 16], strides = [1, 1]} : vector<64x16xf32> to vector<8x16xf32>
    %807 = vector.extract_strided_slice %805 {offsets = [0, 0], sizes = [8, 1], strides = [1, 1]} : vector<8x4xf32> to vector<8x1xf32>
    %808 = vector.broadcast %807 : vector<8x1xf32> to vector<8x16xf32>
    %809 = arith.mulf %808, %591 : vector<8x16xf32>
    %810 = vector.extract_strided_slice %805 {offsets = [0, 1], sizes = [8, 1], strides = [1, 1]} : vector<8x4xf32> to vector<8x1xf32>
    %811 = vector.broadcast %810 : vector<8x1xf32> to vector<8x16xf32>
    %812 = arith.mulf %811, %594 : vector<8x16xf32>
    %813 = arith.addf %809, %812 : vector<8x16xf32>
    %814 = vector.extract_strided_slice %805 {offsets = [0, 2], sizes = [8, 1], strides = [1, 1]} : vector<8x4xf32> to vector<8x1xf32>
    %815 = vector.broadcast %814 : vector<8x1xf32> to vector<8x16xf32>
    %816 = arith.mulf %815, %597 : vector<8x16xf32>
    %817 = arith.addf %813, %816 : vector<8x16xf32>
    %818 = vector.extract_strided_slice %805 {offsets = [0, 3], sizes = [8, 1], strides = [1, 1]} : vector<8x4xf32> to vector<8x1xf32>
    %819 = vector.broadcast %818 : vector<8x1xf32> to vector<8x16xf32>
    %820 = arith.mulf %819, %600 : vector<8x16xf32>
    %821 = arith.addf %817, %820 : vector<8x16xf32>
    %822 = arith.addf %806, %821 : vector<8x16xf32>
    %823 = arith.negf %822 : vector<8x16xf32>
    %824 = math.exp %823 : vector<8x16xf32>
    %cst_113 = arith.constant 1.000000e+00 : f32
    %825 = vector.broadcast %cst_113 : f32 to vector<8x16xf32>
    %826 = arith.addf %825, %824 : vector<8x16xf32>
    %827 = arith.divf %825, %826 : vector<8x16xf32>
    %828 = math.tanh %822 : vector<8x16xf32>
    %829 = vector.extract_strided_slice %827 {offsets = [0, 0], sizes = [8, 4], strides = [1, 1]} : vector<8x16xf32> to vector<8x4xf32>
    %830 = vector.extract_strided_slice %827 {offsets = [0, 4], sizes = [8, 4], strides = [1, 1]} : vector<8x16xf32> to vector<8x4xf32>
    %831 = vector.extract_strided_slice %828 {offsets = [0, 8], sizes = [8, 4], strides = [1, 1]} : vector<8x16xf32> to vector<8x4xf32>
    %832 = vector.extract_strided_slice %827 {offsets = [0, 12], sizes = [8, 4], strides = [1, 1]} : vector<8x16xf32> to vector<8x4xf32>
    %833 = arith.mulf %830, %803 : vector<8x4xf32>
    %834 = arith.mulf %829, %831 : vector<8x4xf32>
    %835 = arith.addf %833, %834 : vector<8x4xf32>
    %836 = math.tanh %835 : vector<8x4xf32>
    %837 = arith.mulf %832, %836 : vector<8x4xf32>
    %c0_114 = arith.constant 0 : index
    %c0_115 = arith.constant 0 : index
    %838 = vector.load %arg13[%c0_114, %c0_115] : memref<32x64xf32, #tpu.memory_space<vmem>>, vector<32x64xf32>
    %839 = vector.extract_strided_slice %838 {offsets = [0, 0], sizes = [4, 64], strides = [1, 1]} : vector<32x64xf32> to vector<4x64xf32>
    %cst_116 = arith.constant dense<0.000000e+00> : vector<8x64xf32>
    %840 = tpu.matmul %613, %839, %cst_116 {dimension_numbers = #tpu.dot_dimension_numbers<[1], [0], [0], [1], [0, 0, 1, 1], [], []>} : vector<8x4xf32>, vector<4x64xf32>, vector<8x64xf32> -> vector<8x64xf32>
    %841 = vector.extract_strided_slice %838 {offsets = [4, 0], sizes = [4, 64], strides = [1, 1]} : vector<32x64xf32> to vector<4x64xf32>
    %cst_117 = arith.constant dense<0.000000e+00> : vector<8x64xf32>
    %842 = tpu.matmul %645, %841, %cst_117 {dimension_numbers = #tpu.dot_dimension_numbers<[1], [0], [0], [1], [0, 0, 1, 1], [], []>} : vector<8x4xf32>, vector<4x64xf32>, vector<8x64xf32> -> vector<8x64xf32>
    %843 = vector.extract_strided_slice %838 {offsets = [8, 0], sizes = [4, 64], strides = [1, 1]} : vector<32x64xf32> to vector<4x64xf32>
    %cst_118 = arith.constant dense<0.000000e+00> : vector<8x64xf32>
    %844 = tpu.matmul %677, %843, %cst_118 {dimension_numbers = #tpu.dot_dimension_numbers<[1], [0], [0], [1], [0, 0, 1, 1], [], []>} : vector<8x4xf32>, vector<4x64xf32>, vector<8x64xf32> -> vector<8x64xf32>
    %845 = vector.extract_strided_slice %838 {offsets = [12, 0], sizes = [4, 64], strides = [1, 1]} : vector<32x64xf32> to vector<4x64xf32>
    %cst_119 = arith.constant dense<0.000000e+00> : vector<8x64xf32>
    %846 = tpu.matmul %709, %845, %cst_119 {dimension_numbers = #tpu.dot_dimension_numbers<[1], [0], [0], [1], [0, 0, 1, 1], [], []>} : vector<8x4xf32>, vector<4x64xf32>, vector<8x64xf32> -> vector<8x64xf32>
    %847 = vector.extract_strided_slice %838 {offsets = [16, 0], sizes = [4, 64], strides = [1, 1]} : vector<32x64xf32> to vector<4x64xf32>
    %cst_120 = arith.constant dense<0.000000e+00> : vector<8x64xf32>
    %848 = tpu.matmul %741, %847, %cst_120 {dimension_numbers = #tpu.dot_dimension_numbers<[1], [0], [0], [1], [0, 0, 1, 1], [], []>} : vector<8x4xf32>, vector<4x64xf32>, vector<8x64xf32> -> vector<8x64xf32>
    %849 = vector.extract_strided_slice %838 {offsets = [20, 0], sizes = [4, 64], strides = [1, 1]} : vector<32x64xf32> to vector<4x64xf32>
    %cst_121 = arith.constant dense<0.000000e+00> : vector<8x64xf32>
    %850 = tpu.matmul %773, %849, %cst_121 {dimension_numbers = #tpu.dot_dimension_numbers<[1], [0], [0], [1], [0, 0, 1, 1], [], []>} : vector<8x4xf32>, vector<4x64xf32>, vector<8x64xf32> -> vector<8x64xf32>
    %851 = vector.extract_strided_slice %838 {offsets = [24, 0], sizes = [4, 64], strides = [1, 1]} : vector<32x64xf32> to vector<4x64xf32>
    %cst_122 = arith.constant dense<0.000000e+00> : vector<8x64xf32>
    %852 = tpu.matmul %805, %851, %cst_122 {dimension_numbers = #tpu.dot_dimension_numbers<[1], [0], [0], [1], [0, 0, 1, 1], [], []>} : vector<8x4xf32>, vector<4x64xf32>, vector<8x64xf32> -> vector<8x64xf32>
    %853 = vector.extract_strided_slice %838 {offsets = [28, 0], sizes = [4, 64], strides = [1, 1]} : vector<32x64xf32> to vector<4x64xf32>
    %cst_123 = arith.constant dense<0.000000e+00> : vector<8x64xf32>
    %854 = tpu.matmul %837, %853, %cst_123 {dimension_numbers = #tpu.dot_dimension_numbers<[1], [0], [0], [1], [0, 0, 1, 1], [], []>} : vector<8x4xf32>, vector<4x64xf32>, vector<8x64xf32> -> vector<8x64xf32>
    %855 = arith.addf %840, %842 : vector<8x64xf32>
    %856 = arith.addf %844, %846 : vector<8x64xf32>
    %857 = arith.addf %848, %850 : vector<8x64xf32>
    %858 = arith.addf %852, %854 : vector<8x64xf32>
    %859 = arith.addf %855, %856 : vector<8x64xf32>
    %860 = arith.addf %857, %858 : vector<8x64xf32>
    %861 = arith.addf %859, %860 : vector<8x64xf32>
    %c0_124 = arith.constant 0 : index
    %c0_125 = arith.constant 0 : index
    %862 = vector.load %arg14[%c0_124, %c0_125] : memref<1x64xf32, #tpu.memory_space<vmem>>, vector<1x64xf32>
    %863 = vector.broadcast %862 : vector<1x64xf32> to vector<8x64xf32>
    %864 = arith.addf %861, %863 : vector<8x64xf32>
    %c0_126 = arith.constant 0 : index
    %c0_127 = arith.constant 0 : index
    %865 = vector.load %arg15[%c0_126, %c0_127] : memref<64x1xf32, #tpu.memory_space<vmem>>, vector<64x1xf32>
    %cst_128 = arith.constant dense<0.000000e+00> : vector<8x1xf32>
    %866 = tpu.matmul %864, %865, %cst_128 {dimension_numbers = #tpu.dot_dimension_numbers<[1], [0], [0], [1], [0, 0, 1, 1], [], []>} : vector<8x64xf32>, vector<64x1xf32>, vector<8x1xf32> -> vector<8x1xf32>
    %c0_129 = arith.constant 0 : index
    %c0_130 = arith.constant 0 : index
    %867 = vector.load %arg16[%c0_129, %c0_130] : memref<1x1xf32, #tpu.memory_space<vmem>>, vector<1x1xf32>
    %868 = vector.broadcast %867 : vector<1x1xf32> to vector<8x1xf32>
    %869 = arith.addf %866, %868 : vector<8x1xf32>
    %870 = vector.extract_strided_slice %869 {offsets = [0, 0], sizes = [2, 1], strides = [1, 1]} : vector<8x1xf32> to vector<2x1xf32>
    %c0_131 = arith.constant 0 : index
    %c0_132 = arith.constant 0 : index
    %871 = vector.load %arg17[%c0_131, %c0_132] : memref<2x1xf32, #tpu.memory_space<vmem>>, vector<2x1xf32>
    tpu.vector_store %arg17[%c0_131, %c0_132], %870 {strides = array<i32>} : memref<2x1xf32, #tpu.memory_space<vmem>>, vector<2x1xf32>,
    return
  }
}

</mosaic_0001>

<llo_original>
// kernel: lstm_model_forward.1
$region0: #{lstm_model_forward.1}
  #allocation0 [shape = 'u32[]', space=smem, size = 0x4, offset = 0x4, fixed_abs, tag = 'smem constant byte address 0x4 - core index']
  #allocation1 [shape = 'u32[72,128]{1,0:T(1,128)}', space=vmem, size = 0x9000, scoped, tag = 'internal scratch']
  #allocation2 [shape = 'f32[64,4]{1,0:T(8,128)}', space=vmem, size = 0x8000, scoped, tag = 'scratch operand']
  #allocation3 [shape = 'f32[1,1]{1,0:T(1,128)S(1)}', space=vmem, size = 0x200, scoped, tag = 'scoped memory for lstm_model_forward.1']
  %s0 = inlined_call_operand.vmem [shape: f32[16,4], index: 0, kind: input, shape index: {}]
  %s1 = inlined_call_operand.vmem [shape: f32[4,128], index: 1, kind: input, shape index: {}]
  %s2 = inlined_call_operand.vmem [shape: f32[32,128], index: 2, kind: input, shape index: {}]
  %s3 = inlined_call_operand.vmem [shape: f32[1,128], index: 3, kind: input, shape index: {}]
  %s4 = inlined_call_operand.vmem [shape: f32[32,128], index: 4, kind: input, shape index: {}]
  %s5 = inlined_call_operand.vmem [shape: f32[32,128], index: 5, kind: input, shape index: {}]
  %s6 = inlined_call_operand.vmem [shape: f32[1,128], index: 6, kind: input, shape index: {}]
  %s7 = inlined_call_operand.vmem [shape: f32[32,16], index: 7, kind: input, shape index: {}]
  %s8 = inlined_call_operand.vmem [shape: f32[4,16], index: 8, kind: input, shape index: {}]
  %s9 = inlined_call_operand.vmem [shape: f32[1,16], index: 9, kind: input, shape index: {}]
  %s10 = inlined_call_operand.vmem [shape: f32[4,16], index: 10, kind: input, shape index: {}]
  %s11 = inlined_call_operand.vmem [shape: f32[4,16], index: 11, kind: input, shape index: {}]
  %s12 = inlined_call_operand.vmem [shape: f32[1,16], index: 12, kind: input, shape index: {}]
  %s13 = inlined_call_operand.hbm [shape: f32[32,64], index: 13, kind: input, shape index: {}]
  %s14 = inlined_call_operand.vmem [shape: f32[1,64], index: 14, kind: input, shape index: {}]
  %s15 = inlined_call_operand.vmem [shape: f32[64,1], index: 15, kind: input, shape index: {}]
  %s16 = inlined_call_operand.<no memory space> [shape: f32[1,1], index: 16, kind: input, shape index: {}]
  %s17 = inlined_call_operand.vmem [shape: f32[2,1], index: 17, kind: output, shape index: {}]
  %s18 = sld [smem:[#allocation0]]
  $region82: #{lstm_model_forward.1} parent=0
    _
  %s20 = ssub.s32 1, %s18
  %s21 = scalar_select 0, %s20, %s18
  %v22 = vstv %s16
  %23 = vst [vmem:[#allocation3] sm:$0x1] %v22
  $region1: #{lstm_model_forward.1} parent=0
    #allocation4 [shape = 'u8[16384]{0}', space=vmem, size = 0x4000, scoped, tag = 'input window, operand 13, single buffered']
    #allocation5 [shape = 's32[1]{0}', space=sflag, size = 0x4, scoped, tag = 'scoped memory for lstm_model_forward.1']
    %24 = vsyncpa [#allocation5], 0
    // Predicated region
    $region2: #{lstm_model_forward.1} parent=1 // pred_check
      _
    $region3: #{lstm_model_forward.1} parent=1 // pred_check_branch
      %26 = sbr.rel (0) target = $region5
    $region4: #{lstm_model_forward.1} parent=1 // pred_region
      _
    $region5: #{lstm_model_forward.1} parent=1 // pred_fallthru
      _
    // Predicated region
    $region6: #{lstm_model_forward.1} parent=1 // pred_check
      _
    $region7: #{lstm_model_forward.1} parent=1 // pred_check_branch
      %28 = sbr.rel (0) target = $region9
    $region8: #{lstm_model_forward.1} parent=1 // pred_region
      _
    $region9: #{lstm_model_forward.1} parent=1 // pred_fallthru
      _
    // Predicated region
    $region10: #{lstm_model_forward.1} parent=1 // pred_check
      _
    $region11: #{lstm_model_forward.1} parent=1 // pred_check_branch
      %30 = sbr.rel (0) target = $region13
    $region12: #{lstm_model_forward.1} parent=1 // pred_region
      _
    $region13: #{lstm_model_forward.1} parent=1 // pred_fallthru
      _
    // Predicated region
    $region14: #{lstm_model_forward.1} parent=1 // pred_check
      _
    $region15: #{lstm_model_forward.1} parent=1 // pred_check_branch
      %32 = sbr.rel (0) target = $region17
    $region16: #{lstm_model_forward.1} parent=1 // pred_region
      _
    $region17: #{lstm_model_forward.1} parent=1 // pred_fallthru
      _
    // Predicated region
    $region18: #{lstm_model_forward.1} parent=1 // pred_check
      _
    $region19: #{lstm_model_forward.1} parent=1 // pred_check_branch
      %34 = sbr.rel (0) target = $region21
    $region20: #{lstm_model_forward.1} parent=1 // pred_region
      _
    $region21: #{lstm_model_forward.1} parent=1 // pred_fallthru
      _
    // Predicated region
    $region22: #{lstm_model_forward.1} parent=1 // pred_check
      _
    $region23: #{lstm_model_forward.1} parent=1 // pred_check_branch
      %36 = sbr.rel (0) target = $region25
    $region24: #{lstm_model_forward.1} parent=1 // pred_region
      _
    $region25: #{lstm_model_forward.1} parent=1 // pred_fallthru
      _
    // Predicated region
    $region26: #{lstm_model_forward.1} parent=1 // pred_check
      _
    $region27: #{lstm_model_forward.1} parent=1 // pred_check_branch
      %38 = sbr.rel (0) target = $region29
    $region28: #{lstm_model_forward.1} parent=1 // pred_region
      _
    $region29: #{lstm_model_forward.1} parent=1 // pred_fallthru
      _
    // Predicated region
    $region30: #{lstm_model_forward.1} parent=1 // pred_check
      _
    $region31: #{lstm_model_forward.1} parent=1 // pred_check_branch
      %40 = sbr.rel (0) target = $region33
    $region32: #{lstm_model_forward.1} parent=1 // pred_region
      _
    $region33: #{lstm_model_forward.1} parent=1 // pred_fallthru
      _
    // Predicated region
    $region34: #{lstm_model_forward.1} parent=1 // pred_check
      _
    $region35: #{lstm_model_forward.1} parent=1 // pred_check_branch
      %42 = sbr.rel (0) target = $region37
    $region36: #{lstm_model_forward.1} parent=1 // pred_region
      _
    $region37: #{lstm_model_forward.1} parent=1 // pred_fallthru
      _
    // Predicated region
    $region38: #{lstm_model_forward.1} parent=1 // pred_check
      _
    $region39: #{lstm_model_forward.1} parent=1 // pred_check_branch
      %44 = sbr.rel (0) target = $region41
    $region40: #{lstm_model_forward.1} parent=1 // pred_region
      _
    $region41: #{lstm_model_forward.1} parent=1 // pred_fallthru
      _
    // Predicated region
    $region42: #{lstm_model_forward.1} parent=1 // pred_check
      _
    $region43: #{lstm_model_forward.1} parent=1 // pred_check_branch
      %46 = sbr.rel (0) target = $region45
    $region44: #{lstm_model_forward.1} parent=1 // pred_region
      _
    $region45: #{lstm_model_forward.1} parent=1 // pred_fallthru
      _
    // Predicated region
    $region46: #{lstm_model_forward.1} parent=1 // pred_check
      _
    $region47: #{lstm_model_forward.1} parent=1 // pred_check_branch
      %48 = sbr.rel (0) target = $region49
    $region48: #{lstm_model_forward.1} parent=1 // pred_region
      _
    $region49: #{lstm_model_forward.1} parent=1 // pred_fallthru
      _
    // Predicated region
    $region50: #{lstm_model_forward.1} parent=1 // pred_check
      _
    $region51: #{lstm_model_forward.1} parent=1 // pred_check_branch
      %50 = sbr.rel (0) target = $region53
    $region52: #{lstm_model_forward.1} parent=1 // pred_region
      _
    $region53: #{lstm_model_forward.1} parent=1 // pred_fallthru
      _
    // Predicated region
    $region54: #{lstm_model_forward.1} parent=1 // pred_check
      _
    $region55: #{lstm_model_forward.1} parent=1 // pred_check_branch
      %52 = sbr.rel (0) target = $region57
    $region56: #{lstm_model_forward.1} parent=1 // pred_region
      %54 = vsyncadd [#allocation5], 0
      %s55 = sshll.u32 %s13, 4
      %s56 = int_to_ptr.hbm [resolvable:$true] %s55
      %s57 = sshll.u32 [#allocation4], 4
      %s58 = int_to_ptr.vmem [resolvable:$true] %s57
      %63 = dma.hbm_to_vmem [thread:$0]  %s56, 512, %s58, [#allocation5], 128, 128, 8
    $region57: #{lstm_model_forward.1} parent=1 // pred_fallthru
      _
    // Predicated region
    $region58: #{lstm_model_forward.1} parent=1 // pred_check
      _
    $region59: #{lstm_model_forward.1} parent=1 // pred_check_branch
      %65 = sbr.rel (0) target = $region61
    $region60: #{lstm_model_forward.1} parent=1 // pred_region
      _
    $region61: #{lstm_model_forward.1} parent=1 // pred_fallthru
      _
    // Predicated region
    $region62: #{lstm_model_forward.1} parent=1 // pred_check
      _
    $region63: #{lstm_model_forward.1} parent=1 // pred_check_branch
      %67 = sbr.rel (0) target = $region65
    $region64: #{lstm_model_forward.1} parent=1 // pred_region
      _
    $region65: #{lstm_model_forward.1} parent=1 // pred_fallthru
      _
    // Predicated region
    $region66: #{lstm_model_forward.1} parent=1 // pred_check
      _
    $region67: #{lstm_model_forward.1} parent=1 // pred_check_branch
      %69 = sbr.rel (0) target = $region69
    $region68: #{lstm_model_forward.1} parent=1 // pred_region
      _
    $region69: #{lstm_model_forward.1} parent=1 // pred_fallthru
      _
    // Predicated region
    $region70: #{lstm_model_forward.1} parent=1 // pred_check
      _
    $region71: #{lstm_model_forward.1} parent=1 // pred_check_branch
      %71 = sbr.rel (0) target = $region73
    $region72: #{lstm_model_forward.1} parent=1 // pred_region
      %73 = dma.done [#allocation5], 512
    $region73: #{lstm_model_forward.1} parent=1 // pred_fallthru
      _
    %vm74 = vcmask 31744
    %75 = vst.msk [vmem:[#allocation2] sm:$0xff] %vm74, 0.0
    %76 = vst.msk [vmem:[#allocation2 + $0x8] sm:$0xff] %vm74, 0.0
    %77 = vst.msk [vmem:[#allocation2 + $0x10] sm:$0xff] %vm74, 0.0
    %78 = vst.msk [vmem:[#allocation2 + $0x18] sm:$0xff] %vm74, 0.0
    %79 = vst.msk [vmem:[#allocation2 + $0x20] sm:$0xff] %vm74, 0.0
    %80 = vst.msk [vmem:[#allocation2 + $0x28] sm:$0xff] %vm74, 0.0
    %81 = vst.msk [vmem:[#allocation2 + $0x30] sm:$0xff] %vm74, 0.0
    %82 = vst.msk [vmem:[#allocation2 + $0x38] sm:$0xff] %vm74, 0.0
    %v83 = vld [vmem:[%s0] sm:$0x1]
    %vm84 = vcmask 24576
    %85 = vst.msk [vmem:[#allocation2] sm:$0x1] %vm84, %v83
    %v86 = vld [vmem:[%s0 + $0x1] sm:$0x1]
    %87 = vst.msk [vmem:[#allocation2 + $0x8] sm:$0x1] %vm84, %v86
    %v88 = vld [vmem:[%s0 + $0x2] sm:$0x1]
    %89 = vst.msk [vmem:[#allocation2 + $0x10] sm:$0x1] %vm84, %v88
    %v90 = vld [vmem:[%s0 + $0x3] sm:$0x1]
    %91 = vst.msk [vmem:[#allocation2 + $0x18] sm:$0x1] %vm84, %v90
    %v92 = vld [vmem:[%s0 + $0x4] sm:$0x1]
    %93 = vst.msk [vmem:[#allocation2 + $0x20] sm:$0x1] %vm84, %v92
    %v94 = vld [vmem:[%s0 + $0x5] sm:$0x1]
    %95 = vst.msk [vmem:[#allocation2 + $0x28] sm:$0x1] %vm84, %v94
    %v96 = vld [vmem:[%s0 + $0x6] sm:$0x1]
    %97 = vst.msk [vmem:[#allocation2 + $0x30] sm:$0x1] %vm84, %v96
    %v98 = vld [vmem:[%s0 + $0x7] sm:$0x1]
    %99 = vst.msk [vmem:[#allocation2 + $0x38] sm:$0x1] %vm84, %v98
    %v100 = vld [vmem:[%s0 + $0x8] sm:$0x1]
    %101 = vst.msk [vmem:[#allocation2 + $0x1] sm:$0x1] %vm84, %v100
    %v102 = vld [vmem:[%s0 + $0x9] sm:$0x1]
    %103 = vst.msk [vmem:[#allocation2 + $0x9] sm:$0x1] %vm84, %v102
    %v104 = vld [vmem:[%s0 + $0xa] sm:$0x1]
    %105 = vst.msk [vmem:[#allocation2 + $0x11] sm:$0x1] %vm84, %v104
    %v106 = vld [vmem:[%s0 + $0xb] sm:$0x1]
    %107 = vst.msk [vmem:[#allocation2 + $0x19] sm:$0x1] %vm84, %v106
    %v108 = vld [vmem:[%s0 + $0xc] sm:$0x1]
    %109 = vst.msk [vmem:[#allocation2 + $0x21] sm:$0x1] %vm84, %v108
    %v110 = vld [vmem:[%s0 + $0xd] sm:$0x1]
    %111 = vst.msk [vmem:[#allocation2 + $0x29] sm:$0x1] %vm84, %v110
    %v112 = vld [vmem:[%s0 + $0xe] sm:$0x1]
    %113 = vst.msk [vmem:[#allocation2 + $0x31] sm:$0x1] %vm84, %v112
    %v114 = vld [vmem:[%s0 + $0xf] sm:$0x1]
    %115 = vst.msk [vmem:[#allocation2 + $0x39] sm:$0x1] %vm84, %v114
    %v116 = vld [vmem:[#allocation2] sm:$0xff]
    %v117 = vld [vmem:[#allocation2 + $0x8] sm:$0xff]
    %v118 = vld [vmem:[#allocation2 + $0x10] sm:$0xff]
    %v119 = vld [vmem:[#allocation2 + $0x18] sm:$0xff]
    %v120 = vld [vmem:[#allocation2 + $0x20] sm:$0xff]
    %v121 = vld [vmem:[#allocation2 + $0x28] sm:$0xff]
    %v122 = vld [vmem:[#allocation2 + $0x30] sm:$0xff]
    %v123 = vld [vmem:[#allocation2 + $0x38] sm:$0xff]
    %v124 = vld [vmem:[%s1] sm:$0xf]
    %v125 = vld [vmem:[%s3] sm:$0x1]
    %v127 = vperm.slane %v125, 0
    %v130 = vsel %vm74, %v116, 0
    %v133 = vsel %vm74, %v117, 0
    %v136 = vsel %vm74, %v118, 0
    %v139 = vsel %vm74, %v119, 0
    %v142 = vsel %vm74, %v120, 0
    %v145 = vsel %vm74, %v121, 0
    %v148 = vsel %vm74, %v122, 0
    %v151 = vsel %vm74, %v123, 0
    %vm153 = vcmask 1043456
    %v155 = vsel %vm153, %v124, 0
    %157 = vmatpush.msra.mxu0 0.0
    %158 = vmatpush.msra.mxu0 0.0
    %159 = vmatpush.msra.mxu0 0.0
    %160 = vmatpush.msra.mxu0 0.0
    %161 = vmatpush.msra.mxu0 0.0
    %162 = vmatpush.msra.mxu0 0.0
    %163 = vmatpush.msra.mxu0 0.0
    %164 = vmatpush.msra.mxu0 0.0
    %165 = vmatpush.msra.mxu0 0.0
    %166 = vmatpush.msra.mxu0 0.0
    %167 = vmatpush.msra.mxu0 0.0
    %168 = vmatpush.msra.mxu0 0.0
    %169 = vmatpush.msra.mxu0 0.0
    %170 = vmatpush.msra.mxu0 0.0
    %171 = vmatpush.msra.mxu0 0.0
    %172 = vmatpush.msra.mxu0 %v155
    %173 = vmatmul.f32.gmra.mxu0 %v130
    %v174 = vpop.f32.mrf.mxu0
    %v175 = vadd.f32 %v127, %v174
    %176 = vmatmul.f32.gmra.mxu0 %v133
    %v177 = vpop.f32.mrf.mxu0
    %v178 = vadd.f32 %v127, %v177
    %179 = vmatmul.f32.gmra.mxu0 %v136
    %v180 = vpop.f32.mrf.mxu0
    %v181 = vadd.f32 %v127, %v180
    %182 = vmatmul.f32.gmra.mxu0 %v139
    %v183 = vpop.f32.mrf.mxu0
    %v184 = vadd.f32 %v127, %v183
    %185 = vmatmul.f32.gmra.mxu0 %v142
    %v186 = vpop.f32.mrf.mxu0
    %v187 = vadd.f32 %v127, %v186
    %188 = vmatmul.f32.gmra.mxu0 %v145
    %v189 = vpop.f32.mrf.mxu0
    %v190 = vadd.f32 %v127, %v189
    %191 = vmatmul.f32.gmra.mxu0 %v148
    %v192 = vpop.f32.mrf.mxu0
    %v193 = vadd.f32 %v127, %v192
    %194 = vmatmul.f32.gmra.mxu0 %v151
    %v195 = vpop.f32.mrf.mxu0
    %v196 = vadd.f32 %v127, %v195
    %197 = vdwg.mxu0
    %v198 = vld [vmem:[%s2] sm:$0xff]
    %v199 = vld [vmem:[%s2 + $0x8] sm:$0xff]
    %v200 = vld [vmem:[%s2 + $0x10] sm:$0xff]
    %v201 = vld [vmem:[%s2 + $0x18] sm:$0xff]
    %v202 = vxor.u32 %v175, 2147483648
    %v203 = vmul.f32 %v202, 1.442695
    %v204 = vpow.pop %v203
    %v205 = vadd.f32 %v204, 1.0
    %v206 = vrcp.pop %v205
    %v207 = vmul.f32 %v205, %v206
    %v208 = vsub.f32 1.0, %v207
    %v209 = vmul.f32 %v206, %v208
    %v210 = vadd.f32 %v206, %v209
    %vm211 = vweird.f32 %v205
    %vm212 = vweird.f32 %v206
    %vm213 = vmor %vm211, %vm212
    %v214 = vsel %vm213, %v206, %v210
    %v215 = vand.u32 2147483647, %v205
    %vm216 = vcmp.eq.f32.partialorder %v215, 8.507059e+37
    %v217 = vand.u32 %v205, 2147483648
    %v218 = vor.u32 1.1754944e-38, %v217
    %v219 = vsel %vm216, %v218, %v214
    %v220 = vmul.f32 1.0, %v219
    %v221 = vtanh.pop %v175
    %223 = vrot.lane.b32.xlu0 %v221, 64
    %v224 = vpop.permute.xlu0 %223
    %v226 = vmul.f32 %v220, %v224
    %v227 = vtanh.pop %v226
    %229 = vrot.lane.b32.xlu0 %v227, 96
    %v230 = vpop.permute.xlu0 %229
    %v232 = vmul.f32 %v220, %v230
    %234 = vrot.lane.b32.xlu0 %v232, 32
    %v235 = vpop.permute.xlu0 %234
    %vm236 = vcmask 261120
    %v237 = vsel %vm236, %v235, 0
    %239 = vmatpush.msra.mxu0 0.0
    %240 = vmatpush.msra.mxu0 0.0
    %241 = vmatpush.msra.mxu0 0.0
    %242 = vmatpush.msra.mxu0 0.0
    %243 = vmatpush.msra.mxu0 0.0
    %244 = vmatpush.msra.mxu0 0.0
    %245 = vmatpush.msra.mxu0 0.0
    %246 = vmatpush.msra.mxu0 0.0
    %247 = vmatpush.msra.mxu0 0.0
    %248 = vmatpush.msra.mxu0 0.0
    %249 = vmatpush.msra.mxu0 0.0
    %250 = vmatpush.msra.mxu0 0.0
    %251 = vmatpush.msra.mxu0 %v201
    %252 = vmatpush.msra.mxu0 %v200
    %253 = vmatpush.msra.mxu0 %v199
    %254 = vmatpush.msra.mxu0 %v198
    %255 = vmatmul.f32.gmra.mxu0 %v237
    %v256 = vpop.f32.mrf.mxu0
    %v257 = vadd.f32 0.0, %v256
    %258 = vdwg.mxu0
    %v259 = vadd.f32 %v178, %v257
    %v260 = vxor.u32 %v259, 2147483648
    %v261 = vmul.f32 %v260, 1.442695
    %v262 = vpow.pop %v261
    %v263 = vadd.f32 %v262, 1.0
    %v264 = vrcp.pop %v263
    %v265 = vmul.f32 %v263, %v264
    %v266 = vsub.f32 1.0, %v265
    %v267 = vmul.f32 %v264, %v266
    %v268 = vadd.f32 %v264, %v267
    %vm269 = vweird.f32 %v263
    %vm270 = vweird.f32 %v264
    %vm271 = vmor %vm269, %vm270
    %v272 = vsel %vm271, %v264, %v268
    %v273 = vand.u32 2147483647, %v263
    %vm274 = vcmp.eq.f32.partialorder %v273, 8.507059e+37
    %v275 = vand.u32 %v263, 2147483648
    %v276 = vor.u32 1.1754944e-38, %v275
    %v277 = vsel %vm274, %v276, %v272
    %v278 = vmul.f32 1.0, %v277
    %v279 = vtanh.pop %v259
    %281 = vrot.lane.b32.xlu0 %v226, 32
    %v282 = vpop.permute.xlu0 %281
    %v284 = vmul.f32 %v278, %v282
    %286 = vrot.lane.b32.xlu0 %v279, 64
    %v287 = vpop.permute.xlu0 %286
    %v289 = vmul.f32 %v278, %v287
    %291 = vrot.lane.b32.xlu0 %v289, 32
    %v292 = vpop.permute.xlu0 %291
    %v294 = vadd.f32 %v284, %v292
    %v295 = vtanh.pop %v294
    %297 = vrot.lane.b32.xlu0 %v295, 64
    %v298 = vpop.permute.xlu0 %297
    %v300 = vmul.f32 %v278, %v298
    %302 = vrot.lane.b32.xlu0 %v300, 32
    %v303 = vpop.permute.xlu0 %302
    %v304 = vsel %vm236, %v303, 0
    %306 = vmatpush.msra.mxu0 0.0
    %307 = vmatpush.msra.mxu0 0.0
    %308 = vmatpush.msra.mxu0 0.0
    %309 = vmatpush.msra.mxu0 0.0
    %310 = vmatpush.msra.mxu0 0.0
    %311 = vmatpush.msra.mxu0 0.0
    %312 = vmatpush.msra.mxu0 0.0
    %313 = vmatpush.msra.mxu0 0.0
    %314 = vmatpush.msra.mxu0 0.0
    %315 = vmatpush.msra.mxu0 0.0
    %316 = vmatpush.msra.mxu0 0.0
    %317 = vmatpush.msra.mxu0 0.0
    %318 = vmatpush.msra.mxu0 %v201
    %319 = vmatpush.msra.mxu0 %v200
    %320 = vmatpush.msra.mxu0 %v199
    %321 = vmatpush.msra.mxu0 %v198
    %322 = vmatmul.f32.gmra.mxu0 %v304
    %v323 = vpop.f32.mrf.mxu0
    %v324 = vadd.f32 0.0, %v323
    %325 = vdwg.mxu0
    %v326 = vadd.f32 %v181, %v324
    %v327 = vxor.u32 %v326, 2147483648
    %v328 = vmul.f32 %v327, 1.442695
    %v329 = vpow.pop %v328
    %v330 = vadd.f32 %v329, 1.0
    %v331 = vrcp.pop %v330
    %v332 = vmul.f32 %v330, %v331
    %v333 = vsub.f32 1.0, %v332
    %v334 = vmul.f32 %v331, %v333
    %v335 = vadd.f32 %v331, %v334
    %vm336 = vweird.f32 %v330
    %vm337 = vweird.f32 %v331
    %vm338 = vmor %vm336, %vm337
    %v339 = vsel %vm338, %v331, %v335
    %v340 = vand.u32 2147483647, %v330
    %vm341 = vcmp.eq.f32.partialorder %v340, 8.507059e+37
    %v342 = vand.u32 %v330, 2147483648
    %v343 = vor.u32 1.1754944e-38, %v342
    %v344 = vsel %vm341, %v343, %v339
    %v345 = vmul.f32 1.0, %v344
    %v346 = vtanh.pop %v326
    %v347 = vmul.f32 %v345, %v294
    %349 = vrot.lane.b32.xlu0 %v346, 64
    %v350 = vpop.permute.xlu0 %349
    %v352 = vmul.f32 %v345, %v350
    %354 = vrot.lane.b32.xlu0 %v352, 32
    %v355 = vpop.permute.xlu0 %354
    %v357 = vadd.f32 %v347, %v355
    %v358 = vtanh.pop %v357
    %360 = vrot.lane.b32.xlu0 %v358, 64
    %v361 = vpop.permute.xlu0 %360
    %v363 = vmul.f32 %v345, %v361
    %365 = vrot.lane.b32.xlu0 %v363, 32
    %v366 = vpop.permute.xlu0 %365
    %v367 = vsel %vm236, %v366, 0
    %369 = vmatpush.msra.mxu0 0.0
    %370 = vmatpush.msra.mxu0 0.0
    %371 = vmatpush.msra.mxu0 0.0
    %372 = vmatpush.msra.mxu0 0.0
    %373 = vmatpush.msra.mxu0 0.0
    %374 = vmatpush.msra.mxu0 0.0
    %375 = vmatpush.msra.mxu0 0.0
    %376 = vmatpush.msra.mxu0 0.0
    %377 = vmatpush.msra.mxu0 0.0
    %378 = vmatpush.msra.mxu0 0.0
    %379 = vmatpush.msra.mxu0 0.0
    %380 = vmatpush.msra.mxu0 0.0
    %381 = vmatpush.msra.mxu0 %v201
    %382 = vmatpush.msra.mxu0 %v200
    %383 = vmatpush.msra.mxu0 %v199
    %384 = vmatpush.msra.mxu0 %v198
    %385 = vmatmul.f32.gmra.mxu0 %v367
    %v386 = vpop.f32.mrf.mxu0
    %v387 = vadd.f32 0.0, %v386
    %388 = vdwg.mxu0
    %v389 = vadd.f32 %v184, %v387
    %v390 = vxor.u32 %v389, 2147483648
    %v391 = vmul.f32 %v390, 1.442695
    %v392 = vpow.pop %v391
    %v393 = vadd.f32 %v392, 1.0
    %v394 = vrcp.pop %v393
    %v395 = vmul.f32 %v393, %v394
    %v396 = vsub.f32 1.0, %v395
    %v397 = vmul.f32 %v394, %v396
    %v398 = vadd.f32 %v394, %v397
    %vm399 = vweird.f32 %v393
    %vm400 = vweird.f32 %v394
    %vm401 = vmor %vm399, %vm400
    %v402 = vsel %vm401, %v394, %v398
    %v403 = vand.u32 2147483647, %v393
    %vm404 = vcmp.eq.f32.partialorder %v403, 8.507059e+37
    %v405 = vand.u32 %v393, 2147483648
    %v406 = vor.u32 1.1754944e-38, %v405
    %v407 = vsel %vm404, %v406, %v402
    %v408 = vmul.f32 1.0, %v407
    %v409 = vtanh.pop %v389
    %v410 = vmul.f32 %v408, %v357
    %412 = vrot.lane.b32.xlu0 %v409, 64
    %v413 = vpop.permute.xlu0 %412
    %v415 = vmul.f32 %v408, %v413
    %417 = vrot.lane.b32.xlu0 %v415, 32
    %v418 = vpop.permute.xlu0 %417
    %v420 = vadd.f32 %v410, %v418
    %v421 = vtanh.pop %v420
    %423 = vrot.lane.b32.xlu0 %v421, 64
    %v424 = vpop.permute.xlu0 %423
    %v426 = vmul.f32 %v408, %v424
    %428 = vrot.lane.b32.xlu0 %v426, 32
    %v429 = vpop.permute.xlu0 %428
    %v430 = vsel %vm236, %v429, 0
    %432 = vmatpush.msra.mxu0 0.0
    %433 = vmatpush.msra.mxu0 0.0
    %434 = vmatpush.msra.mxu0 0.0
    %435 = vmatpush.msra.mxu0 0.0
    %436 = vmatpush.msra.mxu0 0.0
    %437 = vmatpush.msra.mxu0 0.0
    %438 = vmatpush.msra.mxu0 0.0
    %439 = vmatpush.msra.mxu0 0.0
    %440 = vmatpush.msra.mxu0 0.0
    %441 = vmatpush.msra.mxu0 0.0
    %442 = vmatpush.msra.mxu0 0.0
    %443 = vmatpush.msra.mxu0 0.0
    %444 = vmatpush.msra.mxu0 %v201
    %445 = vmatpush.msra.mxu0 %v200
    %446 = vmatpush.msra.mxu0 %v199
    %447 = vmatpush.msra.mxu0 %v198
    %448 = vmatmul.f32.gmra.mxu0 %v430
    %v449 = vpop.f32.mrf.mxu0
    %v450 = vadd.f32 0.0, %v449
    %451 = vdwg.mxu0
    %v452 = vadd.f32 %v187, %v450
    %v453 = vxor.u32 %v452, 2147483648
    %v454 = vmul.f32 %v453, 1.442695
    %v455 = vpow.pop %v454
    %v456 = vadd.f32 %v455, 1.0
    %v457 = vrcp.pop %v456
    %v458 = vmul.f32 %v456, %v457
    %v459 = vsub.f32 1.0, %v458
    %v460 = vmul.f32 %v457, %v459
    %v461 = vadd.f32 %v457, %v460
    %vm462 = vweird.f32 %v456
    %vm463 = vweird.f32 %v457
    %vm464 = vmor %vm462, %vm463
    %v465 = vsel %vm464, %v457, %v461
    %v466 = vand.u32 2147483647, %v456
    %vm467 = vcmp.eq.f32.partialorder %v466, 8.507059e+37
    %v468 = vand.u32 %v456, 2147483648
    %v469 = vor.u32 1.1754944e-38, %v468
    %v470 = vsel %vm467, %v469, %v465
    %v471 = vmul.f32 1.0, %v470
    %v472 = vtanh.pop %v452
    %v473 = vmul.f32 %v471, %v420
    %475 = vrot.lane.b32.xlu0 %v472, 64
    %v476 = vpop.permute.xlu0 %475
    %v478 = vmul.f32 %v471, %v476
    %480 = vrot.lane.b32.xlu0 %v478, 32
    %v481 = vpop.permute.xlu0 %480
    %v483 = vadd.f32 %v473, %v481
    %v484 = vtanh.pop %v483
    %486 = vrot.lane.b32.xlu0 %v484, 64
    %v487 = vpop.permute.xlu0 %486
    %v489 = vmul.f32 %v471, %v487
    %491 = vrot.lane.b32.xlu0 %v489, 32
    %v492 = vpop.permute.xlu0 %491
    %v493 = vsel %vm236, %v492, 0
    %495 = vmatpush.msra.mxu0 0.0
    %496 = vmatpush.msra.mxu0 0.0
    %497 = vmatpush.msra.mxu0 0.0
    %498 = vmatpush.msra.mxu0 0.0
    %499 = vmatpush.msra.mxu0 0.0
    %500 = vmatpush.msra.mxu0 0.0
    %501 = vmatpush.msra.mxu0 0.0
    %502 = vmatpush.msra.mxu0 0.0
    %503 = vmatpush.msra.mxu0 0.0
    %504 = vmatpush.msra.mxu0 0.0
    %505 = vmatpush.msra.mxu0 0.0
    %506 = vmatpush.msra.mxu0 0.0
    %507 = vmatpush.msra.mxu0 %v201
    %508 = vmatpush.msra.mxu0 %v200
    %509 = vmatpush.msra.mxu0 %v199
    %510 = vmatpush.msra.mxu0 %v198
    %511 = vmatmul.f32.gmra.mxu0 %v493
    %v512 = vpop.f32.mrf.mxu0
    %v513 = vadd.f32 0.0, %v512
    %514 = vdwg.mxu0
    %v515 = vadd.f32 %v190, %v513
    %v516 = vxor.u32 %v515, 2147483648
    %v517 = vmul.f32 %v516, 1.442695
    %v518 = vpow.pop %v517
    %v519 = vadd.f32 %v518, 1.0
    %v520 = vrcp.pop %v519
    %v521 = vmul.f32 %v519, %v520
    %v522 = vsub.f32 1.0, %v521
    %v523 = vmul.f32 %v520, %v522
    %v524 = vadd.f32 %v520, %v523
    %vm525 = vweird.f32 %v519
    %vm526 = vweird.f32 %v520
    %vm527 = vmor %vm525, %vm526
    %v528 = vsel %vm527, %v520, %v524
    %v529 = vand.u32 2147483647, %v519
    %vm530 = vcmp.eq.f32.partialorder %v529, 8.507059e+37
    %v531 = vand.u32 %v519, 2147483648
    %v532 = vor.u32 1.1754944e-38, %v531
    %v533 = vsel %vm530, %v532, %v528
    %v534 = vmul.f32 1.0, %v533
    %v535 = vtanh.pop %v515
    %v536 = vmul.f32 %v534, %v483
    %538 = vrot.lane.b32.xlu0 %v535, 64
    %v539 = vpop.permute.xlu0 %538
    %v541 = vmul.f32 %v534, %v539
    %543 = vrot.lane.b32.xlu0 %v541, 32
    %v544 = vpop.permute.xlu0 %543
    %v546 = vadd.f32 %v536, %v544
    %v547 = vtanh.pop %v546
    %549 = vrot.lane.b32.xlu0 %v547, 64
    %v550 = vpop.permute.xlu0 %549
    %v552 = vmul.f32 %v534, %v550
    %554 = vrot.lane.b32.xlu0 %v552, 32
    %v555 = vpop.permute.xlu0 %554
    %v556 = vsel %vm236, %v555, 0
    %558 = vmatpush.msra.mxu0 0.0
    %559 = vmatpush.msra.mxu0 0.0
    %560 = vmatpush.msra.mxu0 0.0
    %561 = vmatpush.msra.mxu0 0.0
    %562 = vmatpush.msra.mxu0 0.0
    %563 = vmatpush.msra.mxu0 0.0
    %564 = vmatpush.msra.mxu0 0.0
    %565 = vmatpush.msra.mxu0 0.0
    %566 = vmatpush.msra.mxu0 0.0
    %567 = vmatpush.msra.mxu0 0.0
    %568 = vmatpush.msra.mxu0 0.0
    %569 = vmatpush.msra.mxu0 0.0
    %570 = vmatpush.msra.mxu0 %v201
    %571 = vmatpush.msra.mxu0 %v200
    %572 = vmatpush.msra.mxu0 %v199
    %573 = vmatpush.msra.mxu0 %v198
    %574 = vmatmul.f32.gmra.mxu0 %v556
    %v575 = vpop.f32.mrf.mxu0
    %v576 = vadd.f32 0.0, %v575
    %577 = vdwg.mxu0
    %v578 = vadd.f32 %v193, %v576
    %v579 = vxor.u32 %v578, 2147483648
    %v580 = vmul.f32 %v579, 1.442695
    %v581 = vpow.pop %v580
    %v582 = vadd.f32 %v581, 1.0
    %v583 = vrcp.pop %v582
    %v584 = vmul.f32 %v582, %v583
    %v585 = vsub.f32 1.0, %v584
    %v586 = vmul.f32 %v583, %v585
    %v587 = vadd.f32 %v583, %v586
    %vm588 = vweird.f32 %v582
    %vm589 = vweird.f32 %v583
    %vm590 = vmor %vm588, %vm589
    %v591 = vsel %vm590, %v583, %v587
    %v592 = vand.u32 2147483647, %v582
    %vm593 = vcmp.eq.f32.partialorder %v592, 8.507059e+37
    %v594 = vand.u32 %v582, 2147483648
    %v595 = vor.u32 1.1754944e-38, %v594
    %v596 = vsel %vm593, %v595, %v591
    %v597 = vmul.f32 1.0, %v596
    %v598 = vtanh.pop %v578
    %v599 = vmul.f32 %v597, %v546
    %601 = vrot.lane.b32.xlu0 %v598, 64
    %v602 = vpop.permute.xlu0 %601
    %v604 = vmul.f32 %v597, %v602
    %606 = vrot.lane.b32.xlu0 %v604, 32
    %v607 = vpop.permute.xlu0 %606
    %v609 = vadd.f32 %v599, %v607
    %v610 = vtanh.pop %v609
    %612 = vrot.lane.b32.xlu0 %v610, 64
    %v613 = vpop.permute.xlu0 %612
    %v615 = vmul.f32 %v597, %v613
    %617 = vrot.lane.b32.xlu0 %v615, 32
    %v618 = vpop.permute.xlu0 %617
    %v619 = vsel %vm236, %v618, 0
    %621 = vmatpush.msra.mxu0 0.0
    %622 = vmatpush.msra.mxu0 0.0
    %623 = vmatpush.msra.mxu0 0.0
    %624 = vmatpush.msra.mxu0 0.0
    %625 = vmatpush.msra.mxu0 0.0
    %626 = vmatpush.msra.mxu0 0.0
    %627 = vmatpush.msra.mxu0 0.0
    %628 = vmatpush.msra.mxu0 0.0
    %629 = vmatpush.msra.mxu0 0.0
    %630 = vmatpush.msra.mxu0 0.0
    %631 = vmatpush.msra.mxu0 0.0
    %632 = vmatpush.msra.mxu0 0.0
    %633 = vmatpush.msra.mxu0 %v201
    %634 = vmatpush.msra.mxu0 %v200
    %635 = vmatpush.msra.mxu0 %v199
    %636 = vmatpush.msra.mxu0 %v198
    %637 = vmatmul.f32.gmra.mxu0 %v619
    %v638 = vpop.f32.mrf.mxu0
    %v639 = vadd.f32 0.0, %v638
    %640 = vdwg.mxu0
    %v641 = vadd.f32 %v196, %v639
    %v642 = vxor.u32 %v641, 2147483648
    %v643 = vmul.f32 %v642, 1.442695
    %v644 = vpow.pop %v643
    %v645 = vadd.f32 %v644, 1.0
    %v646 = vrcp.pop %v645
    %v647 = vmul.f32 %v645, %v646
    %v648 = vsub.f32 1.0, %v647
    %v649 = vmul.f32 %v646, %v648
    %v650 = vadd.f32 %v646, %v649
    %vm651 = vweird.f32 %v645
    %vm652 = vweird.f32 %v646
    %vm653 = vmor %vm651, %vm652
    %v654 = vsel %vm653, %v646, %v650
    %v655 = vand.u32 2147483647, %v645
    %vm656 = vcmp.eq.f32.partialorder %v655, 8.507059e+37
    %v657 = vand.u32 %v645, 2147483648
    %v658 = vor.u32 1.1754944e-38, %v657
    %v659 = vsel %vm656, %v658, %v654
    %v660 = vmul.f32 1.0, %v659
    %v661 = vtanh.pop %v641
    %v662 = vmul.f32 %v660, %v609
    %664 = vrot.lane.b32.xlu0 %v661, 64
    %v665 = vpop.permute.xlu0 %664
    %v667 = vmul.f32 %v660, %v665
    %669 = vrot.lane.b32.xlu0 %v667, 32
    %v670 = vpop.permute.xlu0 %669
    %v672 = vadd.f32 %v662, %v670
    %v673 = vtanh.pop %v672
    %675 = vrot.lane.b32.xlu0 %v673, 64
    %v676 = vpop.permute.xlu0 %675
    %v678 = vmul.f32 %v660, %v676
    %v679 = vld [vmem:[%s4] sm:$0xff]
    %v680 = vld [vmem:[%s4 + $0x8] sm:$0xff]
    %v681 = vld [vmem:[%s4 + $0x10] sm:$0xff]
    %v682 = vld [vmem:[%s4 + $0x18] sm:$0xff]
    %v683 = vld [vmem:[%s6] sm:$0x1]
    %v685 = vperm.slane %v683, 0
    %688 = vrot.lane.b32.xlu0 %v678, 32
    %v689 = vpop.permute.xlu0 %688
    %v690 = vsel %vm236, %v689, 0
    %692 = vmatpush.msra.mxu0 0.0
    %693 = vmatpush.msra.mxu0 0.0
    %694 = vmatpush.msra.mxu0 0.0
    %695 = vmatpush.msra.mxu0 0.0
    %696 = vmatpush.msra.mxu0 0.0
    %697 = vmatpush.msra.mxu0 0.0
    %698 = vmatpush.msra.mxu0 0.0
    %699 = vmatpush.msra.mxu0 0.0
    %700 = vmatpush.msra.mxu0 0.0
    %701 = vmatpush.msra.mxu0 0.0
    %702 = vmatpush.msra.mxu0 0.0
    %703 = vmatpush.msra.mxu0 0.0
    %704 = vmatpush.msra.mxu0 %v682
    %705 = vmatpush.msra.mxu0 %v681
    %706 = vmatpush.msra.mxu0 %v680
    %707 = vmatpush.msra.mxu0 %v679
    %708 = vmatmul.f32.gmra.mxu0 %v237
    %v709 = vpop.f32.mrf.mxu0
    %v710 = vadd.f32 %v685, %v709
    %711 = vmatmul.f32.gmra.mxu0 %v304
    %v712 = vpop.f32.mrf.mxu0
    %v713 = vadd.f32 %v685, %v712
    %714 = vmatmul.f32.gmra.mxu0 %v367
    %v715 = vpop.f32.mrf.mxu0
    %v716 = vadd.f32 %v685, %v715
    %717 = vmatmul.f32.gmra.mxu0 %v430
    %v718 = vpop.f32.mrf.mxu0
    %v719 = vadd.f32 %v685, %v718
    %720 = vmatmul.f32.gmra.mxu0 %v493
    %v721 = vpop.f32.mrf.mxu0
    %v722 = vadd.f32 %v685, %v721
    %723 = vmatmul.f32.gmra.mxu0 %v556
    %v724 = vpop.f32.mrf.mxu0
    %v725 = vadd.f32 %v685, %v724
    %726 = vmatmul.f32.gmra.mxu0 %v619
    %v727 = vpop.f32.mrf.mxu0
    %v728 = vadd.f32 %v685, %v727
    %729 = vmatmul.f32.gmra.mxu0 %v690
    %v730 = vpop.f32.mrf.mxu0
    %v731 = vadd.f32 %v685, %v730
    %732 = vdwg.mxu0
    %v733 = vld [vmem:[%s5] sm:$0xff]
    %v734 = vld [vmem:[%s5 + $0x8] sm:$0xff]
    %v735 = vld [vmem:[%s5 + $0x10] sm:$0xff]
    %v736 = vld [vmem:[%s5 + $0x18] sm:$0xff]
    %v737 = vxor.u32 %v710, 2147483648
    %v738 = vmul.f32 %v737, 1.442695
    %v739 = vpow.pop %v738
    %v740 = vadd.f32 %v739, 1.0
    %v741 = vrcp.pop %v740
    %v742 = vmul.f32 %v740, %v741
    %v743 = vsub.f32 1.0, %v742
    %v744 = vmul.f32 %v741, %v743
    %v745 = vadd.f32 %v741, %v744
    %vm746 = vweird.f32 %v740
    %vm747 = vweird.f32 %v741
    %vm748 = vmor %vm746, %vm747
    %v749 = vsel %vm748, %v741, %v745
    %v750 = vand.u32 2147483647, %v740
    %vm751 = vcmp.eq.f32.partialorder %v750, 8.507059e+37
    %v752 = vand.u32 %v740, 2147483648
    %v753 = vor.u32 1.1754944e-38, %v752
    %v754 = vsel %vm751, %v753, %v749
    %v755 = vmul.f32 1.0, %v754
    %v756 = vtanh.pop %v710
    %758 = vrot.lane.b32.xlu0 %v756, 64
    %v759 = vpop.permute.xlu0 %758
    %v761 = vmul.f32 %v755, %v759
    %v762 = vtanh.pop %v761
    %764 = vrot.lane.b32.xlu0 %v762, 96
    %v765 = vpop.permute.xlu0 %764
    %v767 = vmul.f32 %v755, %v765
    %769 = vrot.lane.b32.xlu0 %v767, 32
    %v770 = vpop.permute.xlu0 %769
    %v771 = vsel %vm236, %v770, 0
    %773 = vmatpush.msra.mxu0 0.0
    %774 = vmatpush.msra.mxu0 0.0
    %775 = vmatpush.msra.mxu0 0.0
    %776 = vmatpush.msra.mxu0 0.0
    %777 = vmatpush.msra.mxu0 0.0
    %778 = vmatpush.msra.mxu0 0.0
    %779 = vmatpush.msra.mxu0 0.0
    %780 = vmatpush.msra.mxu0 0.0
    %781 = vmatpush.msra.mxu0 0.0
    %782 = vmatpush.msra.mxu0 0.0
    %783 = vmatpush.msra.mxu0 0.0
    %784 = vmatpush.msra.mxu0 0.0
    %785 = vmatpush.msra.mxu0 %v736
    %786 = vmatpush.msra.mxu0 %v735
    %787 = vmatpush.msra.mxu0 %v734
    %788 = vmatpush.msra.mxu0 %v733
    %789 = vmatmul.f32.gmra.mxu0 %v771
    %v790 = vpop.f32.mrf.mxu0
    %v791 = vadd.f32 0.0, %v790
    %792 = vdwg.mxu0
    %v793 = vadd.f32 %v713, %v791
    %v794 = vxor.u32 %v793, 2147483648
    %v795 = vmul.f32 %v794, 1.442695
    %v796 = vpow.pop %v795
    %v797 = vadd.f32 %v796, 1.0
    %v798 = vrcp.pop %v797
    %v799 = vmul.f32 %v797, %v798
    %v800 = vsub.f32 1.0, %v799
    %v801 = vmul.f32 %v798, %v800
    %v802 = vadd.f32 %v798, %v801
    %vm803 = vweird.f32 %v797
    %vm804 = vweird.f32 %v798
    %vm805 = vmor %vm803, %vm804
    %v806 = vsel %vm805, %v798, %v802
    %v807 = vand.u32 2147483647, %v797
    %vm808 = vcmp.eq.f32.partialorder %v807, 8.507059e+37
    %v809 = vand.u32 %v797, 2147483648
    %v810 = vor.u32 1.1754944e-38, %v809
    %v811 = vsel %vm808, %v810, %v806
    %v812 = vmul.f32 1.0, %v811
    %v813 = vtanh.pop %v793
    %815 = vrot.lane.b32.xlu0 %v761, 32
    %v816 = vpop.permute.xlu0 %815
    %v818 = vmul.f32 %v812, %v816
    %820 = vrot.lane.b32.xlu0 %v813, 64
    %v821 = vpop.permute.xlu0 %820
    %v823 = vmul.f32 %v812, %v821
    %825 = vrot.lane.b32.xlu0 %v823, 32
    %v826 = vpop.permute.xlu0 %825
    %v828 = vadd.f32 %v818, %v826
    %v829 = vtanh.pop %v828
    %831 = vrot.lane.b32.xlu0 %v829, 64
    %v832 = vpop.permute.xlu0 %831
    %v834 = vmul.f32 %v812, %v832
    %836 = vrot.lane.b32.xlu0 %v834, 32
    %v837 = vpop.permute.xlu0 %836
    %v838 = vsel %vm236, %v837, 0
    %840 = vmatpush.msra.mxu0 0.0
    %841 = vmatpush.msra.mxu0 0.0
    %842 = vmatpush.msra.mxu0 0.0
    %843 = vmatpush.msra.mxu0 0.0
    %844 = vmatpush.msra.mxu0 0.0
    %845 = vmatpush.msra.mxu0 0.0
    %846 = vmatpush.msra.mxu0 0.0
    %847 = vmatpush.msra.mxu0 0.0
    %848 = vmatpush.msra.mxu0 0.0
    %849 = vmatpush.msra.mxu0 0.0
    %850 = vmatpush.msra.mxu0 0.0
    %851 = vmatpush.msra.mxu0 0.0
    %852 = vmatpush.msra.mxu0 %v736
    %853 = vmatpush.msra.mxu0 %v735
    %854 = vmatpush.msra.mxu0 %v734
    %855 = vmatpush.msra.mxu0 %v733
    %856 = vmatmul.f32.gmra.mxu0 %v838
    %v857 = vpop.f32.mrf.mxu0
    %v858 = vadd.f32 0.0, %v857
    %859 = vdwg.mxu0
    %v860 = vadd.f32 %v716, %v858
    %v861 = vxor.u32 %v860, 2147483648
    %v862 = vmul.f32 %v861, 1.442695
    %v863 = vpow.pop %v862
    %v864 = vadd.f32 %v863, 1.0
    %v865 = vrcp.pop %v864
    %v866 = vmul.f32 %v864, %v865
    %v867 = vsub.f32 1.0, %v866
    %v868 = vmul.f32 %v865, %v867
    %v869 = vadd.f32 %v865, %v868
    %vm870 = vweird.f32 %v864
    %vm871 = vweird.f32 %v865
    %vm872 = vmor %vm870, %vm871
    %v873 = vsel %vm872, %v865, %v869
    %v874 = vand.u32 2147483647, %v864
    %vm875 = vcmp.eq.f32.partialorder %v874, 8.507059e+37
    %v876 = vand.u32 %v864, 2147483648
    %v877 = vor.u32 1.1754944e-38, %v876
    %v878 = vsel %vm875, %v877, %v873
    %v879 = vmul.f32 1.0, %v878
    %v880 = vtanh.pop %v860
    %v881 = vmul.f32 %v879, %v828
    %883 = vrot.lane.b32.xlu0 %v880, 64
    %v884 = vpop.permute.xlu0 %883
    %v886 = vmul.f32 %v879, %v884
    %888 = vrot.lane.b32.xlu0 %v886, 32
    %v889 = vpop.permute.xlu0 %888
    %v891 = vadd.f32 %v881, %v889
    %v892 = vtanh.pop %v891
    %894 = vrot.lane.b32.xlu0 %v892, 64
    %v895 = vpop.permute.xlu0 %894
    %v897 = vmul.f32 %v879, %v895
    %899 = vrot.lane.b32.xlu0 %v897, 32
    %v900 = vpop.permute.xlu0 %899
    %v901 = vsel %vm236, %v900, 0
    %903 = vmatpush.msra.mxu0 0.0
    %904 = vmatpush.msra.mxu0 0.0
    %905 = vmatpush.msra.mxu0 0.0
    %906 = vmatpush.msra.mxu0 0.0
    %907 = vmatpush.msra.mxu0 0.0
    %908 = vmatpush.msra.mxu0 0.0
    %909 = vmatpush.msra.mxu0 0.0
    %910 = vmatpush.msra.mxu0 0.0
    %911 = vmatpush.msra.mxu0 0.0
    %912 = vmatpush.msra.mxu0 0.0
    %913 = vmatpush.msra.mxu0 0.0
    %914 = vmatpush.msra.mxu0 0.0
    %915 = vmatpush.msra.mxu0 %v736
    %916 = vmatpush.msra.mxu0 %v735
    %917 = vmatpush.msra.mxu0 %v734
    %918 = vmatpush.msra.mxu0 %v733
    %919 = vmatmul.f32.gmra.mxu0 %v901
    %v920 = vpop.f32.mrf.mxu0
    %v921 = vadd.f32 0.0, %v920
    %922 = vdwg.mxu0
    %v923 = vadd.f32 %v719, %v921
    %v924 = vxor.u32 %v923, 2147483648
    %v925 = vmul.f32 %v924, 1.442695
    %v926 = vpow.pop %v925
    %v927 = vadd.f32 %v926, 1.0
    %v928 = vrcp.pop %v927
    %v929 = vmul.f32 %v927, %v928
    %v930 = vsub.f32 1.0, %v929
    %v931 = vmul.f32 %v928, %v930
    %v932 = vadd.f32 %v928, %v931
    %vm933 = vweird.f32 %v927
    %vm934 = vweird.f32 %v928
    %vm935 = vmor %vm933, %vm934
    %v936 = vsel %vm935, %v928, %v932
    %v937 = vand.u32 2147483647, %v927
    %vm938 = vcmp.eq.f32.partialorder %v937, 8.507059e+37
    %v939 = vand.u32 %v927, 2147483648
    %v940 = vor.u32 1.1754944e-38, %v939
    %v941 = vsel %vm938, %v940, %v936
    %v942 = vmul.f32 1.0, %v941
    %v943 = vtanh.pop %v923
    %v944 = vmul.f32 %v942, %v891
    %946 = vrot.lane.b32.xlu0 %v943, 64
    %v947 = vpop.permute.xlu0 %946
    %v949 = vmul.f32 %v942, %v947
    %951 = vrot.lane.b32.xlu0 %v949, 32
    %v952 = vpop.permute.xlu0 %951
    %v954 = vadd.f32 %v944, %v952
    %v955 = vtanh.pop %v954
    %957 = vrot.lane.b32.xlu0 %v955, 64
    %v958 = vpop.permute.xlu0 %957
    %v960 = vmul.f32 %v942, %v958
    %962 = vrot.lane.b32.xlu0 %v960, 32
    %v963 = vpop.permute.xlu0 %962
    %v964 = vsel %vm236, %v963, 0
    %966 = vmatpush.msra.mxu0 0.0
    %967 = vmatpush.msra.mxu0 0.0
    %968 = vmatpush.msra.mxu0 0.0
    %969 = vmatpush.msra.mxu0 0.0
    %970 = vmatpush.msra.mxu0 0.0
    %971 = vmatpush.msra.mxu0 0.0
    %972 = vmatpush.msra.mxu0 0.0
    %973 = vmatpush.msra.mxu0 0.0
    %974 = vmatpush.msra.mxu0 0.0
    %975 = vmatpush.msra.mxu0 0.0
    %976 = vmatpush.msra.mxu0 0.0
    %977 = vmatpush.msra.mxu0 0.0
    %978 = vmatpush.msra.mxu0 %v736
    %979 = vmatpush.msra.mxu0 %v735
    %980 = vmatpush.msra.mxu0 %v734
    %981 = vmatpush.msra.mxu0 %v733
    %982 = vmatmul.f32.gmra.mxu0 %v964
    %v983 = vpop.f32.mrf.mxu0
    %v984 = vadd.f32 0.0, %v983
    %985 = vdwg.mxu0
    %v986 = vadd.f32 %v722, %v984
    %v987 = vxor.u32 %v986, 2147483648
    %v988 = vmul.f32 %v987, 1.442695
    %v989 = vpow.pop %v988
    %v990 = vadd.f32 %v989, 1.0
    %v991 = vrcp.pop %v990
    %v992 = vmul.f32 %v990, %v991
    %v993 = vsub.f32 1.0, %v992
    %v994 = vmul.f32 %v991, %v993
    %v995 = vadd.f32 %v991, %v994
    %vm996 = vweird.f32 %v990
    %vm997 = vweird.f32 %v991
    %vm998 = vmor %vm996, %vm997
    %v999 = vsel %vm998, %v991, %v995
    %v1000 = vand.u32 2147483647, %v990
    %vm1001 = vcmp.eq.f32.partialorder %v1000, 8.507059e+37
    %v1002 = vand.u32 %v990, 2147483648
    %v1003 = vor.u32 1.1754944e-38, %v1002
    %v1004 = vsel %vm1001, %v1003, %v999
    %v1005 = vmul.f32 1.0, %v1004
    %v1006 = vtanh.pop %v986
    %v1007 = vmul.f32 %v1005, %v954
    %1009 = vrot.lane.b32.xlu0 %v1006, 64
    %v1010 = vpop.permute.xlu0 %1009
    %v1012 = vmul.f32 %v1005, %v1010
    %1014 = vrot.lane.b32.xlu0 %v1012, 32
    %v1015 = vpop.permute.xlu0 %1014
    %v1017 = vadd.f32 %v1007, %v1015
    %v1018 = vtanh.pop %v1017
    %1020 = vrot.lane.b32.xlu0 %v1018, 64
    %v1021 = vpop.permute.xlu0 %1020
    %v1023 = vmul.f32 %v1005, %v1021
    %1025 = vrot.lane.b32.xlu0 %v1023, 32
    %v1026 = vpop.permute.xlu0 %1025
    %v1027 = vsel %vm236, %v1026, 0
    %1029 = vmatpush.msra.mxu0 0.0
    %1030 = vmatpush.msra.mxu0 0.0
    %1031 = vmatpush.msra.mxu0 0.0
    %1032 = vmatpush.msra.mxu0 0.0
    %1033 = vmatpush.msra.mxu0 0.0
    %1034 = vmatpush.msra.mxu0 0.0
    %1035 = vmatpush.msra.mxu0 0.0
    %1036 = vmatpush.msra.mxu0 0.0
    %1037 = vmatpush.msra.mxu0 0.0
    %1038 = vmatpush.msra.mxu0 0.0
    %1039 = vmatpush.msra.mxu0 0.0
    %1040 = vmatpush.msra.mxu0 0.0
    %1041 = vmatpush.msra.mxu0 %v736
    %1042 = vmatpush.msra.mxu0 %v735
    %1043 = vmatpush.msra.mxu0 %v734
    %1044 = vmatpush.msra.mxu0 %v733
    %1045 = vmatmul.f32.gmra.mxu0 %v1027
    %v1046 = vpop.f32.mrf.mxu0
    %v1047 = vadd.f32 0.0, %v1046
    %1048 = vdwg.mxu0
    %v1049 = vadd.f32 %v725, %v1047
    %v1050 = vxor.u32 %v1049, 2147483648
    %v1051 = vmul.f32 %v1050, 1.442695
    %v1052 = vpow.pop %v1051
    %v1053 = vadd.f32 %v1052, 1.0
    %v1054 = vrcp.pop %v1053
    %v1055 = vmul.f32 %v1053, %v1054
    %v1056 = vsub.f32 1.0, %v1055
    %v1057 = vmul.f32 %v1054, %v1056
    %v1058 = vadd.f32 %v1054, %v1057
    %vm1059 = vweird.f32 %v1053
    %vm1060 = vweird.f32 %v1054
    %vm1061 = vmor %vm1059, %vm1060
    %v1062 = vsel %vm1061, %v1054, %v1058
    %v1063 = vand.u32 2147483647, %v1053
    %vm1064 = vcmp.eq.f32.partialorder %v1063, 8.507059e+37
    %v1065 = vand.u32 %v1053, 2147483648
    %v1066 = vor.u32 1.1754944e-38, %v1065
    %v1067 = vsel %vm1064, %v1066, %v1062
    %v1068 = vmul.f32 1.0, %v1067
    %v1069 = vtanh.pop %v1049
    %v1070 = vmul.f32 %v1068, %v1017
    %1072 = vrot.lane.b32.xlu0 %v1069, 64
    %v1073 = vpop.permute.xlu0 %1072
    %v1075 = vmul.f32 %v1068, %v1073
    %1077 = vrot.lane.b32.xlu0 %v1075, 32
    %v1078 = vpop.permute.xlu0 %1077
    %v1080 = vadd.f32 %v1070, %v1078
    %v1081 = vtanh.pop %v1080
    %1083 = vrot.lane.b32.xlu0 %v1081, 64
    %v1084 = vpop.permute.xlu0 %1083
    %v1086 = vmul.f32 %v1068, %v1084
    %1088 = vrot.lane.b32.xlu0 %v1086, 32
    %v1089 = vpop.permute.xlu0 %1088
    %v1090 = vsel %vm236, %v1089, 0
    %1092 = vmatpush.msra.mxu0 0.0
    %1093 = vmatpush.msra.mxu0 0.0
    %1094 = vmatpush.msra.mxu0 0.0
    %1095 = vmatpush.msra.mxu0 0.0
    %1096 = vmatpush.msra.mxu0 0.0
    %1097 = vmatpush.msra.mxu0 0.0
    %1098 = vmatpush.msra.mxu0 0.0
    %1099 = vmatpush.msra.mxu0 0.0
    %1100 = vmatpush.msra.mxu0 0.0
    %1101 = vmatpush.msra.mxu0 0.0
    %1102 = vmatpush.msra.mxu0 0.0
    %1103 = vmatpush.msra.mxu0 0.0
    %1104 = vmatpush.msra.mxu0 %v736
    %1105 = vmatpush.msra.mxu0 %v735
    %1106 = vmatpush.msra.mxu0 %v734
    %1107 = vmatpush.msra.mxu0 %v733
    %1108 = vmatmul.f32.gmra.mxu0 %v1090
    %v1109 = vpop.f32.mrf.mxu0
    %v1110 = vadd.f32 0.0, %v1109
    %1111 = vdwg.mxu0
    %v1112 = vadd.f32 %v728, %v1110
    %v1113 = vxor.u32 %v1112, 2147483648
    %v1114 = vmul.f32 %v1113, 1.442695
    %v1115 = vpow.pop %v1114
    %v1116 = vadd.f32 %v1115, 1.0
    %v1117 = vrcp.pop %v1116
    %v1118 = vmul.f32 %v1116, %v1117
    %v1119 = vsub.f32 1.0, %v1118
    %v1120 = vmul.f32 %v1117, %v1119
    %v1121 = vadd.f32 %v1117, %v1120
    %vm1122 = vweird.f32 %v1116
    %vm1123 = vweird.f32 %v1117
    %vm1124 = vmor %vm1122, %vm1123
    %v1125 = vsel %vm1124, %v1117, %v1121
    %v1126 = vand.u32 2147483647, %v1116
    %vm1127 = vcmp.eq.f32.partialorder %v1126, 8.507059e+37
    %v1128 = vand.u32 %v1116, 2147483648
    %v1129 = vor.u32 1.1754944e-38, %v1128
    %v1130 = vsel %vm1127, %v1129, %v1125
    %v1131 = vmul.f32 1.0, %v1130
    %v1132 = vtanh.pop %v1112
    %v1133 = vmul.f32 %v1131, %v1080
    %1135 = vrot.lane.b32.xlu0 %v1132, 64
    %v1136 = vpop.permute.xlu0 %1135
    %v1138 = vmul.f32 %v1131, %v1136
    %1140 = vrot.lane.b32.xlu0 %v1138, 32
    %v1141 = vpop.permute.xlu0 %1140
    %v1143 = vadd.f32 %v1133, %v1141
    %v1144 = vtanh.pop %v1143
    %1146 = vrot.lane.b32.xlu0 %v1144, 64
    %v1147 = vpop.permute.xlu0 %1146
    %v1149 = vmul.f32 %v1131, %v1147
    %1151 = vrot.lane.b32.xlu0 %v1149, 32
    %v1152 = vpop.permute.xlu0 %1151
    %v1153 = vsel %vm236, %v1152, 0
    %1155 = vmatpush.msra.mxu0 0.0
    %1156 = vmatpush.msra.mxu0 0.0
    %1157 = vmatpush.msra.mxu0 0.0
    %1158 = vmatpush.msra.mxu0 0.0
    %1159 = vmatpush.msra.mxu0 0.0
    %1160 = vmatpush.msra.mxu0 0.0
    %1161 = vmatpush.msra.mxu0 0.0
    %1162 = vmatpush.msra.mxu0 0.0
    %1163 = vmatpush.msra.mxu0 0.0
    %1164 = vmatpush.msra.mxu0 0.0
    %1165 = vmatpush.msra.mxu0 0.0
    %1166 = vmatpush.msra.mxu0 0.0
    %1167 = vmatpush.msra.mxu0 %v736
    %1168 = vmatpush.msra.mxu0 %v735
    %1169 = vmatpush.msra.mxu0 %v734
    %1170 = vmatpush.msra.mxu0 %v733
    %1171 = vmatmul.f32.gmra.mxu0 %v1153
    %v1172 = vpop.f32.mrf.mxu0
    %v1173 = vadd.f32 0.0, %v1172
    %1174 = vdwg.mxu0
    %v1175 = vadd.f32 %v731, %v1173
    %v1176 = vxor.u32 %v1175, 2147483648
    %v1177 = vmul.f32 %v1176, 1.442695
    %v1178 = vpow.pop %v1177
    %v1179 = vadd.f32 %v1178, 1.0
    %v1180 = vrcp.pop %v1179
    %v1181 = vmul.f32 %v1179, %v1180
    %v1182 = vsub.f32 1.0, %v1181
    %v1183 = vmul.f32 %v1180, %v1182
    %v1184 = vadd.f32 %v1180, %v1183
    %vm1185 = vweird.f32 %v1179
    %vm1186 = vweird.f32 %v1180
    %vm1187 = vmor %vm1185, %vm1186
    %v1188 = vsel %vm1187, %v1180, %v1184
    %v1189 = vand.u32 2147483647, %v1179
    %vm1190 = vcmp.eq.f32.partialorder %v1189, 8.507059e+37
    %v1191 = vand.u32 %v1179, 2147483648
    %v1192 = vor.u32 1.1754944e-38, %v1191
    %v1193 = vsel %vm1190, %v1192, %v1188
    %v1194 = vmul.f32 1.0, %v1193
    %v1195 = vtanh.pop %v1175
    %v1196 = vmul.f32 %v1194, %v1143
    %1198 = vrot.lane.b32.xlu0 %v1195, 64
    %v1199 = vpop.permute.xlu0 %1198
    %v1201 = vmul.f32 %v1194, %v1199
    %1203 = vrot.lane.b32.xlu0 %v1201, 32
    %v1204 = vpop.permute.xlu0 %1203
    %v1206 = vadd.f32 %v1196, %v1204
    %v1207 = vtanh.pop %v1206
    %1209 = vrot.lane.b32.xlu0 %v1207, 64
    %v1210 = vpop.permute.xlu0 %1209
    %v1212 = vmul.f32 %v1194, %v1210
    %v1213 = vld [vmem:[%s7] sm:$0xff]
    %v1214 = vld [vmem:[%s7 + $0x8] sm:$0xff]
    %v1215 = vld [vmem:[%s7 + $0x10] sm:$0xff]
    %v1216 = vld [vmem:[%s7 + $0x18] sm:$0xff]
    %v1217 = vld [vmem:[%s9] sm:$0x1]
    %v1219 = vperm.slane %v1217, 0
    %1222 = vrot.lane.b32.xlu0 %v1212, 32
    %v1223 = vpop.permute.xlu0 %1222
    %v1224 = vsel %vm236, %v1223, 0
    %1226 = vmatpush.msra.mxu0 0.0
    %1227 = vmatpush.msra.mxu0 0.0
    %1228 = vmatpush.msra.mxu0 0.0
    %1229 = vmatpush.msra.mxu0 0.0
    %1230 = vmatpush.msra.mxu0 0.0
    %1231 = vmatpush.msra.mxu0 0.0
    %1232 = vmatpush.msra.mxu0 0.0
    %1233 = vmatpush.msra.mxu0 0.0
    %1234 = vmatpush.msra.mxu0 0.0
    %1235 = vmatpush.msra.mxu0 0.0
    %1236 = vmatpush.msra.mxu0 0.0
    %1237 = vmatpush.msra.mxu0 0.0
    %1238 = vmatpush.msra.mxu0 %v1216
    %1239 = vmatpush.msra.mxu0 %v1215
    %1240 = vmatpush.msra.mxu0 %v1214
    %1241 = vmatpush.msra.mxu0 %v1213
    %1242 = vmatmul.f32.gmra.mxu0 %v771
    %v1243 = vpop.f32.mrf.mxu0
    %v1244 = vadd.f32 %v1219, %v1243
    %1245 = vmatmul.f32.gmra.mxu0 %v838
    %v1246 = vpop.f32.mrf.mxu0
    %v1247 = vadd.f32 %v1219, %v1246
    %1248 = vmatmul.f32.gmra.mxu0 %v901
    %v1249 = vpop.f32.mrf.mxu0
    %v1250 = vadd.f32 %v1219, %v1249
    %1251 = vmatmul.f32.gmra.mxu0 %v964
    %v1252 = vpop.f32.mrf.mxu0
    %v1253 = vadd.f32 %v1219, %v1252
    %1254 = vmatmul.f32.gmra.mxu0 %v1027
    %v1255 = vpop.f32.mrf.mxu0
    %v1256 = vadd.f32 %v1219, %v1255
    %1257 = vmatmul.f32.gmra.mxu0 %v1090
    %v1258 = vpop.f32.mrf.mxu0
    %v1259 = vadd.f32 %v1219, %v1258
    %1260 = vmatmul.f32.gmra.mxu0 %v1153
    %v1261 = vpop.f32.mrf.mxu0
    %v1262 = vadd.f32 %v1219, %v1261
    %1263 = vmatmul.f32.gmra.mxu0 %v1224
    %v1264 = vpop.f32.mrf.mxu0
    %v1265 = vadd.f32 %v1219, %v1264
    %1266 = vdwg.mxu0
    %v1267 = vld [vmem:[%s8] sm:$0xf]
    %v1268 = vperm.slane %v1267, 0
    %v1269 = vperm.slane %v1267, 1
    %v1270 = vperm.slane %v1267, 2
    %v1271 = vperm.slane %v1267, 3
    %v1272 = vxor.u32 %v1244, 2147483648
    %v1273 = vmul.f32 %v1272, 1.442695
    %v1274 = vpow.pop %v1273
    %v1275 = vadd.f32 %v1274, 1.0
    %v1276 = vrcp.pop %v1275
    %v1277 = vmul.f32 %v1275, %v1276
    %v1278 = vsub.f32 1.0, %v1277
    %v1279 = vmul.f32 %v1276, %v1278
    %v1280 = vadd.f32 %v1276, %v1279
    %vm1281 = vweird.f32 %v1275
    %vm1282 = vweird.f32 %v1276
    %vm1283 = vmor %vm1281, %vm1282
    %v1284 = vsel %vm1283, %v1276, %v1280
    %v1285 = vand.u32 2147483647, %v1275
    %vm1286 = vcmp.eq.f32.partialorder %v1285, 8.507059e+37
    %v1287 = vand.u32 %v1275, 2147483648
    %v1288 = vor.u32 1.1754944e-38, %v1287
    %v1289 = vsel %vm1286, %v1288, %v1284
    %v1290 = vmul.f32 1.0, %v1289
    %v1291 = vtanh.pop %v1244
    %1293 = vrot.lane.b32.xlu0 %v1291, 120
    %v1294 = vpop.permute.xlu0 %1293
    %v1296 = vmul.f32 %v1290, %v1294
    %v1297 = vtanh.pop %v1296
    %1299 = vrot.lane.b32.xlu0 %v1297, 12
    %v1300 = vpop.permute.xlu0 %1299
    %v1302 = vmul.f32 %v1290, %v1300
    %1304 = vset.pattern.permute.xlu0 12
    %1305 = vperm.xlu0 %1304, %v1302
    %v1306 = vpop.permute.xlu0 %1305
    %v1308 = vmul.f32 %v1306, %v1268
    %1309 = vset.pattern.permute.xlu0 13
    %1310 = vperm.xlu0 %1309, %v1302
    %v1311 = vpop.permute.xlu0 %1310
    %v1313 = vmul.f32 %v1311, %v1269
    %v1314 = vadd.f32 %v1308, %v1313
    %1315 = vset.pattern.permute.xlu0 14
    %1316 = vperm.xlu0 %1315, %v1302
    %v1317 = vpop.permute.xlu0 %1316
    %v1319 = vmul.f32 %v1317, %v1270
    %v1320 = vadd.f32 %v1314, %v1319
    %1321 = vset.pattern.permute.xlu0 15
    %1322 = vperm.xlu0 %1321, %v1302
    %v1323 = vpop.permute.xlu0 %1322
    %v1325 = vmul.f32 %v1323, %v1271
    %v1326 = vadd.f32 %v1320, %v1325
    %v1327 = vadd.f32 %v1247, %v1326
    %v1328 = vxor.u32 %v1327, 2147483648
    %v1329 = vmul.f32 %v1328, 1.442695
    %v1330 = vpow.pop %v1329
    %v1331 = vadd.f32 %v1330, 1.0
    %v1332 = vrcp.pop %v1331
    %v1333 = vmul.f32 %v1331, %v1332
    %v1334 = vsub.f32 1.0, %v1333
    %v1335 = vmul.f32 %v1332, %v1334
    %v1336 = vadd.f32 %v1332, %v1335
    %vm1337 = vweird.f32 %v1331
    %vm1338 = vweird.f32 %v1332
    %vm1339 = vmor %vm1337, %vm1338
    %v1340 = vsel %vm1339, %v1332, %v1336
    %v1341 = vand.u32 2147483647, %v1331
    %vm1342 = vcmp.eq.f32.partialorder %v1341, 8.507059e+37
    %v1343 = vand.u32 %v1331, 2147483648
    %v1344 = vor.u32 1.1754944e-38, %v1343
    %v1345 = vsel %vm1342, %v1344, %v1340
    %v1346 = vmul.f32 1.0, %v1345
    %v1347 = vtanh.pop %v1327
    %1349 = vrot.lane.b32.xlu0 %v1296, 4
    %v1350 = vpop.permute.xlu0 %1349
    %v1352 = vmul.f32 %v1346, %v1350
    %1354 = vrot.lane.b32.xlu0 %v1347, 120
    %v1355 = vpop.permute.xlu0 %1354
    %v1357 = vmul.f32 %v1346, %v1355
    %1359 = vrot.lane.b32.xlu0 %v1357, 4
    %v1360 = vpop.permute.xlu0 %1359
    %v1362 = vadd.f32 %v1352, %v1360
    %v1363 = vtanh.pop %v1362
    %1365 = vrot.lane.b32.xlu0 %v1363, 8
    %v1366 = vpop.permute.xlu0 %1365
    %v1368 = vmul.f32 %v1346, %v1366
    %1370 = vset.pattern.permute.xlu0 12
    %1371 = vperm.xlu0 %1370, %v1368
    %v1372 = vpop.permute.xlu0 %1371
    %v1374 = vmul.f32 %v1372, %v1268
    %1375 = vset.pattern.permute.xlu0 13
    %1376 = vperm.xlu0 %1375, %v1368
    %v1377 = vpop.permute.xlu0 %1376
    %v1379 = vmul.f32 %v1377, %v1269
    %v1380 = vadd.f32 %v1374, %v1379
    %1381 = vset.pattern.permute.xlu0 14
    %1382 = vperm.xlu0 %1381, %v1368
    %v1383 = vpop.permute.xlu0 %1382
    %v1385 = vmul.f32 %v1383, %v1270
    %v1386 = vadd.f32 %v1380, %v1385
    %1387 = vset.pattern.permute.xlu0 15
    %1388 = vperm.xlu0 %1387, %v1368
    %v1389 = vpop.permute.xlu0 %1388
    %v1391 = vmul.f32 %v1389, %v1271
    %v1392 = vadd.f32 %v1386, %v1391
    %v1393 = vadd.f32 %v1250, %v1392
    %v1394 = vxor.u32 %v1393, 2147483648
    %v1395 = vmul.f32 %v1394, 1.442695
    %v1396 = vpow.pop %v1395
    %v1397 = vadd.f32 %v1396, 1.0
    %v1398 = vrcp.pop %v1397
    %v1399 = vmul.f32 %v1397, %v1398
    %v1400 = vsub.f32 1.0, %v1399
    %v1401 = vmul.f32 %v1398, %v1400
    %v1402 = vadd.f32 %v1398, %v1401
    %vm1403 = vweird.f32 %v1397
    %vm1404 = vweird.f32 %v1398
    %vm1405 = vmor %vm1403, %vm1404
    %v1406 = vsel %vm1405, %v1398, %v1402
    %v1407 = vand.u32 2147483647, %v1397
    %vm1408 = vcmp.eq.f32.partialorder %v1407, 8.507059e+37
    %v1409 = vand.u32 %v1397, 2147483648
    %v1410 = vor.u32 1.1754944e-38, %v1409
    %v1411 = vsel %vm1408, %v1410, %v1406
    %v1412 = vmul.f32 1.0, %v1411
    %v1413 = vtanh.pop %v1393
    %v1414 = vmul.f32 %v1412, %v1362
    %1416 = vrot.lane.b32.xlu0 %v1413, 120
    %v1417 = vpop.permute.xlu0 %1416
    %v1419 = vmul.f32 %v1412, %v1417
    %1421 = vrot.lane.b32.xlu0 %v1419, 4
    %v1422 = vpop.permute.xlu0 %1421
    %v1424 = vadd.f32 %v1414, %v1422
    %v1425 = vtanh.pop %v1424
    %1427 = vrot.lane.b32.xlu0 %v1425, 8
    %v1428 = vpop.permute.xlu0 %1427
    %v1430 = vmul.f32 %v1412, %v1428
    %1432 = vset.pattern.permute.xlu0 12
    %1433 = vperm.xlu0 %1432, %v1430
    %v1434 = vpop.permute.xlu0 %1433
    %v1436 = vmul.f32 %v1434, %v1268
    %1437 = vset.pattern.permute.xlu0 13
    %1438 = vperm.xlu0 %1437, %v1430
    %v1439 = vpop.permute.xlu0 %1438
    %v1441 = vmul.f32 %v1439, %v1269
    %v1442 = vadd.f32 %v1436, %v1441
    %1443 = vset.pattern.permute.xlu0 14
    %1444 = vperm.xlu0 %1443, %v1430
    %v1445 = vpop.permute.xlu0 %1444
    %v1447 = vmul.f32 %v1445, %v1270
    %v1448 = vadd.f32 %v1442, %v1447
    %1449 = vset.pattern.permute.xlu0 15
    %1450 = vperm.xlu0 %1449, %v1430
    %v1451 = vpop.permute.xlu0 %1450
    %v1453 = vmul.f32 %v1451, %v1271
    %v1454 = vadd.f32 %v1448, %v1453
    %v1455 = vadd.f32 %v1253, %v1454
    %v1456 = vxor.u32 %v1455, 2147483648
    %v1457 = vmul.f32 %v1456, 1.442695
    %v1458 = vpow.pop %v1457
    %v1459 = vadd.f32 %v1458, 1.0
    %v1460 = vrcp.pop %v1459
    %v1461 = vmul.f32 %v1459, %v1460
    %v1462 = vsub.f32 1.0, %v1461
    %v1463 = vmul.f32 %v1460, %v1462
    %v1464 = vadd.f32 %v1460, %v1463
    %vm1465 = vweird.f32 %v1459
    %vm1466 = vweird.f32 %v1460
    %vm1467 = vmor %vm1465, %vm1466
    %v1468 = vsel %vm1467, %v1460, %v1464
    %v1469 = vand.u32 2147483647, %v1459
    %vm1470 = vcmp.eq.f32.partialorder %v1469, 8.507059e+37
    %v1471 = vand.u32 %v1459, 2147483648
    %v1472 = vor.u32 1.1754944e-38, %v1471
    %v1473 = vsel %vm1470, %v1472, %v1468
    %v1474 = vmul.f32 1.0, %v1473
    %v1475 = vtanh.pop %v1455
    %v1476 = vmul.f32 %v1474, %v1424
    %1478 = vrot.lane.b32.xlu0 %v1475, 120
    %v1479 = vpop.permute.xlu0 %1478
    %v1481 = vmul.f32 %v1474, %v1479
    %1483 = vrot.lane.b32.xlu0 %v1481, 4
    %v1484 = vpop.permute.xlu0 %1483
    %v1486 = vadd.f32 %v1476, %v1484
    %v1487 = vtanh.pop %v1486
    %1489 = vrot.lane.b32.xlu0 %v1487, 8
    %v1490 = vpop.permute.xlu0 %1489
    %v1492 = vmul.f32 %v1474, %v1490
    %1494 = vset.pattern.permute.xlu0 12
    %1495 = vperm.xlu0 %1494, %v1492
    %v1496 = vpop.permute.xlu0 %1495
    %v1498 = vmul.f32 %v1496, %v1268
    %1499 = vset.pattern.permute.xlu0 13
    %1500 = vperm.xlu0 %1499, %v1492
    %v1501 = vpop.permute.xlu0 %1500
    %v1503 = vmul.f32 %v1501, %v1269
    %v1504 = vadd.f32 %v1498, %v1503
    %1505 = vset.pattern.permute.xlu0 14
    %1506 = vperm.xlu0 %1505, %v1492
    %v1507 = vpop.permute.xlu0 %1506
    %v1509 = vmul.f32 %v1507, %v1270
    %v1510 = vadd.f32 %v1504, %v1509
    %1511 = vset.pattern.permute.xlu0 15
    %1512 = vperm.xlu0 %1511, %v1492
    %v1513 = vpop.permute.xlu0 %1512
    %v1515 = vmul.f32 %v1513, %v1271
    %v1516 = vadd.f32 %v1510, %v1515
    %v1517 = vadd.f32 %v1256, %v1516
    %v1518 = vxor.u32 %v1517, 2147483648
    %v1519 = vmul.f32 %v1518, 1.442695
    %v1520 = vpow.pop %v1519
    %v1521 = vadd.f32 %v1520, 1.0
    %v1522 = vrcp.pop %v1521
    %v1523 = vmul.f32 %v1521, %v1522
    %v1524 = vsub.f32 1.0, %v1523
    %v1525 = vmul.f32 %v1522, %v1524
    %v1526 = vadd.f32 %v1522, %v1525
    %vm1527 = vweird.f32 %v1521
    %vm1528 = vweird.f32 %v1522
    %vm1529 = vmor %vm1527, %vm1528
    %v1530 = vsel %vm1529, %v1522, %v1526
    %v1531 = vand.u32 2147483647, %v1521
    %vm1532 = vcmp.eq.f32.partialorder %v1531, 8.507059e+37
    %v1533 = vand.u32 %v1521, 2147483648
    %v1534 = vor.u32 1.1754944e-38, %v1533
    %v1535 = vsel %vm1532, %v1534, %v1530
    %v1536 = vmul.f32 1.0, %v1535
    %v1537 = vtanh.pop %v1517
    %v1538 = vmul.f32 %v1536, %v1486
    %1540 = vrot.lane.b32.xlu0 %v1537, 120
    %v1541 = vpop.permute.xlu0 %1540
    %v1543 = vmul.f32 %v1536, %v1541
    %1545 = vrot.lane.b32.xlu0 %v1543, 4
    %v1546 = vpop.permute.xlu0 %1545
    %v1548 = vadd.f32 %v1538, %v1546
    %v1549 = vtanh.pop %v1548
    %1551 = vrot.lane.b32.xlu0 %v1549, 8
    %v1552 = vpop.permute.xlu0 %1551
    %v1554 = vmul.f32 %v1536, %v1552
    %1556 = vset.pattern.permute.xlu0 12
    %1557 = vperm.xlu0 %1556, %v1554
    %v1558 = vpop.permute.xlu0 %1557
    %v1560 = vmul.f32 %v1558, %v1268
    %1561 = vset.pattern.permute.xlu0 13
    %1562 = vperm.xlu0 %1561, %v1554
    %v1563 = vpop.permute.xlu0 %1562
    %v1565 = vmul.f32 %v1563, %v1269
    %v1566 = vadd.f32 %v1560, %v1565
    %1567 = vset.pattern.permute.xlu0 14
    %1568 = vperm.xlu0 %1567, %v1554
    %v1569 = vpop.permute.xlu0 %1568
    %v1571 = vmul.f32 %v1569, %v1270
    %v1572 = vadd.f32 %v1566, %v1571
    %1573 = vset.pattern.permute.xlu0 15
    %1574 = vperm.xlu0 %1573, %v1554
    %v1575 = vpop.permute.xlu0 %1574
    %v1577 = vmul.f32 %v1575, %v1271
    %v1578 = vadd.f32 %v1572, %v1577
    %v1579 = vadd.f32 %v1259, %v1578
    %v1580 = vxor.u32 %v1579, 2147483648
    %v1581 = vmul.f32 %v1580, 1.442695
    %v1582 = vpow.pop %v1581
    %v1583 = vadd.f32 %v1582, 1.0
    %v1584 = vrcp.pop %v1583
    %v1585 = vmul.f32 %v1583, %v1584
    %v1586 = vsub.f32 1.0, %v1585
    %v1587 = vmul.f32 %v1584, %v1586
    %v1588 = vadd.f32 %v1584, %v1587
    %vm1589 = vweird.f32 %v1583
    %vm1590 = vweird.f32 %v1584
    %vm1591 = vmor %vm1589, %vm1590
    %v1592 = vsel %vm1591, %v1584, %v1588
    %v1593 = vand.u32 2147483647, %v1583
    %vm1594 = vcmp.eq.f32.partialorder %v1593, 8.507059e+37
    %v1595 = vand.u32 %v1583, 2147483648
    %v1596 = vor.u32 1.1754944e-38, %v1595
    %v1597 = vsel %vm1594, %v1596, %v1592
    %v1598 = vmul.f32 1.0, %v1597
    %v1599 = vtanh.pop %v1579
    %v1600 = vmul.f32 %v1598, %v1548
    %1602 = vrot.lane.b32.xlu0 %v1599, 120
    %v1603 = vpop.permute.xlu0 %1602
    %v1605 = vmul.f32 %v1598, %v1603
    %1607 = vrot.lane.b32.xlu0 %v1605, 4
    %v1608 = vpop.permute.xlu0 %1607
    %v1610 = vadd.f32 %v1600, %v1608
    %v1611 = vtanh.pop %v1610
    %1613 = vrot.lane.b32.xlu0 %v1611, 8
    %v1614 = vpop.permute.xlu0 %1613
    %v1616 = vmul.f32 %v1598, %v1614
    %1618 = vset.pattern.permute.xlu0 12
    %1619 = vperm.xlu0 %1618, %v1616
    %v1620 = vpop.permute.xlu0 %1619
    %v1622 = vmul.f32 %v1620, %v1268
    %1623 = vset.pattern.permute.xlu0 13
    %1624 = vperm.xlu0 %1623, %v1616
    %v1625 = vpop.permute.xlu0 %1624
    %v1627 = vmul.f32 %v1625, %v1269
    %v1628 = vadd.f32 %v1622, %v1627
    %1629 = vset.pattern.permute.xlu0 14
    %1630 = vperm.xlu0 %1629, %v1616
    %v1631 = vpop.permute.xlu0 %1630
    %v1633 = vmul.f32 %v1631, %v1270
    %v1634 = vadd.f32 %v1628, %v1633
    %1635 = vset.pattern.permute.xlu0 15
    %1636 = vperm.xlu0 %1635, %v1616
    %v1637 = vpop.permute.xlu0 %1636
    %v1639 = vmul.f32 %v1637, %v1271
    %v1640 = vadd.f32 %v1634, %v1639
    %v1641 = vadd.f32 %v1262, %v1640
    %v1642 = vxor.u32 %v1641, 2147483648
    %v1643 = vmul.f32 %v1642, 1.442695
    %v1644 = vpow.pop %v1643
    %v1645 = vadd.f32 %v1644, 1.0
    %v1646 = vrcp.pop %v1645
    %v1647 = vmul.f32 %v1645, %v1646
    %v1648 = vsub.f32 1.0, %v1647
    %v1649 = vmul.f32 %v1646, %v1648
    %v1650 = vadd.f32 %v1646, %v1649
    %vm1651 = vweird.f32 %v1645
    %vm1652 = vweird.f32 %v1646
    %vm1653 = vmor %vm1651, %vm1652
    %v1654 = vsel %vm1653, %v1646, %v1650
    %v1655 = vand.u32 2147483647, %v1645
    %vm1656 = vcmp.eq.f32.partialorder %v1655, 8.507059e+37
    %v1657 = vand.u32 %v1645, 2147483648
    %v1658 = vor.u32 1.1754944e-38, %v1657
    %v1659 = vsel %vm1656, %v1658, %v1654
    %v1660 = vmul.f32 1.0, %v1659
    %v1661 = vtanh.pop %v1641
    %v1662 = vmul.f32 %v1660, %v1610
    %1664 = vrot.lane.b32.xlu0 %v1661, 120
    %v1665 = vpop.permute.xlu0 %1664
    %v1667 = vmul.f32 %v1660, %v1665
    %1669 = vrot.lane.b32.xlu0 %v1667, 4
    %v1670 = vpop.permute.xlu0 %1669
    %v1672 = vadd.f32 %v1662, %v1670
    %v1673 = vtanh.pop %v1672
    %1675 = vrot.lane.b32.xlu0 %v1673, 8
    %v1676 = vpop.permute.xlu0 %1675
    %v1678 = vmul.f32 %v1660, %v1676
    %1680 = vset.pattern.permute.xlu0 12
    %1681 = vperm.xlu0 %1680, %v1678
    %v1682 = vpop.permute.xlu0 %1681
    %v1684 = vmul.f32 %v1682, %v1268
    %1685 = vset.pattern.permute.xlu0 13
    %1686 = vperm.xlu0 %1685, %v1678
    %v1687 = vpop.permute.xlu0 %1686
    %v1689 = vmul.f32 %v1687, %v1269
    %v1690 = vadd.f32 %v1684, %v1689
    %1691 = vset.pattern.permute.xlu0 14
    %1692 = vperm.xlu0 %1691, %v1678
    %v1693 = vpop.permute.xlu0 %1692
    %v1695 = vmul.f32 %v1693, %v1270
    %v1696 = vadd.f32 %v1690, %v1695
    %1697 = vset.pattern.permute.xlu0 15
    %1698 = vperm.xlu0 %1697, %v1678
    %v1699 = vpop.permute.xlu0 %1698
    %v1701 = vmul.f32 %v1699, %v1271
    %v1702 = vadd.f32 %v1696, %v1701
    %v1703 = vadd.f32 %v1265, %v1702
    %v1704 = vxor.u32 %v1703, 2147483648
    %v1705 = vmul.f32 %v1704, 1.442695
    %v1706 = vpow.pop %v1705
    %v1707 = vadd.f32 %v1706, 1.0
    %v1708 = vrcp.pop %v1707
    %v1709 = vmul.f32 %v1707, %v1708
    %v1710 = vsub.f32 1.0, %v1709
    %v1711 = vmul.f32 %v1708, %v1710
    %v1712 = vadd.f32 %v1708, %v1711
    %vm1713 = vweird.f32 %v1707
    %vm1714 = vweird.f32 %v1708
    %vm1715 = vmor %vm1713, %vm1714
    %v1716 = vsel %vm1715, %v1708, %v1712
    %v1717 = vand.u32 2147483647, %v1707
    %vm1718 = vcmp.eq.f32.partialorder %v1717, 8.507059e+37
    %v1719 = vand.u32 %v1707, 2147483648
    %v1720 = vor.u32 1.1754944e-38, %v1719
    %v1721 = vsel %vm1718, %v1720, %v1716
    %v1722 = vmul.f32 1.0, %v1721
    %v1723 = vtanh.pop %v1703
    %v1724 = vmul.f32 %v1722, %v1672
    %1726 = vrot.lane.b32.xlu0 %v1723, 120
    %v1727 = vpop.permute.xlu0 %1726
    %v1729 = vmul.f32 %v1722, %v1727
    %1731 = vrot.lane.b32.xlu0 %v1729, 4
    %v1732 = vpop.permute.xlu0 %1731
    %v1734 = vadd.f32 %v1724, %v1732
    %v1735 = vtanh.pop %v1734
    %1737 = vrot.lane.b32.xlu0 %v1735, 8
    %v1738 = vpop.permute.xlu0 %1737
    %v1740 = vmul.f32 %v1722, %v1738
    %v1741 = vld [vmem:[%s10] sm:$0xf]
    %v1742 = vld [vmem:[%s12] sm:$0x1]
    %v1744 = vperm.slane %v1742, 0
    %1747 = vrot.lane.b32.xlu0 %v1302, 116
    %v1748 = vpop.permute.xlu0 %1747
    %1749 = vrot.lane.b32.xlu0 %v1368, 116
    %v1750 = vpop.permute.xlu0 %1749
    %1751 = vrot.lane.b32.xlu0 %v1430, 116
    %v1752 = vpop.permute.xlu0 %1751
    %1753 = vrot.lane.b32.xlu0 %v1492, 116
    %v1754 = vpop.permute.xlu0 %1753
    %1755 = vrot.lane.b32.xlu0 %v1554, 116
    %v1756 = vpop.permute.xlu0 %1755
    %1757 = vrot.lane.b32.xlu0 %v1616, 116
    %v1758 = vpop.permute.xlu0 %1757
    %1759 = vrot.lane.b32.xlu0 %v1678, 116
    %v1760 = vpop.permute.xlu0 %1759
    %1761 = vrot.lane.b32.xlu0 %v1740, 116
    %v1762 = vpop.permute.xlu0 %1761
    %v1763 = vsel %vm74, %v1748, 0
    %v1765 = vsel %vm74, %v1750, 0
    %v1767 = vsel %vm74, %v1752, 0
    %v1769 = vsel %vm74, %v1754, 0
    %v1771 = vsel %vm74, %v1756, 0
    %v1773 = vsel %vm74, %v1758, 0
    %v1775 = vsel %vm74, %v1760, 0
    %v1777 = vsel %vm74, %v1762, 0
    %v1780 = vsel %vm153, %v1741, 0
    %1782 = vmatpush.msra.mxu0 0.0
    %1783 = vmatpush.msra.mxu0 0.0
    %1784 = vmatpush.msra.mxu0 0.0
    %1785 = vmatpush.msra.mxu0 0.0
    %1786 = vmatpush.msra.mxu0 0.0
    %1787 = vmatpush.msra.mxu0 0.0
    %1788 = vmatpush.msra.mxu0 0.0
    %1789 = vmatpush.msra.mxu0 0.0
    %1790 = vmatpush.msra.mxu0 0.0
    %1791 = vmatpush.msra.mxu0 0.0
    %1792 = vmatpush.msra.mxu0 0.0
    %1793 = vmatpush.msra.mxu0 0.0
    %1794 = vmatpush.msra.mxu0 0.0
    %1795 = vmatpush.msra.mxu0 0.0
    %1796 = vmatpush.msra.mxu0 0.0
    %1797 = vmatpush.msra.mxu0 %v1780
    %1798 = vmatmul.f32.gmra.mxu0 %v1763
    %v1799 = vpop.f32.mrf.mxu0
    %v1800 = vadd.f32 %v1744, %v1799
    %1801 = vmatmul.f32.gmra.mxu0 %v1765
    %v1802 = vpop.f32.mrf.mxu0
    %v1803 = vadd.f32 %v1744, %v1802
    %1804 = vmatmul.f32.gmra.mxu0 %v1767
    %v1805 = vpop.f32.mrf.mxu0
    %v1806 = vadd.f32 %v1744, %v1805
    %1807 = vmatmul.f32.gmra.mxu0 %v1769
    %v1808 = vpop.f32.mrf.mxu0
    %v1809 = vadd.f32 %v1744, %v1808
    %1810 = vmatmul.f32.gmra.mxu0 %v1771
    %v1811 = vpop.f32.mrf.mxu0
    %v1812 = vadd.f32 %v1744, %v1811
    %1813 = vmatmul.f32.gmra.mxu0 %v1773
    %v1814 = vpop.f32.mrf.mxu0
    %v1815 = vadd.f32 %v1744, %v1814
    %1816 = vmatmul.f32.gmra.mxu0 %v1775
    %v1817 = vpop.f32.mrf.mxu0
    %v1818 = vadd.f32 %v1744, %v1817
    %1819 = vmatmul.f32.gmra.mxu0 %v1777
    %v1820 = vpop.f32.mrf.mxu0
    %v1821 = vadd.f32 %v1744, %v1820
    %1822 = vdwg.mxu0
    %v1823 = vld [vmem:[%s11] sm:$0xf]
    %v1824 = vperm.slane %v1823, 0
    %v1825 = vperm.slane %v1823, 1
    %v1826 = vperm.slane %v1823, 2
    %v1827 = vperm.slane %v1823, 3
    %v1828 = vxor.u32 %v1800, 2147483648
    %v1829 = vmul.f32 %v1828, 1.442695
    %v1830 = vpow.pop %v1829
    %v1831 = vadd.f32 %v1830, 1.0
    %v1832 = vrcp.pop %v1831
    %v1833 = vmul.f32 %v1831, %v1832
    %v1834 = vsub.f32 1.0, %v1833
    %v1835 = vmul.f32 %v1832, %v1834
    %v1836 = vadd.f32 %v1832, %v1835
    %vm1837 = vweird.f32 %v1831
    %vm1838 = vweird.f32 %v1832
    %vm1839 = vmor %vm1837, %vm1838
    %v1840 = vsel %vm1839, %v1832, %v1836
    %v1841 = vand.u32 2147483647, %v1831
    %vm1842 = vcmp.eq.f32.partialorder %v1841, 8.507059e+37
    %v1843 = vand.u32 %v1831, 2147483648
    %v1844 = vor.u32 1.1754944e-38, %v1843
    %v1845 = vsel %vm1842, %v1844, %v1840
    %v1846 = vmul.f32 1.0, %v1845
    %v1847 = vtanh.pop %v1800
    %1849 = vrot.lane.b32.xlu0 %v1847, 120
    %v1850 = vpop.permute.xlu0 %1849
    %v1852 = vmul.f32 %v1846, %v1850
    %v1853 = vtanh.pop %v1852
    %1855 = vrot.lane.b32.xlu0 %v1853, 12
    %v1856 = vpop.permute.xlu0 %1855
    %v1858 = vmul.f32 %v1846, %v1856
    %1860 = vset.pattern.permute.xlu0 12
    %1861 = vperm.xlu0 %1860, %v1858
    %v1862 = vpop.permute.xlu0 %1861
    %v1864 = vmul.f32 %v1862, %v1824
    %1865 = vset.pattern.permute.xlu0 13
    %1866 = vperm.xlu0 %1865, %v1858
    %v1867 = vpop.permute.xlu0 %1866
    %v1869 = vmul.f32 %v1867, %v1825
    %v1870 = vadd.f32 %v1864, %v1869
    %1871 = vset.pattern.permute.xlu0 14
    %1872 = vperm.xlu0 %1871, %v1858
    %v1873 = vpop.permute.xlu0 %1872
    %v1875 = vmul.f32 %v1873, %v1826
    %v1876 = vadd.f32 %v1870, %v1875
    %1877 = vset.pattern.permute.xlu0 15
    %1878 = vperm.xlu0 %1877, %v1858
    %v1879 = vpop.permute.xlu0 %1878
    %v1881 = vmul.f32 %v1879, %v1827
    %v1882 = vadd.f32 %v1876, %v1881
    %v1883 = vadd.f32 %v1803, %v1882
    %v1884 = vxor.u32 %v1883, 2147483648
    %v1885 = vmul.f32 %v1884, 1.442695
    %v1886 = vpow.pop %v1885
    %v1887 = vadd.f32 %v1886, 1.0
    %v1888 = vrcp.pop %v1887
    %v1889 = vmul.f32 %v1887, %v1888
    %v1890 = vsub.f32 1.0, %v1889
    %v1891 = vmul.f32 %v1888, %v1890
    %v1892 = vadd.f32 %v1888, %v1891
    %vm1893 = vweird.f32 %v1887
    %vm1894 = vweird.f32 %v1888
    %vm1895 = vmor %vm1893, %vm1894
    %v1896 = vsel %vm1895, %v1888, %v1892
    %v1897 = vand.u32 2147483647, %v1887
    %vm1898 = vcmp.eq.f32.partialorder %v1897, 8.507059e+37
    %v1899 = vand.u32 %v1887, 2147483648
    %v1900 = vor.u32 1.1754944e-38, %v1899
    %v1901 = vsel %vm1898, %v1900, %v1896
    %v1902 = vmul.f32 1.0, %v1901
    %v1903 = vtanh.pop %v1883
    %1905 = vrot.lane.b32.xlu0 %v1852, 4
    %v1906 = vpop.permute.xlu0 %1905
    %v1908 = vmul.f32 %v1902, %v1906
    %1910 = vrot.lane.b32.xlu0 %v1903, 120
    %v1911 = vpop.permute.xlu0 %1910
    %v1913 = vmul.f32 %v1902, %v1911
    %1915 = vrot.lane.b32.xlu0 %v1913, 4
    %v1916 = vpop.permute.xlu0 %1915
    %v1918 = vadd.f32 %v1908, %v1916
    %v1919 = vtanh.pop %v1918
    %1921 = vrot.lane.b32.xlu0 %v1919, 8
    %v1922 = vpop.permute.xlu0 %1921
    %v1924 = vmul.f32 %v1902, %v1922
    %1926 = vset.pattern.permute.xlu0 12
    %1927 = vperm.xlu0 %1926, %v1924
    %v1928 = vpop.permute.xlu0 %1927
    %v1930 = vmul.f32 %v1928, %v1824
    %1931 = vset.pattern.permute.xlu0 13
    %1932 = vperm.xlu0 %1931, %v1924
    %v1933 = vpop.permute.xlu0 %1932
    %v1935 = vmul.f32 %v1933, %v1825
    %v1936 = vadd.f32 %v1930, %v1935
    %1937 = vset.pattern.permute.xlu0 14
    %1938 = vperm.xlu0 %1937, %v1924
    %v1939 = vpop.permute.xlu0 %1938
    %v1941 = vmul.f32 %v1939, %v1826
    %v1942 = vadd.f32 %v1936, %v1941
    %1943 = vset.pattern.permute.xlu0 15
    %1944 = vperm.xlu0 %1943, %v1924
    %v1945 = vpop.permute.xlu0 %1944
    %v1947 = vmul.f32 %v1945, %v1827
    %v1948 = vadd.f32 %v1942, %v1947
    %v1949 = vadd.f32 %v1806, %v1948
    %v1950 = vxor.u32 %v1949, 2147483648
    %v1951 = vmul.f32 %v1950, 1.442695
    %v1952 = vpow.pop %v1951
    %v1953 = vadd.f32 %v1952, 1.0
    %v1954 = vrcp.pop %v1953
    %v1955 = vmul.f32 %v1953, %v1954
    %v1956 = vsub.f32 1.0, %v1955
    %v1957 = vmul.f32 %v1954, %v1956
    %v1958 = vadd.f32 %v1954, %v1957
    %vm1959 = vweird.f32 %v1953
    %vm1960 = vweird.f32 %v1954
    %vm1961 = vmor %vm1959, %vm1960
    %v1962 = vsel %vm1961, %v1954, %v1958
    %v1963 = vand.u32 2147483647, %v1953
    %vm1964 = vcmp.eq.f32.partialorder %v1963, 8.507059e+37
    %v1965 = vand.u32 %v1953, 2147483648
    %v1966 = vor.u32 1.1754944e-38, %v1965
    %v1967 = vsel %vm1964, %v1966, %v1962
    %v1968 = vmul.f32 1.0, %v1967
    %v1969 = vtanh.pop %v1949
    %v1970 = vmul.f32 %v1968, %v1918
    %1972 = vrot.lane.b32.xlu0 %v1969, 120
    %v1973 = vpop.permute.xlu0 %1972
    %v1975 = vmul.f32 %v1968, %v1973
    %1977 = vrot.lane.b32.xlu0 %v1975, 4
    %v1978 = vpop.permute.xlu0 %1977
    %v1980 = vadd.f32 %v1970, %v1978
    %v1981 = vtanh.pop %v1980
    %1983 = vrot.lane.b32.xlu0 %v1981, 8
    %v1984 = vpop.permute.xlu0 %1983
    %v1986 = vmul.f32 %v1968, %v1984
    %1988 = vset.pattern.permute.xlu0 12
    %1989 = vperm.xlu0 %1988, %v1986
    %v1990 = vpop.permute.xlu0 %1989
    %v1992 = vmul.f32 %v1990, %v1824
    %1993 = vset.pattern.permute.xlu0 13
    %1994 = vperm.xlu0 %1993, %v1986
    %v1995 = vpop.permute.xlu0 %1994
    %v1997 = vmul.f32 %v1995, %v1825
    %v1998 = vadd.f32 %v1992, %v1997
    %1999 = vset.pattern.permute.xlu0 14
    %2000 = vperm.xlu0 %1999, %v1986
    %v2001 = vpop.permute.xlu0 %2000
    %v2003 = vmul.f32 %v2001, %v1826
    %v2004 = vadd.f32 %v1998, %v2003
    %2005 = vset.pattern.permute.xlu0 15
    %2006 = vperm.xlu0 %2005, %v1986
    %v2007 = vpop.permute.xlu0 %2006
    %v2009 = vmul.f32 %v2007, %v1827
    %v2010 = vadd.f32 %v2004, %v2009
    %v2011 = vadd.f32 %v1809, %v2010
    %v2012 = vxor.u32 %v2011, 2147483648
    %v2013 = vmul.f32 %v2012, 1.442695
    %v2014 = vpow.pop %v2013
    %v2015 = vadd.f32 %v2014, 1.0
    %v2016 = vrcp.pop %v2015
    %v2017 = vmul.f32 %v2015, %v2016
    %v2018 = vsub.f32 1.0, %v2017
    %v2019 = vmul.f32 %v2016, %v2018
    %v2020 = vadd.f32 %v2016, %v2019
    %vm2021 = vweird.f32 %v2015
    %vm2022 = vweird.f32 %v2016
    %vm2023 = vmor %vm2021, %vm2022
    %v2024 = vsel %vm2023, %v2016, %v2020
    %v2025 = vand.u32 2147483647, %v2015
    %vm2026 = vcmp.eq.f32.partialorder %v2025, 8.507059e+37
    %v2027 = vand.u32 %v2015, 2147483648
    %v2028 = vor.u32 1.1754944e-38, %v2027
    %v2029 = vsel %vm2026, %v2028, %v2024
    %v2030 = vmul.f32 1.0, %v2029
    %v2031 = vtanh.pop %v2011
    %v2032 = vmul.f32 %v2030, %v1980
    %2034 = vrot.lane.b32.xlu0 %v2031, 120
    %v2035 = vpop.permute.xlu0 %2034
    %v2037 = vmul.f32 %v2030, %v2035
    %2039 = vrot.lane.b32.xlu0 %v2037, 4
    %v2040 = vpop.permute.xlu0 %2039
    %v2042 = vadd.f32 %v2032, %v2040
    %v2043 = vtanh.pop %v2042
    %2045 = vrot.lane.b32.xlu0 %v2043, 8
    %v2046 = vpop.permute.xlu0 %2045
    %v2048 = vmul.f32 %v2030, %v2046
    %2050 = vset.pattern.permute.xlu0 12
    %2051 = vperm.xlu0 %2050, %v2048
    %v2052 = vpop.permute.xlu0 %2051
    %v2054 = vmul.f32 %v2052, %v1824
    %2055 = vset.pattern.permute.xlu0 13
    %2056 = vperm.xlu0 %2055, %v2048
    %v2057 = vpop.permute.xlu0 %2056
    %v2059 = vmul.f32 %v2057, %v1825
    %v2060 = vadd.f32 %v2054, %v2059
    %2061 = vset.pattern.permute.xlu0 14
    %2062 = vperm.xlu0 %2061, %v2048
    %v2063 = vpop.permute.xlu0 %2062
    %v2065 = vmul.f32 %v2063, %v1826
    %v2066 = vadd.f32 %v2060, %v2065
    %2067 = vset.pattern.permute.xlu0 15
    %2068 = vperm.xlu0 %2067, %v2048
    %v2069 = vpop.permute.xlu0 %2068
    %v2071 = vmul.f32 %v2069, %v1827
    %v2072 = vadd.f32 %v2066, %v2071
    %v2073 = vadd.f32 %v1812, %v2072
    %v2074 = vxor.u32 %v2073, 2147483648
    %v2075 = vmul.f32 %v2074, 1.442695
    %v2076 = vpow.pop %v2075
    %v2077 = vadd.f32 %v2076, 1.0
    %v2078 = vrcp.pop %v2077
    %v2079 = vmul.f32 %v2077, %v2078
    %v2080 = vsub.f32 1.0, %v2079
    %v2081 = vmul.f32 %v2078, %v2080
    %v2082 = vadd.f32 %v2078, %v2081
    %vm2083 = vweird.f32 %v2077
    %vm2084 = vweird.f32 %v2078
    %vm2085 = vmor %vm2083, %vm2084
    %v2086 = vsel %vm2085, %v2078, %v2082
    %v2087 = vand.u32 2147483647, %v2077
    %vm2088 = vcmp.eq.f32.partialorder %v2087, 8.507059e+37
    %v2089 = vand.u32 %v2077, 2147483648
    %v2090 = vor.u32 1.1754944e-38, %v2089
    %v2091 = vsel %vm2088, %v2090, %v2086
    %v2092 = vmul.f32 1.0, %v2091
    %v2093 = vtanh.pop %v2073
    %v2094 = vmul.f32 %v2092, %v2042
    %2096 = vrot.lane.b32.xlu0 %v2093, 120
    %v2097 = vpop.permute.xlu0 %2096
    %v2099 = vmul.f32 %v2092, %v2097
    %2101 = vrot.lane.b32.xlu0 %v2099, 4
    %v2102 = vpop.permute.xlu0 %2101
    %v2104 = vadd.f32 %v2094, %v2102
    %v2105 = vtanh.pop %v2104
    %2107 = vrot.lane.b32.xlu0 %v2105, 8
    %v2108 = vpop.permute.xlu0 %2107
    %v2110 = vmul.f32 %v2092, %v2108
    %2112 = vset.pattern.permute.xlu0 12
    %2113 = vperm.xlu0 %2112, %v2110
    %v2114 = vpop.permute.xlu0 %2113
    %v2116 = vmul.f32 %v2114, %v1824
    %2117 = vset.pattern.permute.xlu0 13
    %2118 = vperm.xlu0 %2117, %v2110
    %v2119 = vpop.permute.xlu0 %2118
    %v2121 = vmul.f32 %v2119, %v1825
    %v2122 = vadd.f32 %v2116, %v2121
    %2123 = vset.pattern.permute.xlu0 14
    %2124 = vperm.xlu0 %2123, %v2110
    %v2125 = vpop.permute.xlu0 %2124
    %v2127 = vmul.f32 %v2125, %v1826
    %v2128 = vadd.f32 %v2122, %v2127
    %2129 = vset.pattern.permute.xlu0 15
    %2130 = vperm.xlu0 %2129, %v2110
    %v2131 = vpop.permute.xlu0 %2130
    %v2133 = vmul.f32 %v2131, %v1827
    %v2134 = vadd.f32 %v2128, %v2133
    %v2135 = vadd.f32 %v1815, %v2134
    %v2136 = vxor.u32 %v2135, 2147483648
    %v2137 = vmul.f32 %v2136, 1.442695
    %v2138 = vpow.pop %v2137
    %v2139 = vadd.f32 %v2138, 1.0
    %v2140 = vrcp.pop %v2139
    %v2141 = vmul.f32 %v2139, %v2140
    %v2142 = vsub.f32 1.0, %v2141
    %v2143 = vmul.f32 %v2140, %v2142
    %v2144 = vadd.f32 %v2140, %v2143
    %vm2145 = vweird.f32 %v2139
    %vm2146 = vweird.f32 %v2140
    %vm2147 = vmor %vm2145, %vm2146
    %v2148 = vsel %vm2147, %v2140, %v2144
    %v2149 = vand.u32 2147483647, %v2139
    %vm2150 = vcmp.eq.f32.partialorder %v2149, 8.507059e+37
    %v2151 = vand.u32 %v2139, 2147483648
    %v2152 = vor.u32 1.1754944e-38, %v2151
    %v2153 = vsel %vm2150, %v2152, %v2148
    %v2154 = vmul.f32 1.0, %v2153
    %v2155 = vtanh.pop %v2135
    %v2156 = vmul.f32 %v2154, %v2104
    %2158 = vrot.lane.b32.xlu0 %v2155, 120
    %v2159 = vpop.permute.xlu0 %2158
    %v2161 = vmul.f32 %v2154, %v2159
    %2163 = vrot.lane.b32.xlu0 %v2161, 4
    %v2164 = vpop.permute.xlu0 %2163
    %v2166 = vadd.f32 %v2156, %v2164
    %v2167 = vtanh.pop %v2166
    %2169 = vrot.lane.b32.xlu0 %v2167, 8
    %v2170 = vpop.permute.xlu0 %2169
    %v2172 = vmul.f32 %v2154, %v2170
    %2174 = vset.pattern.permute.xlu0 12
    %2175 = vperm.xlu0 %2174, %v2172
    %v2176 = vpop.permute.xlu0 %2175
    %v2178 = vmul.f32 %v2176, %v1824
    %2179 = vset.pattern.permute.xlu0 13
    %2180 = vperm.xlu0 %2179, %v2172
    %v2181 = vpop.permute.xlu0 %2180
    %v2183 = vmul.f32 %v2181, %v1825
    %v2184 = vadd.f32 %v2178, %v2183
    %2185 = vset.pattern.permute.xlu0 14
    %2186 = vperm.xlu0 %2185, %v2172
    %v2187 = vpop.permute.xlu0 %2186
    %v2189 = vmul.f32 %v2187, %v1826
    %v2190 = vadd.f32 %v2184, %v2189
    %2191 = vset.pattern.permute.xlu0 15
    %2192 = vperm.xlu0 %2191, %v2172
    %v2193 = vpop.permute.xlu0 %2192
    %v2195 = vmul.f32 %v2193, %v1827
    %v2196 = vadd.f32 %v2190, %v2195
    %v2197 = vadd.f32 %v1818, %v2196
    %v2198 = vxor.u32 %v2197, 2147483648
    %v2199 = vmul.f32 %v2198, 1.442695
    %v2200 = vpow.pop %v2199
    %v2201 = vadd.f32 %v2200, 1.0
    %v2202 = vrcp.pop %v2201
    %v2203 = vmul.f32 %v2201, %v2202
    %v2204 = vsub.f32 1.0, %v2203
    %v2205 = vmul.f32 %v2202, %v2204
    %v2206 = vadd.f32 %v2202, %v2205
    %vm2207 = vweird.f32 %v2201
    %vm2208 = vweird.f32 %v2202
    %vm2209 = vmor %vm2207, %vm2208
    %v2210 = vsel %vm2209, %v2202, %v2206
    %v2211 = vand.u32 2147483647, %v2201
    %vm2212 = vcmp.eq.f32.partialorder %v2211, 8.507059e+37
    %v2213 = vand.u32 %v2201, 2147483648
    %v2214 = vor.u32 1.1754944e-38, %v2213
    %v2215 = vsel %vm2212, %v2214, %v2210
    %v2216 = vmul.f32 1.0, %v2215
    %v2217 = vtanh.pop %v2197
    %v2218 = vmul.f32 %v2216, %v2166
    %2220 = vrot.lane.b32.xlu0 %v2217, 120
    %v2221 = vpop.permute.xlu0 %2220
    %v2223 = vmul.f32 %v2216, %v2221
    %2225 = vrot.lane.b32.xlu0 %v2223, 4
    %v2226 = vpop.permute.xlu0 %2225
    %v2228 = vadd.f32 %v2218, %v2226
    %v2229 = vtanh.pop %v2228
    %2231 = vrot.lane.b32.xlu0 %v2229, 8
    %v2232 = vpop.permute.xlu0 %2231
    %v2234 = vmul.f32 %v2216, %v2232
    %2236 = vset.pattern.permute.xlu0 12
    %2237 = vperm.xlu0 %2236, %v2234
    %v2238 = vpop.permute.xlu0 %2237
    %v2240 = vmul.f32 %v2238, %v1824
    %2241 = vset.pattern.permute.xlu0 13
    %2242 = vperm.xlu0 %2241, %v2234
    %v2243 = vpop.permute.xlu0 %2242
    %v2245 = vmul.f32 %v2243, %v1825
    %v2246 = vadd.f32 %v2240, %v2245
    %2247 = vset.pattern.permute.xlu0 14
    %2248 = vperm.xlu0 %2247, %v2234
    %v2249 = vpop.permute.xlu0 %2248
    %v2251 = vmul.f32 %v2249, %v1826
    %v2252 = vadd.f32 %v2246, %v2251
    %2253 = vset.pattern.permute.xlu0 15
    %2254 = vperm.xlu0 %2253, %v2234
    %v2255 = vpop.permute.xlu0 %2254
    %v2257 = vmul.f32 %v2255, %v1827
    %v2258 = vadd.f32 %v2252, %v2257
    %v2259 = vadd.f32 %v1821, %v2258
    %v2260 = vxor.u32 %v2259, 2147483648
    %v2261 = vmul.f32 %v2260, 1.442695
    %v2262 = vpow.pop %v2261
    %v2263 = vadd.f32 %v2262, 1.0
    %v2264 = vrcp.pop %v2263
    %v2265 = vmul.f32 %v2263, %v2264
    %v2266 = vsub.f32 1.0, %v2265
    %v2267 = vmul.f32 %v2264, %v2266
    %v2268 = vadd.f32 %v2264, %v2267
    %vm2269 = vweird.f32 %v2263
    %vm2270 = vweird.f32 %v2264
    %vm2271 = vmor %vm2269, %vm2270
    %v2272 = vsel %vm2271, %v2264, %v2268
    %v2273 = vand.u32 2147483647, %v2263
    %vm2274 = vcmp.eq.f32.partialorder %v2273, 8.507059e+37
    %v2275 = vand.u32 %v2263, 2147483648
    %v2276 = vor.u32 1.1754944e-38, %v2275
    %v2277 = vsel %vm2274, %v2276, %v2272
    %v2278 = vmul.f32 1.0, %v2277
    %v2279 = vtanh.pop %v2259
    %v2280 = vmul.f32 %v2278, %v2228
    %2282 = vrot.lane.b32.xlu0 %v2279, 120
    %v2283 = vpop.permute.xlu0 %2282
    %v2285 = vmul.f32 %v2278, %v2283
    %2287 = vrot.lane.b32.xlu0 %v2285, 4
    %v2288 = vpop.permute.xlu0 %2287
    %v2290 = vadd.f32 %v2280, %v2288
    %v2291 = vtanh.pop %v2290
    %2293 = vrot.lane.b32.xlu0 %v2291, 8
    %v2294 = vpop.permute.xlu0 %2293
    %v2296 = vmul.f32 %v2278, %v2294
    %v2297 = vld [vmem:[#allocation4] sm:$0xff]
    %v2298 = vld [vmem:[#allocation4 + $0x8] sm:$0xff]
    %v2299 = vld [vmem:[#allocation4 + $0x10] sm:$0xff]
    %v2300 = vld [vmem:[#allocation4 + $0x18] sm:$0xff]
    %2301 = vrot.lane.b32.xlu0 %v1924, 116
    %v2302 = vpop.permute.xlu0 %2301
    %v2304 = vrot.slane %v2297, 4
    %v2305 = vsel %vm74, %v2302, 0
    %v2307 = vsel %vm153, %v2304, 0
    %2309 = vmatpush.msra.mxu0 0.0
    %2310 = vmatpush.msra.mxu0 0.0
    %2311 = vmatpush.msra.mxu0 0.0
    %2312 = vmatpush.msra.mxu0 0.0
    %2313 = vmatpush.msra.mxu0 0.0
    %2314 = vmatpush.msra.mxu0 0.0
    %2315 = vmatpush.msra.mxu0 0.0
    %2316 = vmatpush.msra.mxu0 0.0
    %2317 = vmatpush.msra.mxu0 0.0
    %2318 = vmatpush.msra.mxu0 0.0
    %2319 = vmatpush.msra.mxu0 0.0
    %2320 = vmatpush.msra.mxu0 0.0
    %2321 = vmatpush.msra.mxu0 0.0
    %2322 = vmatpush.msra.mxu0 0.0
    %2323 = vmatpush.msra.mxu0 0.0
    %2324 = vmatpush.msra.mxu0 %v2307
    %2325 = vmatmul.f32.gmra.mxu0 %v2305
    %v2326 = vpop.f32.mrf.mxu0
    %v2327 = vadd.f32 0.0, %v2326
    %2328 = vdwg.mxu0
    %2329 = vrot.lane.b32.xlu0 %v2048, 116
    %v2330 = vpop.permute.xlu0 %2329
    %v2332 = vrot.slane %v2298, 4
    %v2333 = vsel %vm74, %v2330, 0
    %v2335 = vsel %vm153, %v2332, 0
    %2337 = vmatpush.msra.mxu0 0.0
    %2338 = vmatpush.msra.mxu0 0.0
    %2339 = vmatpush.msra.mxu0 0.0
    %2340 = vmatpush.msra.mxu0 0.0
    %2341 = vmatpush.msra.mxu0 0.0
    %2342 = vmatpush.msra.mxu0 0.0
    %2343 = vmatpush.msra.mxu0 0.0
    %2344 = vmatpush.msra.mxu0 0.0
    %2345 = vmatpush.msra.mxu0 0.0
    %2346 = vmatpush.msra.mxu0 0.0
    %2347 = vmatpush.msra.mxu0 0.0
    %2348 = vmatpush.msra.mxu0 0.0
    %2349 = vmatpush.msra.mxu0 0.0
    %2350 = vmatpush.msra.mxu0 0.0
    %2351 = vmatpush.msra.mxu0 0.0
    %2352 = vmatpush.msra.mxu0 %v2335
    %2353 = vmatmul.f32.gmra.mxu0 %v2333
    %v2354 = vpop.f32.mrf.mxu0
    %v2355 = vadd.f32 0.0, %v2354
    %2356 = vdwg.mxu0
    %2357 = vrot.lane.b32.xlu0 %v2172, 116
    %v2358 = vpop.permute.xlu0 %2357
    %v2360 = vrot.slane %v2299, 4
    %v2361 = vsel %vm74, %v2358, 0
    %v2363 = vsel %vm153, %v2360, 0
    %2365 = vmatpush.msra.mxu0 0.0
    %2366 = vmatpush.msra.mxu0 0.0
    %2367 = vmatpush.msra.mxu0 0.0
    %2368 = vmatpush.msra.mxu0 0.0
    %2369 = vmatpush.msra.mxu0 0.0
    %2370 = vmatpush.msra.mxu0 0.0
    %2371 = vmatpush.msra.mxu0 0.0
    %2372 = vmatpush.msra.mxu0 0.0
    %2373 = vmatpush.msra.mxu0 0.0
    %2374 = vmatpush.msra.mxu0 0.0
    %2375 = vmatpush.msra.mxu0 0.0
    %2376 = vmatpush.msra.mxu0 0.0
    %2377 = vmatpush.msra.mxu0 0.0
    %2378 = vmatpush.msra.mxu0 0.0
    %2379 = vmatpush.msra.mxu0 0.0
    %2380 = vmatpush.msra.mxu0 %v2363
    %2381 = vmatmul.f32.gmra.mxu0 %v2361
    %v2382 = vpop.f32.mrf.mxu0
    %v2383 = vadd.f32 0.0, %v2382
    %2384 = vdwg.mxu0
    %2386 = vrot.lane.b32.xlu0 %v2296, 116
    %v2387 = vpop.permute.xlu0 %2386
    %v2389 = vrot.slane %v2300, 4
    %v2390 = vsel %vm74, %v2387, 0
    %v2392 = vsel %vm153, %v2389, 0
    %2394 = vmatpush.msra.mxu0 0.0
    %2395 = vmatpush.msra.mxu0 0.0
    %2396 = vmatpush.msra.mxu0 0.0
    %2397 = vmatpush.msra.mxu0 0.0
    %2398 = vmatpush.msra.mxu0 0.0
    %2399 = vmatpush.msra.mxu0 0.0
    %2400 = vmatpush.msra.mxu0 0.0
    %2401 = vmatpush.msra.mxu0 0.0
    %2402 = vmatpush.msra.mxu0 0.0
    %2403 = vmatpush.msra.mxu0 0.0
    %2404 = vmatpush.msra.mxu0 0.0
    %2405 = vmatpush.msra.mxu0 0.0
    %2406 = vmatpush.msra.mxu0 0.0
    %2407 = vmatpush.msra.mxu0 0.0
    %2408 = vmatpush.msra.mxu0 0.0
    %2409 = vmatpush.msra.mxu0 %v2392
    %2410 = vmatmul.f32.gmra.mxu0 %v2390
    %v2411 = vpop.f32.mrf.mxu0
    %v2412 = vadd.f32 0.0, %v2411
    %2413 = vdwg.mxu0
    %2414 = vrot.lane.b32.xlu0 %v1858, 116
    %v2415 = vpop.permute.xlu0 %2414
    %v2416 = vsel %vm74, %v2415, 0
    %v2418 = vsel %vm153, %v2297, 0
    %2420 = vmatpush.msra.mxu0 0.0
    %2421 = vmatpush.msra.mxu0 0.0
    %2422 = vmatpush.msra.mxu0 0.0
    %2423 = vmatpush.msra.mxu0 0.0
    %2424 = vmatpush.msra.mxu0 0.0
    %2425 = vmatpush.msra.mxu0 0.0
    %2426 = vmatpush.msra.mxu0 0.0
    %2427 = vmatpush.msra.mxu0 0.0
    %2428 = vmatpush.msra.mxu0 0.0
    %2429 = vmatpush.msra.mxu0 0.0
    %2430 = vmatpush.msra.mxu0 0.0
    %2431 = vmatpush.msra.mxu0 0.0
    %2432 = vmatpush.msra.mxu0 0.0
    %2433 = vmatpush.msra.mxu0 0.0
    %2434 = vmatpush.msra.mxu0 0.0
    %2435 = vmatpush.msra.mxu0 %v2418
    %2436 = vmatmul.f32.gmra.mxu0 %v2416
    %v2437 = vpop.f32.mrf.mxu0
    %v2438 = vadd.f32 %v2327, %v2437
    %2439 = vdwg.mxu0
    %2440 = vrot.lane.b32.xlu0 %v1986, 116
    %v2441 = vpop.permute.xlu0 %2440
    %v2442 = vsel %vm74, %v2441, 0
    %v2444 = vsel %vm153, %v2298, 0
    %2446 = vmatpush.msra.mxu0 0.0
    %2447 = vmatpush.msra.mxu0 0.0
    %2448 = vmatpush.msra.mxu0 0.0
    %2449 = vmatpush.msra.mxu0 0.0
    %2450 = vmatpush.msra.mxu0 0.0
    %2451 = vmatpush.msra.mxu0 0.0
    %2452 = vmatpush.msra.mxu0 0.0
    %2453 = vmatpush.msra.mxu0 0.0
    %2454 = vmatpush.msra.mxu0 0.0
    %2455 = vmatpush.msra.mxu0 0.0
    %2456 = vmatpush.msra.mxu0 0.0
    %2457 = vmatpush.msra.mxu0 0.0
    %2458 = vmatpush.msra.mxu0 0.0
    %2459 = vmatpush.msra.mxu0 0.0
    %2460 = vmatpush.msra.mxu0 0.0
    %2461 = vmatpush.msra.mxu0 %v2444
    %2462 = vmatmul.f32.gmra.mxu0 %v2442
    %v2463 = vpop.f32.mrf.mxu0
    %v2464 = vadd.f32 %v2355, %v2463
    %2465 = vdwg.mxu0
    %2466 = vrot.lane.b32.xlu0 %v2110, 116
    %v2467 = vpop.permute.xlu0 %2466
    %v2468 = vsel %vm74, %v2467, 0
    %v2470 = vsel %vm153, %v2299, 0
    %2472 = vmatpush.msra.mxu0 0.0
    %2473 = vmatpush.msra.mxu0 0.0
    %2474 = vmatpush.msra.mxu0 0.0
    %2475 = vmatpush.msra.mxu0 0.0
    %2476 = vmatpush.msra.mxu0 0.0
    %2477 = vmatpush.msra.mxu0 0.0
    %2478 = vmatpush.msra.mxu0 0.0
    %2479 = vmatpush.msra.mxu0 0.0
    %2480 = vmatpush.msra.mxu0 0.0
    %2481 = vmatpush.msra.mxu0 0.0
    %2482 = vmatpush.msra.mxu0 0.0
    %2483 = vmatpush.msra.mxu0 0.0
    %2484 = vmatpush.msra.mxu0 0.0
    %2485 = vmatpush.msra.mxu0 0.0
    %2486 = vmatpush.msra.mxu0 0.0
    %2487 = vmatpush.msra.mxu0 %v2470
    %2488 = vmatmul.f32.gmra.mxu0 %v2468
    %v2489 = vpop.f32.mrf.mxu0
    %v2490 = vadd.f32 %v2383, %v2489
    %2491 = vdwg.mxu0
    %2492 = vrot.lane.b32.xlu0 %v2234, 116
    %v2493 = vpop.permute.xlu0 %2492
    %v2494 = vsel %vm74, %v2493, 0
    %v2496 = vsel %vm153, %v2300, 0
    %2498 = vmatpush.msra.mxu0 0.0
    %2499 = vmatpush.msra.mxu0 0.0
    %2500 = vmatpush.msra.mxu0 0.0
    %2501 = vmatpush.msra.mxu0 0.0
    %2502 = vmatpush.msra.mxu0 0.0
    %2503 = vmatpush.msra.mxu0 0.0
    %2504 = vmatpush.msra.mxu0 0.0
    %2505 = vmatpush.msra.mxu0 0.0
    %2506 = vmatpush.msra.mxu0 0.0
    %2507 = vmatpush.msra.mxu0 0.0
    %2508 = vmatpush.msra.mxu0 0.0
    %2509 = vmatpush.msra.mxu0 0.0
    %2510 = vmatpush.msra.mxu0 0.0
    %2511 = vmatpush.msra.mxu0 0.0
    %2512 = vmatpush.msra.mxu0 0.0
    %2513 = vmatpush.msra.mxu0 %v2496
    %2514 = vmatmul.f32.gmra.mxu0 %v2494
    %v2515 = vpop.f32.mrf.mxu0
    %v2516 = vadd.f32 %v2412, %v2515
    %2517 = vdwg.mxu0
    %v2518 = vadd.f32 %v2438, %v2464
    %v2519 = vadd.f32 %v2490, %v2516
    %v2520 = vadd.f32 %v2518, %v2519
    %v2521 = vld [vmem:[%s14] sm:$0x1]
    %v2523 = vperm.slane %v2521, 0
    %v2525 = vadd.f32 %v2520, %v2523
    %v2526 = vld [vmem:[%s15] sm:$0xff]
    %v2527 = vld [vmem:[%s15 + $0x8] sm:$0xff]
    %v2528 = vld [vmem:[%s15 + $0x10] sm:$0xff]
    %v2529 = vld [vmem:[%s15 + $0x18] sm:$0xff]
    %v2530 = vld [vmem:[%s15 + $0x20] sm:$0xff]
    %v2531 = vld [vmem:[%s15 + $0x28] sm:$0xff]
    %v2532 = vld [vmem:[%s15 + $0x30] sm:$0xff]
    %v2533 = vld [vmem:[%s15 + $0x38] sm:$0xff]
    %v2534 = vld [vmem:[#allocation3] sm:$0x1]
    %v2536 = vperm.slane %v2534, 0
    %vm2538 = vcmask 523264
    %v2540 = vsel %vm2538, %v2525, 0
    %2542 = vmatpush.msra.mxu0 0.0
    %2543 = vmatpush.msra.mxu0 0.0
    %2544 = vmatpush.msra.mxu0 0.0
    %2545 = vmatpush.msra.mxu0 0.0
    %2546 = vmatpush.msra.mxu0 0.0
    %2547 = vmatpush.msra.mxu0 0.0
    %2548 = vmatpush.msra.mxu0 0.0
    %2549 = vmatpush.msra.mxu0 0.0
    %2550 = vmatpush.msra.mxu0 %v2533
    %2551 = vmatpush.msra.mxu0 %v2532
    %2552 = vmatpush.msra.mxu0 %v2531
    %2553 = vmatpush.msra.mxu0 %v2530
    %2554 = vmatpush.msra.mxu0 %v2529
    %2555 = vmatpush.msra.mxu0 %v2528
    %2556 = vmatpush.msra.mxu0 %v2527
    %2557 = vmatpush.msra.mxu0 %v2526
    %2558 = vmatmul.f32.gmra.mxu0 %v2540
    %v2559 = vpop.f32.mrf.mxu0
    %v2560 = vadd.f32 %v2536, %v2559
    %2561 = vdwg.mxu0
    %vm2562 = vcmask 1024
    %2563 = vst.msk [vmem:[%s17] sm:$0x3] %vm2562, %v2560
    // Predicated region
    $region74: #{lstm_model_forward.1} parent=1 // pred_check
      _
    $region75: #{lstm_model_forward.1} parent=1 // pred_check_branch
      %2565 = sbr.rel (0) target = $region77
    $region76: #{lstm_model_forward.1} parent=1 // pred_region
      _
    $region77: #{lstm_model_forward.1} parent=1 // pred_fallthru
      _
    // Predicated region
    $region78: #{lstm_model_forward.1} parent=1 // pred_check
      _
    $region79: #{lstm_model_forward.1} parent=1 // pred_check_branch
      %2567 = sbr.rel (0) target = $region81
    $region80: #{lstm_model_forward.1} parent=1 // pred_region
      _
    $region81: #{lstm_model_forward.1} parent=1 // pred_fallthru
      _
    %2568 = vsyncpa [#allocation5], 1

</llo_original>
